<compile_context>
chip_gen: v7x
topology: tpu7x:2x2x1
jax: 0.10.0
libtpu: 0.0.40
codegen_flags: <defaults>
</compile_context>

<pallas_src>
import functools

import jax
import jax.numpy as jnp
from jax.experimental import pallas as pl
from jax.experimental.pallas import tpu as pltpu


# ------------------------------------------------------------------ bias / LayerNorm slab layout

def _bias_layout(num_layers):
    """Row index of every (D,)-sized bias / LayerNorm parameter in the packed f32 slab."""
    rows = {}

    def add(name):
        rows[name] = len(rows)

    add("in_b")
    for l in range(num_layers):
        for n in ("enc_attn_b", "enc_ffn_b2", "enc_ln1_g", "enc_ln1_b",
                  "enc_ln2_g", "enc_ln2_b"):
            add(f"{n}_{l}")
    add("enc_norm_g"); add("enc_norm_b")
    for l in range(num_layers):
        for n in ("dec_attn_b", "dec_cross_b", "dec_ffn_b2",
                  "dec_ln1_g", "dec_ln1_b", "dec_ln2_g", "dec_ln2_b",
                  "dec_ln3_g", "dec_ln3_b"):
            add(f"{n}_{l}")
    add("dec_norm_g"); add("dec_norm_b")
    add("out_w"); add("out_b")
    return rows


# ------------------------------------------------------------------ fused kernel

def _fused_forward_kernel(x_ref, in_w_ref, attn_w_ref, w1_ref, b1_ref, w2_ref, bias_ref,
                          o_ref, *, num_layers, hidden, rows):
    f32, bf16 = jnp.float32, jnp.bfloat16
    D, L = hidden, num_layers

    def brow(name):                                   # (1, D) f32 slab row (static slice)
        i = rows[name]
        return bias_ref[i:i + 1, :]

    def ln(y, g, b):                                  # LayerNorm, eps=1e-5 (PyTorch default)
        mean = jnp.mean(y, axis=-1, keepdims=True)
        var = jnp.mean(jnp.square(y - mean), axis=-1, keepdims=True)
        return (y - mean) * jax.lax.rsqrt(var + 1e-5) * brow(g) + brow(b)

    attn_w = attn_w_ref[...]                          # (D, 3L*D) bf16: enc self | dec self | dec cross
    w2 = w2_ref[...]                                  # (F, 2L*D) bf16: enc | dec

    def attn(h, col, bname):
        # seq_len == 1 => softmax over one key == 1 => attention == out_proj(v_proj(.)),
        # folded at pack time into one (D, D) matrix. Lane-dense full-slab matmul (extra
        # output columns are free on the MXU), then a static 32-lane output slice.
        full = jnp.dot(h.astype(bf16), attn_w, preferred_element_type=f32)
        return full[:, col * D:(col + 1) * D] + brow(bname)

    def ffn(h, idx, b2name):
        h1 = jnp.dot(h.astype(bf16), w1_ref[idx], preferred_element_type=f32)
        h1 = jnp.maximum(h1 + b1_ref[idx:idx + 1, :], 0.0)
        full = jnp.dot(h1.astype(bf16), w2, preferred_element_type=f32)
        return full[:, idx * D:(idx + 1) * D] + brow(b2name)

    x = x_ref[...]                                    # (B, input_size) f32
    h = jnp.dot(x.astype(bf16), in_w_ref[...], preferred_element_type=f32) + brow("in_b")
    # x.unsqueeze(1): seq dim of length 1 kept implicit; activations stay (B, D).

    # ---------------- encoder (post-LN, relu — PyTorch defaults)
    mem = h
    for l in range(L):
        a = attn(mem, l, f"enc_attn_b_{l}")
        mem = ln(mem + a, f"enc_ln1_g_{l}", f"enc_ln1_b_{l}")
        f = ffn(mem, l, f"enc_ffn_b2_{l}")
        mem = ln(mem + f, f"enc_ln2_g_{l}", f"enc_ln2_b_{l}")
    mem = ln(mem, "enc_norm_g", "enc_norm_b")         # nn.Transformer encoder final norm

    # Hoisted decoder cross-attention: with one memory token every layer's cross block is
    # out_proj(v_proj(mem)) (query-independent) -> all L layers in ONE matmul on `mem`.
    cross_full = jnp.dot(mem.astype(bf16), attn_w, preferred_element_type=f32)

    # ---------------- decoder
    out = h
    for l in range(L):
        a = attn(out, L + l, f"dec_attn_b_{l}")
        out = ln(out + a, f"dec_ln1_g_{l}", f"dec_ln1_b_{l}")
        c = cross_full[:, (2 * L + l) * D:(2 * L + l + 1) * D] + brow(f"dec_cross_b_{l}")
        out = ln(out + c, f"dec_ln2_g_{l}", f"dec_ln2_b_{l}")
        f = ffn(out, L + l, f"dec_ffn_b2_{l}")
        out = ln(out + f, f"dec_ln3_g_{l}", f"dec_ln3_b_{l}")
    out = ln(out, "dec_norm_g", "dec_norm_b")         # nn.Transformer decoder final norm

    # ---------------- output_layer: Linear(hidden, 1) as a fused lane row-dot epilogue
    o_ref[...] = (jnp.sum(out * brow("out_w"), axis=-1, keepdims=True)
                  + brow("out_b")[:, 0:1])


# ------------------------------------------------------------------ wrapper

def stock_transformer_forward(p, x):
    """x: (B, input_size) f32, p: packed kernel operands (pack_params) -> (B, 1) f32."""
    D = p["attn_w"].shape[0]
    L = p["w1"].shape[0] // 2
    rows = _bias_layout(L)
    B = x.shape[0]
    ops = [p["in_w"], p["attn_w"], p["w1"], p["b1"], p["w2"], p["bias"]]

    def full_spec(shape):
        n = len(shape)
        return pl.BlockSpec(shape, lambda i, _n=n: (0,) * _n)

    return pl.pallas_call(
        functools.partial(_fused_forward_kernel, num_layers=L, hidden=D, rows=rows),
        out_shape=jax.ShapeDtypeStruct((B, 1), jnp.float32),
        grid=(1,),
        in_specs=[full_spec(x.shape)] + [full_spec(a.shape) for a in ops],
        out_specs=full_spec((B, 1)),
        # Working set ~1.1 MiB of weights -> far below every generation's scoped-VMEM default.
        compiler_params=pltpu.CompilerParams(dimension_semantics=("arbitrary",)),
    )(x, *ops)


# ------------------------------------------------------------------ one-time param packing

def pack_params(params):
    """One-time conversion from PyTorch nn.Linear layout to lane-dense kernel operands.

    * each MHA's V and O projections folded (in f32) into ONE (in, out) (D, D) matrix
      (exact for seq_len == 1; Q/K are mathematically unused)
    * folded attention matrices lane-concatenated into one (D, 3L*D) bf16 slab
      [enc self 0..L-1 | dec self 0..L-1 | dec cross 0..L-1]
    * FFN up-projections stacked to (2L, D, F) bf16; down-projections lane-concatenated
      to (F, 2L*D) bf16 (lane-dense last dims)
    * every (D,)-sized bias / LayerNorm parameter packed into one (R, D) f32 slab
    * all matmul weights bf16 (f32 accumulation in-kernel); bias / norm params f32
    """
    f32, bf16 = jnp.float32, jnp.bfloat16
    D = params["input_w"].shape[0]
    L = len(params["enc_layers"])
    rows = _bias_layout(L)

    def fold_attn(a):
        wv = jnp.asarray(a["in_proj_w"], f32)[2 * D:3 * D]     # PyTorch (out, in) V slice
        bv = jnp.asarray(a["in_proj_b"], f32)[2 * D:3 * D]
        wo = jnp.asarray(a["out_proj_w"], f32)
        bo = jnp.asarray(a["out_proj_b"], f32)
        w = wv.T @ wo.T                                        # folded (in, out), f32
        b = bv @ wo.T + bo
        return w, b

    enc, dec = params["enc_layers"], params["dec_layers"]
    enc_f = [fold_attn(l["self_attn"]) for l in enc]
    dec_f = [fold_attn(l["self_attn"]) for l in dec]
    cro_f = [fold_attn(l["cross_attn"]) for l in dec]

    attn_w = jnp.concatenate([w for w, _ in enc_f + dec_f + cro_f], axis=1).astype(bf16)
    w1 = jnp.stack([jnp.asarray(l["lin1_w"], f32).T for l in enc + dec], 0).astype(bf16)
    b1 = jnp.stack([jnp.asarray(l["lin1_b"], f32) for l in enc + dec], 0)
    w2 = jnp.concatenate([jnp.asarray(l["lin2_w"], f32).T for l in enc + dec],
                         axis=1).astype(bf16)

    n_rows = (len(rows) + 7) // 8 * 8                          # sublane-pad the slab
    bias = jnp.zeros((n_rows, D), f32)

    def put(slab, name, v):
        return slab.at[rows[name]].set(jnp.asarray(v, f32).reshape(-1))

    bias = put(bias, "in_b", params["input_b"])
    for l in range(L):
        bias = put(bias, f"enc_attn_b_{l}", enc_f[l][1])
        bias = put(bias, f"enc_ffn_b2_{l}", enc[l]["lin2_b"])
        bias = put(bias, f"enc_ln1_g_{l}", enc[l]["norm1_g"])
        bias = put(bias, f"enc_ln1_b_{l}", enc[l]["norm1_b"])
        bias = put(bias, f"enc_ln2_g_{l}", enc[l]["norm2_g"])
        bias = put(bias, f"enc_ln2_b_{l}", enc[l]["norm2_b"])
    bias = put(bias, "enc_norm_g", params["enc_norm_g"])
    bias = put(bias, "enc_norm_b", params["enc_norm_b"])
    for l in range(L):
        bias = put(bias, f"dec_attn_b_{l}", dec_f[l][1])
        bias = put(bias, f"dec_cross_b_{l}", cro_f[l][1])
        bias = put(bias, f"dec_ffn_b2_{l}", dec[l]["lin2_b"])
        bias = put(bias, f"dec_ln1_g_{l}", dec[l]["norm1_g"])
        bias = put(bias, f"dec_ln1_b_{l}", dec[l]["norm1_b"])
        bias = put(bias, f"dec_ln2_g_{l}", dec[l]["norm2_g"])
        bias = put(bias, f"dec_ln2_b_{l}", dec[l]["norm2_b"])
        bias = put(bias, f"dec_ln3_g_{l}", dec[l]["norm3_g"])
        bias = put(bias, f"dec_ln3_b_{l}", dec[l]["norm3_b"])
    bias = put(bias, "dec_norm_g", params["dec_norm_g"])
    bias = put(bias, "dec_norm_b", params["dec_norm_b"])
    bias = put(bias, "out_w", params["output_w"])
    bias = put(bias, "out_b", jnp.full((D,), jnp.asarray(params["output_b"], f32)[0]))

    return dict(
        in_w=jnp.asarray(params["input_w"], f32).T.astype(bf16),
        attn_w=attn_w, w1=w1, b1=b1, w2=w2, bias=bias,
    )


# ------------------------------------------------------------------ deterministic init (PyTorch layout)

def init_params(key, input_size, hidden, num_layers, dim_ff):
    keys = iter(jax.random.split(key, 4096))

    def w(shape, scale=0.05):
        return scale * jax.random.normal(next(keys), shape, jnp.float32)

    def attn(d):
        return dict(in_proj_w=w((3 * d, d)), in_proj_b=w((3 * d,)),
                    out_proj_w=w((d, d)), out_proj_b=w((d,)))

    def enc_layer(d, ff):
        return dict(self_attn=attn(d),
                    lin1_w=w((ff, d)), lin1_b=w((ff,)),
                    lin2_w=w((d, ff)), lin2_b=w((d,)),
                    norm1_g=jnp.ones((d,), jnp.float32), norm1_b=jnp.zeros((d,), jnp.float32),
                    norm2_g=jnp.ones((d,), jnp.float32), norm2_b=jnp.zeros((d,), jnp.float32))

    def dec_layer(d, ff):
        p = enc_layer(d, ff)
        p["cross_attn"] = attn(d)
        p["norm3_g"] = jnp.ones((d,), jnp.float32)
        p["norm3_b"] = jnp.zeros((d,), jnp.float32)
        return p

    return dict(
        input_w=w((hidden, input_size)), input_b=w((hidden,)),
        enc_layers=[enc_layer(hidden, dim_ff) for _ in range(num_layers)],
        enc_norm_g=jnp.ones((hidden,), jnp.float32), enc_norm_b=jnp.zeros((hidden,), jnp.float32),
        dec_layers=[dec_layer(hidden, dim_ff) for _ in range(num_layers)],
        dec_norm_g=jnp.ones((hidden,), jnp.float32), dec_norm_b=jnp.zeros((hidden,), jnp.float32),
        output_w=w((1, hidden)), output_b=w((1,)),
    )


# ------------------------------------------------------------------ main

if __name__ == "__main__":
    INPUT_SIZE = 8      # input_size
    HIDDEN = 32         # hidden_size (d_model), divisible by nhead=2
    NUM_LAYERS = 2      # num_encoder_layers = num_decoder_layers
    DIM_FF = 2048       # nn.Transformer default dim_feedforward
    BATCH = 8           # sublane-filling batch (perf-review throughput item)

    key = jax.random.PRNGKey(0)
    pkey, xkey = jax.random.split(key)
    torch_layout_params = init_params(pkey, INPUT_SIZE, HIDDEN, NUM_LAYERS, DIM_FF)
    packed = pack_params(torch_layout_params)   # one-time fold/transpose/lane-pack/bf16 cast
    x = jax.random.normal(xkey, (BATCH, INPUT_SIZE), jnp.float32)

    fwd = jax.jit(stock_transformer_forward)
    y = fwd(packed, x)
    jax.block_until_ready(y)
    assert y.shape == (BATCH, 1) and y.dtype == jnp.float32
    print("KERNEL_OK")
</pallas_src>

<mosaic_0001>
module attributes {stable_mosaic.version = 11 : i64} {
  func.func @_fused_forward_kernel(%arg0: i32, %arg1: memref<8x8xf32, #tpu.memory_space<vmem>>, %arg2: memref<8x32xbf16, #tpu.memory_space<vmem>>, %arg3: memref<32x192xbf16, #tpu.memory_space<vmem>>, %arg4: memref<4x32x2048xbf16, #tpu.memory_space<vmem>>, %arg5: memref<4x2048xf32, #tpu.memory_space<vmem>>, %arg6: memref<2048x128xbf16, #tpu.memory_space<vmem>>, %arg7: memref<40x32xf32, #tpu.memory_space<vmem>>, %arg8: memref<8x1xf32, #tpu.memory_space<vmem>>) attributes {dimension_semantics = [#tpu.dimension_semantics<arbitrary>], iteration_bounds = array<i64: 1>, scalar_prefetch = 0 : i64, scratch_operands = 0 : i64, tpu.core_type = #tpu.core_type<tc>, window_params = [{pipeline_mode = #tpu.pipeline_mode<synchronous>, transform_indices = @transform_0, window_bounds = array<i64: 8, 8>}, {pipeline_mode = #tpu.pipeline_mode<synchronous>, transform_indices = @transform_1, window_bounds = array<i64: 8, 32>}, {pipeline_mode = #tpu.pipeline_mode<synchronous>, transform_indices = @transform_2, window_bounds = array<i64: 32, 192>}, {pipeline_mode = #tpu.pipeline_mode<synchronous>, transform_indices = @transform_3, window_bounds = array<i64: 4, 32, 2048>}, {pipeline_mode = #tpu.pipeline_mode<synchronous>, transform_indices = @transform_4, window_bounds = array<i64: 4, 2048>}, {pipeline_mode = #tpu.pipeline_mode<synchronous>, transform_indices = @transform_5, window_bounds = array<i64: 2048, 128>}, {pipeline_mode = #tpu.pipeline_mode<synchronous>, transform_indices = @transform_6, window_bounds = array<i64: 40, 32>}, {pipeline_mode = #tpu.pipeline_mode<synchronous>, transform_indices = @transform_7, window_bounds = array<i64: 8, 1>}]} {
    %c0 = arith.constant 0 : index
    %c0_0 = arith.constant 0 : index
    %0 = vector.load %arg3[%c0, %c0_0] : memref<32x192xbf16, #tpu.memory_space<vmem>>, vector<32x192xbf16>
    %c0_1 = arith.constant 0 : index
    %c0_2 = arith.constant 0 : index
    %1 = vector.load %arg6[%c0_1, %c0_2] : memref<2048x128xbf16, #tpu.memory_space<vmem>>, vector<2048x128xbf16>
    %c0_3 = arith.constant 0 : index
    %c0_4 = arith.constant 0 : index
    %2 = vector.load %arg1[%c0_3, %c0_4] : memref<8x8xf32, #tpu.memory_space<vmem>>, vector<8x8xf32>
    %3 = arith.truncf %2 : vector<8x8xf32> to vector<8x8xbf16>
    %c0_5 = arith.constant 0 : index
    %c0_6 = arith.constant 0 : index
    %4 = vector.load %arg2[%c0_5, %c0_6] : memref<8x32xbf16, #tpu.memory_space<vmem>>, vector<8x32xbf16>
    %cst = arith.constant dense<0.000000e+00> : vector<8x32xf32>
    %5 = tpu.matmul %3, %4, %cst {dimension_numbers = #tpu.dot_dimension_numbers<[1], [0], [0], [1], [0, 0, 1, 1], [], []>} : vector<8x8xbf16>, vector<8x32xbf16>, vector<8x32xf32> -> vector<8x32xf32>
    %c0_7 = arith.constant 0 : index
    %c0_8 = arith.constant 0 : index
    %6 = vector.load %arg7[%c0_7, %c0_8] : memref<40x32xf32, #tpu.memory_space<vmem>>, vector<1x32xf32>
    %7 = vector.broadcast %6 : vector<1x32xf32> to vector<8x32xf32>
    %8 = arith.addf %5, %7 : vector<8x32xf32>
    %9 = arith.truncf %8 : vector<8x32xf32> to vector<8x32xbf16>
    %cst_9 = arith.constant dense<0.000000e+00> : vector<8x192xf32>
    %10 = tpu.matmul %9, %0, %cst_9 {dimension_numbers = #tpu.dot_dimension_numbers<[1], [0], [0], [1], [0, 0, 1, 1], [], []>} : vector<8x32xbf16>, vector<32x192xbf16>, vector<8x192xf32> -> vector<8x192xf32>
    %11 = vector.extract_strided_slice %10 {offsets = [0, 0], sizes = [8, 32], strides = [1, 1]} : vector<8x192xf32> to vector<8x32xf32>
    %c1 = arith.constant 1 : index
    %c0_10 = arith.constant 0 : index
    %12 = vector.load %arg7[%c1, %c0_10] : memref<40x32xf32, #tpu.memory_space<vmem>>, vector<1x32xf32>
    %13 = vector.broadcast %12 : vector<1x32xf32> to vector<8x32xf32>
    %14 = arith.addf %11, %13 : vector<8x32xf32>
    %15 = arith.addf %8, %14 : vector<8x32xf32>
    %cst_11 = arith.constant dense<0.000000e+00> : vector<8xf32>
    %16 = vector.multi_reduction <add>, %15, %cst_11 [1] : vector<8x32xf32> to vector<8xf32>
    %17 = vector.shape_cast %16 : vector<8xf32> to vector<8x1xf32>
    %cst_12 = arith.constant 3.200000e+01 : f32
    %18 = vector.broadcast %cst_12 : f32 to vector<8x1xf32>
    %19 = arith.divf %17, %18 : vector<8x1xf32>
    %20 = vector.broadcast %19 : vector<8x1xf32> to vector<8x32xf32>
    %21 = arith.subf %15, %20 : vector<8x32xf32>
    %22 = arith.mulf %21, %21 : vector<8x32xf32>
    %cst_13 = arith.constant dense<0.000000e+00> : vector<8xf32>
    %23 = vector.multi_reduction <add>, %22, %cst_13 [1] : vector<8x32xf32> to vector<8xf32>
    %24 = vector.shape_cast %23 : vector<8xf32> to vector<8x1xf32>
    %cst_14 = arith.constant 3.200000e+01 : f32
    %25 = vector.broadcast %cst_14 : f32 to vector<8x1xf32>
    %26 = arith.divf %24, %25 : vector<8x1xf32>
    %27 = vector.broadcast %19 : vector<8x1xf32> to vector<8x32xf32>
    %28 = arith.subf %15, %27 : vector<8x32xf32>
    %cst_15 = arith.constant 9.99999974E-6 : f32
    %29 = vector.broadcast %cst_15 : f32 to vector<8x1xf32>
    %30 = arith.addf %26, %29 : vector<8x1xf32>
    %31 = math.rsqrt %30 : vector<8x1xf32>
    %32 = vector.broadcast %31 : vector<8x1xf32> to vector<8x32xf32>
    %33 = arith.mulf %28, %32 : vector<8x32xf32>
    %c3 = arith.constant 3 : index
    %c0_16 = arith.constant 0 : index
    %34 = vector.load %arg7[%c3, %c0_16] : memref<40x32xf32, #tpu.memory_space<vmem>>, vector<1x32xf32>
    %35 = vector.broadcast %34 : vector<1x32xf32> to vector<8x32xf32>
    %36 = arith.mulf %33, %35 : vector<8x32xf32>
    %c4 = arith.constant 4 : index
    %c0_17 = arith.constant 0 : index
    %37 = vector.load %arg7[%c4, %c0_17] : memref<40x32xf32, #tpu.memory_space<vmem>>, vector<1x32xf32>
    %38 = vector.broadcast %37 : vector<1x32xf32> to vector<8x32xf32>
    %39 = arith.addf %36, %38 : vector<8x32xf32>
    %40 = arith.truncf %39 : vector<8x32xf32> to vector<8x32xbf16>
    %c0_18 = arith.constant 0 : index
    %c0_19 = arith.constant 0 : index
    %c0_20 = arith.constant 0 : index
    %41 = vector.load %arg4[%c0_18, %c0_19, %c0_20] : memref<4x32x2048xbf16, #tpu.memory_space<vmem>>, vector<1x32x2048xbf16>
    %42 = vector.shape_cast %41 : vector<1x32x2048xbf16> to vector<32x2048xbf16>
    %cst_21 = arith.constant dense<0.000000e+00> : vector<8x2048xf32>
    %43 = tpu.matmul %40, %42, %cst_21 {dimension_numbers = #tpu.dot_dimension_numbers<[1], [0], [0], [1], [0, 0, 1, 1], [], []>} : vector<8x32xbf16>, vector<32x2048xbf16>, vector<8x2048xf32> -> vector<8x2048xf32>
    %c0_22 = arith.constant 0 : index
    %c0_23 = arith.constant 0 : index
    %44 = vector.load %arg5[%c0_22, %c0_23] : memref<4x2048xf32, #tpu.memory_space<vmem>>, vector<1x2048xf32>
    %45 = vector.broadcast %44 : vector<1x2048xf32> to vector<8x2048xf32>
    %46 = arith.addf %43, %45 : vector<8x2048xf32>
    %cst_24 = arith.constant 0.000000e+00 : f32
    %47 = vector.broadcast %cst_24 : f32 to vector<8x2048xf32>
    %48 = arith.maximumf %46, %47 : vector<8x2048xf32>
    %49 = arith.truncf %48 : vector<8x2048xf32> to vector<8x2048xbf16>
    %cst_25 = arith.constant dense<0.000000e+00> : vector<8x128xf32>
    %50 = tpu.matmul %49, %1, %cst_25 {dimension_numbers = #tpu.dot_dimension_numbers<[1], [0], [0], [1], [0, 0, 1, 1], [], []>} : vector<8x2048xbf16>, vector<2048x128xbf16>, vector<8x128xf32> -> vector<8x128xf32>
    %51 = vector.extract_strided_slice %50 {offsets = [0, 0], sizes = [8, 32], strides = [1, 1]} : vector<8x128xf32> to vector<8x32xf32>
    %c2 = arith.constant 2 : index
    %c0_26 = arith.constant 0 : index
    %52 = vector.load %arg7[%c2, %c0_26] : memref<40x32xf32, #tpu.memory_space<vmem>>, vector<1x32xf32>
    %53 = vector.broadcast %52 : vector<1x32xf32> to vector<8x32xf32>
    %54 = arith.addf %51, %53 : vector<8x32xf32>
    %55 = arith.addf %39, %54 : vector<8x32xf32>
    %cst_27 = arith.constant dense<0.000000e+00> : vector<8xf32>
    %56 = vector.multi_reduction <add>, %55, %cst_27 [1] : vector<8x32xf32> to vector<8xf32>
    %57 = vector.shape_cast %56 : vector<8xf32> to vector<8x1xf32>
    %cst_28 = arith.constant 3.200000e+01 : f32
    %58 = vector.broadcast %cst_28 : f32 to vector<8x1xf32>
    %59 = arith.divf %57, %58 : vector<8x1xf32>
    %60 = vector.broadcast %59 : vector<8x1xf32> to vector<8x32xf32>
    %61 = arith.subf %55, %60 : vector<8x32xf32>
    %62 = arith.mulf %61, %61 : vector<8x32xf32>
    %cst_29 = arith.constant dense<0.000000e+00> : vector<8xf32>
    %63 = vector.multi_reduction <add>, %62, %cst_29 [1] : vector<8x32xf32> to vector<8xf32>
    %64 = vector.shape_cast %63 : vector<8xf32> to vector<8x1xf32>
    %cst_30 = arith.constant 3.200000e+01 : f32
    %65 = vector.broadcast %cst_30 : f32 to vector<8x1xf32>
    %66 = arith.divf %64, %65 : vector<8x1xf32>
    %67 = vector.broadcast %59 : vector<8x1xf32> to vector<8x32xf32>
    %68 = arith.subf %55, %67 : vector<8x32xf32>
    %cst_31 = arith.constant 9.99999974E-6 : f32
    %69 = vector.broadcast %cst_31 : f32 to vector<8x1xf32>
    %70 = arith.addf %66, %69 : vector<8x1xf32>
    %71 = math.rsqrt %70 : vector<8x1xf32>
    %72 = vector.broadcast %71 : vector<8x1xf32> to vector<8x32xf32>
    %73 = arith.mulf %68, %72 : vector<8x32xf32>
    %c5 = arith.constant 5 : index
    %c0_32 = arith.constant 0 : index
    %74 = vector.load %arg7[%c5, %c0_32] : memref<40x32xf32, #tpu.memory_space<vmem>>, vector<1x32xf32>
    %75 = vector.broadcast %74 : vector<1x32xf32> to vector<8x32xf32>
    %76 = arith.mulf %73, %75 : vector<8x32xf32>
    %c6 = arith.constant 6 : index
    %c0_33 = arith.constant 0 : index
    %77 = vector.load %arg7[%c6, %c0_33] : memref<40x32xf32, #tpu.memory_space<vmem>>, vector<1x32xf32>
    %78 = vector.broadcast %77 : vector<1x32xf32> to vector<8x32xf32>
    %79 = arith.addf %76, %78 : vector<8x32xf32>
    %80 = arith.truncf %79 : vector<8x32xf32> to vector<8x32xbf16>
    %cst_34 = arith.constant dense<0.000000e+00> : vector<8x192xf32>
    %81 = tpu.matmul %80, %0, %cst_34 {dimension_numbers = #tpu.dot_dimension_numbers<[1], [0], [0], [1], [0, 0, 1, 1], [], []>} : vector<8x32xbf16>, vector<32x192xbf16>, vector<8x192xf32> -> vector<8x192xf32>
    %82 = vector.extract_strided_slice %81 {offsets = [0, 32], sizes = [8, 32], strides = [1, 1]} : vector<8x192xf32> to vector<8x32xf32>
    %c7 = arith.constant 7 : index
    %c0_35 = arith.constant 0 : index
    %83 = vector.load %arg7[%c7, %c0_35] : memref<40x32xf32, #tpu.memory_space<vmem>>, vector<1x32xf32>
    %84 = vector.broadcast %83 : vector<1x32xf32> to vector<8x32xf32>
    %85 = arith.addf %82, %84 : vector<8x32xf32>
    %86 = arith.addf %79, %85 : vector<8x32xf32>
    %cst_36 = arith.constant dense<0.000000e+00> : vector<8xf32>
    %87 = vector.multi_reduction <add>, %86, %cst_36 [1] : vector<8x32xf32> to vector<8xf32>
    %88 = vector.shape_cast %87 : vector<8xf32> to vector<8x1xf32>
    %cst_37 = arith.constant 3.200000e+01 : f32
    %89 = vector.broadcast %cst_37 : f32 to vector<8x1xf32>
    %90 = arith.divf %88, %89 : vector<8x1xf32>
    %91 = vector.broadcast %90 : vector<8x1xf32> to vector<8x32xf32>
    %92 = arith.subf %86, %91 : vector<8x32xf32>
    %93 = arith.mulf %92, %92 : vector<8x32xf32>
    %cst_38 = arith.constant dense<0.000000e+00> : vector<8xf32>
    %94 = vector.multi_reduction <add>, %93, %cst_38 [1] : vector<8x32xf32> to vector<8xf32>
    %95 = vector.shape_cast %94 : vector<8xf32> to vector<8x1xf32>
    %cst_39 = arith.constant 3.200000e+01 : f32
    %96 = vector.broadcast %cst_39 : f32 to vector<8x1xf32>
    %97 = arith.divf %95, %96 : vector<8x1xf32>
    %98 = vector.broadcast %90 : vector<8x1xf32> to vector<8x32xf32>
    %99 = arith.subf %86, %98 : vector<8x32xf32>
    %cst_40 = arith.constant 9.99999974E-6 : f32
    %100 = vector.broadcast %cst_40 : f32 to vector<8x1xf32>
    %101 = arith.addf %97, %100 : vector<8x1xf32>
    %102 = math.rsqrt %101 : vector<8x1xf32>
    %103 = vector.broadcast %102 : vector<8x1xf32> to vector<8x32xf32>
    %104 = arith.mulf %99, %103 : vector<8x32xf32>
    %c9 = arith.constant 9 : index
    %c0_41 = arith.constant 0 : index
    %105 = vector.load %arg7[%c9, %c0_41] : memref<40x32xf32, #tpu.memory_space<vmem>>, vector<1x32xf32>
    %106 = vector.broadcast %105 : vector<1x32xf32> to vector<8x32xf32>
    %107 = arith.mulf %104, %106 : vector<8x32xf32>
    %c10 = arith.constant 10 : index
    %c0_42 = arith.constant 0 : index
    %108 = vector.load %arg7[%c10, %c0_42] : memref<40x32xf32, #tpu.memory_space<vmem>>, vector<1x32xf32>
    %109 = vector.broadcast %108 : vector<1x32xf32> to vector<8x32xf32>
    %110 = arith.addf %107, %109 : vector<8x32xf32>
    %111 = arith.truncf %110 : vector<8x32xf32> to vector<8x32xbf16>
    %c1_43 = arith.constant 1 : index
    %c0_44 = arith.constant 0 : index
    %c0_45 = arith.constant 0 : index
    %112 = vector.load %arg4[%c1_43, %c0_44, %c0_45] : memref<4x32x2048xbf16, #tpu.memory_space<vmem>>, vector<1x32x2048xbf16>
    %113 = vector.shape_cast %112 : vector<1x32x2048xbf16> to vector<32x2048xbf16>
    %cst_46 = arith.constant dense<0.000000e+00> : vector<8x2048xf32>
    %114 = tpu.matmul %111, %113, %cst_46 {dimension_numbers = #tpu.dot_dimension_numbers<[1], [0], [0], [1], [0, 0, 1, 1], [], []>} : vector<8x32xbf16>, vector<32x2048xbf16>, vector<8x2048xf32> -> vector<8x2048xf32>
    %c1_47 = arith.constant 1 : index
    %c0_48 = arith.constant 0 : index
    %115 = vector.load %arg5[%c1_47, %c0_48] : memref<4x2048xf32, #tpu.memory_space<vmem>>, vector<1x2048xf32>
    %116 = vector.broadcast %115 : vector<1x2048xf32> to vector<8x2048xf32>
    %117 = arith.addf %114, %116 : vector<8x2048xf32>
    %cst_49 = arith.constant 0.000000e+00 : f32
    %118 = vector.broadcast %cst_49 : f32 to vector<8x2048xf32>
    %119 = arith.maximumf %117, %118 : vector<8x2048xf32>
    %120 = arith.truncf %119 : vector<8x2048xf32> to vector<8x2048xbf16>
    %cst_50 = arith.constant dense<0.000000e+00> : vector<8x128xf32>
    %121 = tpu.matmul %120, %1, %cst_50 {dimension_numbers = #tpu.dot_dimension_numbers<[1], [0], [0], [1], [0, 0, 1, 1], [], []>} : vector<8x2048xbf16>, vector<2048x128xbf16>, vector<8x128xf32> -> vector<8x128xf32>
    %122 = vector.extract_strided_slice %121 {offsets = [0, 32], sizes = [8, 32], strides = [1, 1]} : vector<8x128xf32> to vector<8x32xf32>
    %c8 = arith.constant 8 : index
    %c0_51 = arith.constant 0 : index
    %123 = vector.load %arg7[%c8, %c0_51] : memref<40x32xf32, #tpu.memory_space<vmem>>, vector<1x32xf32>
    %124 = vector.broadcast %123 : vector<1x32xf32> to vector<8x32xf32>
    %125 = arith.addf %122, %124 : vector<8x32xf32>
    %126 = arith.addf %110, %125 : vector<8x32xf32>
    %cst_52 = arith.constant dense<0.000000e+00> : vector<8xf32>
    %127 = vector.multi_reduction <add>, %126, %cst_52 [1] : vector<8x32xf32> to vector<8xf32>
    %128 = vector.shape_cast %127 : vector<8xf32> to vector<8x1xf32>
    %cst_53 = arith.constant 3.200000e+01 : f32
    %129 = vector.broadcast %cst_53 : f32 to vector<8x1xf32>
    %130 = arith.divf %128, %129 : vector<8x1xf32>
    %131 = vector.broadcast %130 : vector<8x1xf32> to vector<8x32xf32>
    %132 = arith.subf %126, %131 : vector<8x32xf32>
    %133 = arith.mulf %132, %132 : vector<8x32xf32>
    %cst_54 = arith.constant dense<0.000000e+00> : vector<8xf32>
    %134 = vector.multi_reduction <add>, %133, %cst_54 [1] : vector<8x32xf32> to vector<8xf32>
    %135 = vector.shape_cast %134 : vector<8xf32> to vector<8x1xf32>
    %cst_55 = arith.constant 3.200000e+01 : f32
    %136 = vector.broadcast %cst_55 : f32 to vector<8x1xf32>
    %137 = arith.divf %135, %136 : vector<8x1xf32>
    %138 = vector.broadcast %130 : vector<8x1xf32> to vector<8x32xf32>
    %139 = arith.subf %126, %138 : vector<8x32xf32>
    %cst_56 = arith.constant 9.99999974E-6 : f32
    %140 = vector.broadcast %cst_56 : f32 to vector<8x1xf32>
    %141 = arith.addf %137, %140 : vector<8x1xf32>
    %142 = math.rsqrt %141 : vector<8x1xf32>
    %143 = vector.broadcast %142 : vector<8x1xf32> to vector<8x32xf32>
    %144 = arith.mulf %139, %143 : vector<8x32xf32>
    %c11 = arith.constant 11 : index
    %c0_57 = arith.constant 0 : index
    %145 = vector.load %arg7[%c11, %c0_57] : memref<40x32xf32, #tpu.memory_space<vmem>>, vector<1x32xf32>
    %146 = vector.broadcast %145 : vector<1x32xf32> to vector<8x32xf32>
    %147 = arith.mulf %144, %146 : vector<8x32xf32>
    %c12 = arith.constant 12 : index
    %c0_58 = arith.constant 0 : index
    %148 = vector.load %arg7[%c12, %c0_58] : memref<40x32xf32, #tpu.memory_space<vmem>>, vector<1x32xf32>
    %149 = vector.broadcast %148 : vector<1x32xf32> to vector<8x32xf32>
    %150 = arith.addf %147, %149 : vector<8x32xf32>
    %cst_59 = arith.constant dense<0.000000e+00> : vector<8xf32>
    %151 = vector.multi_reduction <add>, %150, %cst_59 [1] : vector<8x32xf32> to vector<8xf32>
    %152 = vector.shape_cast %151 : vector<8xf32> to vector<8x1xf32>
    %cst_60 = arith.constant 3.200000e+01 : f32
    %153 = vector.broadcast %cst_60 : f32 to vector<8x1xf32>
    %154 = arith.divf %152, %153 : vector<8x1xf32>
    %155 = vector.broadcast %154 : vector<8x1xf32> to vector<8x32xf32>
    %156 = arith.subf %150, %155 : vector<8x32xf32>
    %157 = arith.mulf %156, %156 : vector<8x32xf32>
    %cst_61 = arith.constant dense<0.000000e+00> : vector<8xf32>
    %158 = vector.multi_reduction <add>, %157, %cst_61 [1] : vector<8x32xf32> to vector<8xf32>
    %159 = vector.shape_cast %158 : vector<8xf32> to vector<8x1xf32>
    %cst_62 = arith.constant 3.200000e+01 : f32
    %160 = vector.broadcast %cst_62 : f32 to vector<8x1xf32>
    %161 = arith.divf %159, %160 : vector<8x1xf32>
    %162 = vector.broadcast %154 : vector<8x1xf32> to vector<8x32xf32>
    %163 = arith.subf %150, %162 : vector<8x32xf32>
    %cst_63 = arith.constant 9.99999974E-6 : f32
    %164 = vector.broadcast %cst_63 : f32 to vector<8x1xf32>
    %165 = arith.addf %161, %164 : vector<8x1xf32>
    %166 = math.rsqrt %165 : vector<8x1xf32>
    %167 = vector.broadcast %166 : vector<8x1xf32> to vector<8x32xf32>
    %168 = arith.mulf %163, %167 : vector<8x32xf32>
    %c13 = arith.constant 13 : index
    %c0_64 = arith.constant 0 : index
    %169 = vector.load %arg7[%c13, %c0_64] : memref<40x32xf32, #tpu.memory_space<vmem>>, vector<1x32xf32>
    %170 = vector.broadcast %169 : vector<1x32xf32> to vector<8x32xf32>
    %171 = arith.mulf %168, %170 : vector<8x32xf32>
    %c14 = arith.constant 14 : index
    %c0_65 = arith.constant 0 : index
    %172 = vector.load %arg7[%c14, %c0_65] : memref<40x32xf32, #tpu.memory_space<vmem>>, vector<1x32xf32>
    %173 = vector.broadcast %172 : vector<1x32xf32> to vector<8x32xf32>
    %174 = arith.addf %171, %173 : vector<8x32xf32>
    %175 = arith.truncf %174 : vector<8x32xf32> to vector<8x32xbf16>
    %cst_66 = arith.constant dense<0.000000e+00> : vector<8x192xf32>
    %176 = tpu.matmul %175, %0, %cst_66 {dimension_numbers = #tpu.dot_dimension_numbers<[1], [0], [0], [1], [0, 0, 1, 1], [], []>} : vector<8x32xbf16>, vector<32x192xbf16>, vector<8x192xf32> -> vector<8x192xf32>
    %177 = arith.truncf %8 : vector<8x32xf32> to vector<8x32xbf16>
    %cst_67 = arith.constant dense<0.000000e+00> : vector<8x192xf32>
    %178 = tpu.matmul %177, %0, %cst_67 {dimension_numbers = #tpu.dot_dimension_numbers<[1], [0], [0], [1], [0, 0, 1, 1], [], []>} : vector<8x32xbf16>, vector<32x192xbf16>, vector<8x192xf32> -> vector<8x192xf32>
    %179 = vector.extract_strided_slice %178 {offsets = [0, 64], sizes = [8, 32], strides = [1, 1]} : vector<8x192xf32> to vector<8x32xf32>
    %c15 = arith.constant 15 : index
    %c0_68 = arith.constant 0 : index
    %180 = vector.load %arg7[%c15, %c0_68] : memref<40x32xf32, #tpu.memory_space<vmem>>, vector<1x32xf32>
    %181 = vector.broadcast %180 : vector<1x32xf32> to vector<8x32xf32>
    %182 = arith.addf %179, %181 : vector<8x32xf32>
    %183 = arith.addf %8, %182 : vector<8x32xf32>
    %cst_69 = arith.constant dense<0.000000e+00> : vector<8xf32>
    %184 = vector.multi_reduction <add>, %183, %cst_69 [1] : vector<8x32xf32> to vector<8xf32>
    %185 = vector.shape_cast %184 : vector<8xf32> to vector<8x1xf32>
    %cst_70 = arith.constant 3.200000e+01 : f32
    %186 = vector.broadcast %cst_70 : f32 to vector<8x1xf32>
    %187 = arith.divf %185, %186 : vector<8x1xf32>
    %188 = vector.broadcast %187 : vector<8x1xf32> to vector<8x32xf32>
    %189 = arith.subf %183, %188 : vector<8x32xf32>
    %190 = arith.mulf %189, %189 : vector<8x32xf32>
    %cst_71 = arith.constant dense<0.000000e+00> : vector<8xf32>
    %191 = vector.multi_reduction <add>, %190, %cst_71 [1] : vector<8x32xf32> to vector<8xf32>
    %192 = vector.shape_cast %191 : vector<8xf32> to vector<8x1xf32>
    %cst_72 = arith.constant 3.200000e+01 : f32
    %193 = vector.broadcast %cst_72 : f32 to vector<8x1xf32>
    %194 = arith.divf %192, %193 : vector<8x1xf32>
    %195 = vector.broadcast %187 : vector<8x1xf32> to vector<8x32xf32>
    %196 = arith.subf %183, %195 : vector<8x32xf32>
    %cst_73 = arith.constant 9.99999974E-6 : f32
    %197 = vector.broadcast %cst_73 : f32 to vector<8x1xf32>
    %198 = arith.addf %194, %197 : vector<8x1xf32>
    %199 = math.rsqrt %198 : vector<8x1xf32>
    %200 = vector.broadcast %199 : vector<8x1xf32> to vector<8x32xf32>
    %201 = arith.mulf %196, %200 : vector<8x32xf32>
    %c18 = arith.constant 18 : index
    %c0_74 = arith.constant 0 : index
    %202 = vector.load %arg7[%c18, %c0_74] : memref<40x32xf32, #tpu.memory_space<vmem>>, vector<1x32xf32>
    %203 = vector.broadcast %202 : vector<1x32xf32> to vector<8x32xf32>
    %204 = arith.mulf %201, %203 : vector<8x32xf32>
    %c19 = arith.constant 19 : index
    %c0_75 = arith.constant 0 : index
    %205 = vector.load %arg7[%c19, %c0_75] : memref<40x32xf32, #tpu.memory_space<vmem>>, vector<1x32xf32>
    %206 = vector.broadcast %205 : vector<1x32xf32> to vector<8x32xf32>
    %207 = arith.addf %204, %206 : vector<8x32xf32>
    %208 = vector.extract_strided_slice %176 {offsets = [0, 128], sizes = [8, 32], strides = [1, 1]} : vector<8x192xf32> to vector<8x32xf32>
    %c16 = arith.constant 16 : index
    %c0_76 = arith.constant 0 : index
    %209 = vector.load %arg7[%c16, %c0_76] : memref<40x32xf32, #tpu.memory_space<vmem>>, vector<1x32xf32>
    %210 = vector.broadcast %209 : vector<1x32xf32> to vector<8x32xf32>
    %211 = arith.addf %208, %210 : vector<8x32xf32>
    %212 = arith.addf %207, %211 : vector<8x32xf32>
    %cst_77 = arith.constant dense<0.000000e+00> : vector<8xf32>
    %213 = vector.multi_reduction <add>, %212, %cst_77 [1] : vector<8x32xf32> to vector<8xf32>
    %214 = vector.shape_cast %213 : vector<8xf32> to vector<8x1xf32>
    %cst_78 = arith.constant 3.200000e+01 : f32
    %215 = vector.broadcast %cst_78 : f32 to vector<8x1xf32>
    %216 = arith.divf %214, %215 : vector<8x1xf32>
    %217 = vector.broadcast %216 : vector<8x1xf32> to vector<8x32xf32>
    %218 = arith.subf %212, %217 : vector<8x32xf32>
    %219 = arith.mulf %218, %218 : vector<8x32xf32>
    %cst_79 = arith.constant dense<0.000000e+00> : vector<8xf32>
    %220 = vector.multi_reduction <add>, %219, %cst_79 [1] : vector<8x32xf32> to vector<8xf32>
    %221 = vector.shape_cast %220 : vector<8xf32> to vector<8x1xf32>
    %cst_80 = arith.constant 3.200000e+01 : f32
    %222 = vector.broadcast %cst_80 : f32 to vector<8x1xf32>
    %223 = arith.divf %221, %222 : vector<8x1xf32>
    %224 = vector.broadcast %216 : vector<8x1xf32> to vector<8x32xf32>
    %225 = arith.subf %212, %224 : vector<8x32xf32>
    %cst_81 = arith.constant 9.99999974E-6 : f32
    %226 = vector.broadcast %cst_81 : f32 to vector<8x1xf32>
    %227 = arith.addf %223, %226 : vector<8x1xf32>
    %228 = math.rsqrt %227 : vector<8x1xf32>
    %229 = vector.broadcast %228 : vector<8x1xf32> to vector<8x32xf32>
    %230 = arith.mulf %225, %229 : vector<8x32xf32>
    %c20 = arith.constant 20 : index
    %c0_82 = arith.constant 0 : index
    %231 = vector.load %arg7[%c20, %c0_82] : memref<40x32xf32, #tpu.memory_space<vmem>>, vector<1x32xf32>
    %232 = vector.broadcast %231 : vector<1x32xf32> to vector<8x32xf32>
    %233 = arith.mulf %230, %232 : vector<8x32xf32>
    %c21 = arith.constant 21 : index
    %c0_83 = arith.constant 0 : index
    %234 = vector.load %arg7[%c21, %c0_83] : memref<40x32xf32, #tpu.memory_space<vmem>>, vector<1x32xf32>
    %235 = vector.broadcast %234 : vector<1x32xf32> to vector<8x32xf32>
    %236 = arith.addf %233, %235 : vector<8x32xf32>
    %237 = arith.truncf %236 : vector<8x32xf32> to vector<8x32xbf16>
    %c2_84 = arith.constant 2 : index
    %c0_85 = arith.constant 0 : index
    %c0_86 = arith.constant 0 : index
    %238 = vector.load %arg4[%c2_84, %c0_85, %c0_86] : memref<4x32x2048xbf16, #tpu.memory_space<vmem>>, vector<1x32x2048xbf16>
    %239 = vector.shape_cast %238 : vector<1x32x2048xbf16> to vector<32x2048xbf16>
    %cst_87 = arith.constant dense<0.000000e+00> : vector<8x2048xf32>
    %240 = tpu.matmul %237, %239, %cst_87 {dimension_numbers = #tpu.dot_dimension_numbers<[1], [0], [0], [1], [0, 0, 1, 1], [], []>} : vector<8x32xbf16>, vector<32x2048xbf16>, vector<8x2048xf32> -> vector<8x2048xf32>
    %c2_88 = arith.constant 2 : index
    %c0_89 = arith.constant 0 : index
    %241 = vector.load %arg5[%c2_88, %c0_89] : memref<4x2048xf32, #tpu.memory_space<vmem>>, vector<1x2048xf32>
    %242 = vector.broadcast %241 : vector<1x2048xf32> to vector<8x2048xf32>
    %243 = arith.addf %240, %242 : vector<8x2048xf32>
    %cst_90 = arith.constant 0.000000e+00 : f32
    %244 = vector.broadcast %cst_90 : f32 to vector<8x2048xf32>
    %245 = arith.maximumf %243, %244 : vector<8x2048xf32>
    %246 = arith.truncf %245 : vector<8x2048xf32> to vector<8x2048xbf16>
    %cst_91 = arith.constant dense<0.000000e+00> : vector<8x128xf32>
    %247 = tpu.matmul %246, %1, %cst_91 {dimension_numbers = #tpu.dot_dimension_numbers<[1], [0], [0], [1], [0, 0, 1, 1], [], []>} : vector<8x2048xbf16>, vector<2048x128xbf16>, vector<8x128xf32> -> vector<8x128xf32>
    %248 = vector.extract_strided_slice %247 {offsets = [0, 64], sizes = [8, 32], strides = [1, 1]} : vector<8x128xf32> to vector<8x32xf32>
    %c17 = arith.constant 17 : index
    %c0_92 = arith.constant 0 : index
    %249 = vector.load %arg7[%c17, %c0_92] : memref<40x32xf32, #tpu.memory_space<vmem>>, vector<1x32xf32>
    %250 = vector.broadcast %249 : vector<1x32xf32> to vector<8x32xf32>
    %251 = arith.addf %248, %250 : vector<8x32xf32>
    %252 = arith.addf %236, %251 : vector<8x32xf32>
    %cst_93 = arith.constant dense<0.000000e+00> : vector<8xf32>
    %253 = vector.multi_reduction <add>, %252, %cst_93 [1] : vector<8x32xf32> to vector<8xf32>
    %254 = vector.shape_cast %253 : vector<8xf32> to vector<8x1xf32>
    %cst_94 = arith.constant 3.200000e+01 : f32
    %255 = vector.broadcast %cst_94 : f32 to vector<8x1xf32>
    %256 = arith.divf %254, %255 : vector<8x1xf32>
    %257 = vector.broadcast %256 : vector<8x1xf32> to vector<8x32xf32>
    %258 = arith.subf %252, %257 : vector<8x32xf32>
    %259 = arith.mulf %258, %258 : vector<8x32xf32>
    %cst_95 = arith.constant dense<0.000000e+00> : vector<8xf32>
    %260 = vector.multi_reduction <add>, %259, %cst_95 [1] : vector<8x32xf32> to vector<8xf32>
    %261 = vector.shape_cast %260 : vector<8xf32> to vector<8x1xf32>
    %cst_96 = arith.constant 3.200000e+01 : f32
    %262 = vector.broadcast %cst_96 : f32 to vector<8x1xf32>
    %263 = arith.divf %261, %262 : vector<8x1xf32>
    %264 = vector.broadcast %256 : vector<8x1xf32> to vector<8x32xf32>
    %265 = arith.subf %252, %264 : vector<8x32xf32>
    %cst_97 = arith.constant 9.99999974E-6 : f32
    %266 = vector.broadcast %cst_97 : f32 to vector<8x1xf32>
    %267 = arith.addf %263, %266 : vector<8x1xf32>
    %268 = math.rsqrt %267 : vector<8x1xf32>
    %269 = vector.broadcast %268 : vector<8x1xf32> to vector<8x32xf32>
    %270 = arith.mulf %265, %269 : vector<8x32xf32>
    %c22 = arith.constant 22 : index
    %c0_98 = arith.constant 0 : index
    %271 = vector.load %arg7[%c22, %c0_98] : memref<40x32xf32, #tpu.memory_space<vmem>>, vector<1x32xf32>
    %272 = vector.broadcast %271 : vector<1x32xf32> to vector<8x32xf32>
    %273 = arith.mulf %270, %272 : vector<8x32xf32>
    %c23 = arith.constant 23 : index
    %c0_99 = arith.constant 0 : index
    %274 = vector.load %arg7[%c23, %c0_99] : memref<40x32xf32, #tpu.memory_space<vmem>>, vector<1x32xf32>
    %275 = vector.broadcast %274 : vector<1x32xf32> to vector<8x32xf32>
    %276 = arith.addf %273, %275 : vector<8x32xf32>
    %277 = arith.truncf %276 : vector<8x32xf32> to vector<8x32xbf16>
    %cst_100 = arith.constant dense<0.000000e+00> : vector<8x192xf32>
    %278 = tpu.matmul %277, %0, %cst_100 {dimension_numbers = #tpu.dot_dimension_numbers<[1], [0], [0], [1], [0, 0, 1, 1], [], []>} : vector<8x32xbf16>, vector<32x192xbf16>, vector<8x192xf32> -> vector<8x192xf32>
    %279 = vector.extract_strided_slice %278 {offsets = [0, 96], sizes = [8, 32], strides = [1, 1]} : vector<8x192xf32> to vector<8x32xf32>
    %c24 = arith.constant 24 : index
    %c0_101 = arith.constant 0 : index
    %280 = vector.load %arg7[%c24, %c0_101] : memref<40x32xf32, #tpu.memory_space<vmem>>, vector<1x32xf32>
    %281 = vector.broadcast %280 : vector<1x32xf32> to vector<8x32xf32>
    %282 = arith.addf %279, %281 : vector<8x32xf32>
    %283 = arith.addf %276, %282 : vector<8x32xf32>
    %cst_102 = arith.constant dense<0.000000e+00> : vector<8xf32>
    %284 = vector.multi_reduction <add>, %283, %cst_102 [1] : vector<8x32xf32> to vector<8xf32>
    %285 = vector.shape_cast %284 : vector<8xf32> to vector<8x1xf32>
    %cst_103 = arith.constant 3.200000e+01 : f32
    %286 = vector.broadcast %cst_103 : f32 to vector<8x1xf32>
    %287 = arith.divf %285, %286 : vector<8x1xf32>
    %288 = vector.broadcast %287 : vector<8x1xf32> to vector<8x32xf32>
    %289 = arith.subf %283, %288 : vector<8x32xf32>
    %290 = arith.mulf %289, %289 : vector<8x32xf32>
    %cst_104 = arith.constant dense<0.000000e+00> : vector<8xf32>
    %291 = vector.multi_reduction <add>, %290, %cst_104 [1] : vector<8x32xf32> to vector<8xf32>
    %292 = vector.shape_cast %291 : vector<8xf32> to vector<8x1xf32>
    %cst_105 = arith.constant 3.200000e+01 : f32
    %293 = vector.broadcast %cst_105 : f32 to vector<8x1xf32>
    %294 = arith.divf %292, %293 : vector<8x1xf32>
    %295 = vector.broadcast %287 : vector<8x1xf32> to vector<8x32xf32>
    %296 = arith.subf %283, %295 : vector<8x32xf32>
    %cst_106 = arith.constant 9.99999974E-6 : f32
    %297 = vector.broadcast %cst_106 : f32 to vector<8x1xf32>
    %298 = arith.addf %294, %297 : vector<8x1xf32>
    %299 = math.rsqrt %298 : vector<8x1xf32>
    %300 = vector.broadcast %299 : vector<8x1xf32> to vector<8x32xf32>
    %301 = arith.mulf %296, %300 : vector<8x32xf32>
    %c27 = arith.constant 27 : index
    %c0_107 = arith.constant 0 : index
    %302 = vector.load %arg7[%c27, %c0_107] : memref<40x32xf32, #tpu.memory_space<vmem>>, vector<1x32xf32>
    %303 = vector.broadcast %302 : vector<1x32xf32> to vector<8x32xf32>
    %304 = arith.mulf %301, %303 : vector<8x32xf32>
    %c28 = arith.constant 28 : index
    %c0_108 = arith.constant 0 : index
    %305 = vector.load %arg7[%c28, %c0_108] : memref<40x32xf32, #tpu.memory_space<vmem>>, vector<1x32xf32>
    %306 = vector.broadcast %305 : vector<1x32xf32> to vector<8x32xf32>
    %307 = arith.addf %304, %306 : vector<8x32xf32>
    %308 = vector.extract_strided_slice %176 {offsets = [0, 160], sizes = [8, 32], strides = [1, 1]} : vector<8x192xf32> to vector<8x32xf32>
    %c25 = arith.constant 25 : index
    %c0_109 = arith.constant 0 : index
    %309 = vector.load %arg7[%c25, %c0_109] : memref<40x32xf32, #tpu.memory_space<vmem>>, vector<1x32xf32>
    %310 = vector.broadcast %309 : vector<1x32xf32> to vector<8x32xf32>
    %311 = arith.addf %308, %310 : vector<8x32xf32>
    %312 = arith.addf %307, %311 : vector<8x32xf32>
    %cst_110 = arith.constant dense<0.000000e+00> : vector<8xf32>
    %313 = vector.multi_reduction <add>, %312, %cst_110 [1] : vector<8x32xf32> to vector<8xf32>
    %314 = vector.shape_cast %313 : vector<8xf32> to vector<8x1xf32>
    %cst_111 = arith.constant 3.200000e+01 : f32
    %315 = vector.broadcast %cst_111 : f32 to vector<8x1xf32>
    %316 = arith.divf %314, %315 : vector<8x1xf32>
    %317 = vector.broadcast %316 : vector<8x1xf32> to vector<8x32xf32>
    %318 = arith.subf %312, %317 : vector<8x32xf32>
    %319 = arith.mulf %318, %318 : vector<8x32xf32>
    %cst_112 = arith.constant dense<0.000000e+00> : vector<8xf32>
    %320 = vector.multi_reduction <add>, %319, %cst_112 [1] : vector<8x32xf32> to vector<8xf32>
    %321 = vector.shape_cast %320 : vector<8xf32> to vector<8x1xf32>
    %cst_113 = arith.constant 3.200000e+01 : f32
    %322 = vector.broadcast %cst_113 : f32 to vector<8x1xf32>
    %323 = arith.divf %321, %322 : vector<8x1xf32>
    %324 = vector.broadcast %316 : vector<8x1xf32> to vector<8x32xf32>
    %325 = arith.subf %312, %324 : vector<8x32xf32>
    %cst_114 = arith.constant 9.99999974E-6 : f32
    %326 = vector.broadcast %cst_114 : f32 to vector<8x1xf32>
    %327 = arith.addf %323, %326 : vector<8x1xf32>
    %328 = math.rsqrt %327 : vector<8x1xf32>
    %329 = vector.broadcast %328 : vector<8x1xf32> to vector<8x32xf32>
    %330 = arith.mulf %325, %329 : vector<8x32xf32>
    %c29 = arith.constant 29 : index
    %c0_115 = arith.constant 0 : index
    %331 = vector.load %arg7[%c29, %c0_115] : memref<40x32xf32, #tpu.memory_space<vmem>>, vector<1x32xf32>
    %332 = vector.broadcast %331 : vector<1x32xf32> to vector<8x32xf32>
    %333 = arith.mulf %330, %332 : vector<8x32xf32>
    %c30 = arith.constant 30 : index
    %c0_116 = arith.constant 0 : index
    %334 = vector.load %arg7[%c30, %c0_116] : memref<40x32xf32, #tpu.memory_space<vmem>>, vector<1x32xf32>
    %335 = vector.broadcast %334 : vector<1x32xf32> to vector<8x32xf32>
    %336 = arith.addf %333, %335 : vector<8x32xf32>
    %337 = arith.truncf %336 : vector<8x32xf32> to vector<8x32xbf16>
    %c3_117 = arith.constant 3 : index
    %c0_118 = arith.constant 0 : index
    %c0_119 = arith.constant 0 : index
    %338 = vector.load %arg4[%c3_117, %c0_118, %c0_119] : memref<4x32x2048xbf16, #tpu.memory_space<vmem>>, vector<1x32x2048xbf16>
    %339 = vector.shape_cast %338 : vector<1x32x2048xbf16> to vector<32x2048xbf16>
    %cst_120 = arith.constant dense<0.000000e+00> : vector<8x2048xf32>
    %340 = tpu.matmul %337, %339, %cst_120 {dimension_numbers = #tpu.dot_dimension_numbers<[1], [0], [0], [1], [0, 0, 1, 1], [], []>} : vector<8x32xbf16>, vector<32x2048xbf16>, vector<8x2048xf32> -> vector<8x2048xf32>
    %c3_121 = arith.constant 3 : index
    %c0_122 = arith.constant 0 : index
    %341 = vector.load %arg5[%c3_121, %c0_122] : memref<4x2048xf32, #tpu.memory_space<vmem>>, vector<1x2048xf32>
    %342 = vector.broadcast %341 : vector<1x2048xf32> to vector<8x2048xf32>
    %343 = arith.addf %340, %342 : vector<8x2048xf32>
    %cst_123 = arith.constant 0.000000e+00 : f32
    %344 = vector.broadcast %cst_123 : f32 to vector<8x2048xf32>
    %345 = arith.maximumf %343, %344 : vector<8x2048xf32>
    %346 = arith.truncf %345 : vector<8x2048xf32> to vector<8x2048xbf16>
    %cst_124 = arith.constant dense<0.000000e+00> : vector<8x128xf32>
    %347 = tpu.matmul %346, %1, %cst_124 {dimension_numbers = #tpu.dot_dimension_numbers<[1], [0], [0], [1], [0, 0, 1, 1], [], []>} : vector<8x2048xbf16>, vector<2048x128xbf16>, vector<8x128xf32> -> vector<8x128xf32>
    %348 = vector.extract_strided_slice %347 {offsets = [0, 96], sizes = [8, 32], strides = [1, 1]} : vector<8x128xf32> to vector<8x32xf32>
    %c26 = arith.constant 26 : index
    %c0_125 = arith.constant 0 : index
    %349 = vector.load %arg7[%c26, %c0_125] : memref<40x32xf32, #tpu.memory_space<vmem>>, vector<1x32xf32>
    %350 = vector.broadcast %349 : vector<1x32xf32> to vector<8x32xf32>
    %351 = arith.addf %348, %350 : vector<8x32xf32>
    %352 = arith.addf %336, %351 : vector<8x32xf32>
    %cst_126 = arith.constant dense<0.000000e+00> : vector<8xf32>
    %353 = vector.multi_reduction <add>, %352, %cst_126 [1] : vector<8x32xf32> to vector<8xf32>
    %354 = vector.shape_cast %353 : vector<8xf32> to vector<8x1xf32>
    %cst_127 = arith.constant 3.200000e+01 : f32
    %355 = vector.broadcast %cst_127 : f32 to vector<8x1xf32>
    %356 = arith.divf %354, %355 : vector<8x1xf32>
    %357 = vector.broadcast %356 : vector<8x1xf32> to vector<8x32xf32>
    %358 = arith.subf %352, %357 : vector<8x32xf32>
    %359 = arith.mulf %358, %358 : vector<8x32xf32>
    %cst_128 = arith.constant dense<0.000000e+00> : vector<8xf32>
    %360 = vector.multi_reduction <add>, %359, %cst_128 [1] : vector<8x32xf32> to vector<8xf32>
    %361 = vector.shape_cast %360 : vector<8xf32> to vector<8x1xf32>
    %cst_129 = arith.constant 3.200000e+01 : f32
    %362 = vector.broadcast %cst_129 : f32 to vector<8x1xf32>
    %363 = arith.divf %361, %362 : vector<8x1xf32>
    %364 = vector.broadcast %356 : vector<8x1xf32> to vector<8x32xf32>
    %365 = arith.subf %352, %364 : vector<8x32xf32>
    %cst_130 = arith.constant 9.99999974E-6 : f32
    %366 = vector.broadcast %cst_130 : f32 to vector<8x1xf32>
    %367 = arith.addf %363, %366 : vector<8x1xf32>
    %368 = math.rsqrt %367 : vector<8x1xf32>
    %369 = vector.broadcast %368 : vector<8x1xf32> to vector<8x32xf32>
    %370 = arith.mulf %365, %369 : vector<8x32xf32>
    %c31 = arith.constant 31 : index
    %c0_131 = arith.constant 0 : index
    %371 = vector.load %arg7[%c31, %c0_131] : memref<40x32xf32, #tpu.memory_space<vmem>>, vector<1x32xf32>
    %372 = vector.broadcast %371 : vector<1x32xf32> to vector<8x32xf32>
    %373 = arith.mulf %370, %372 : vector<8x32xf32>
    %c32 = arith.constant 32 : index
    %c0_132 = arith.constant 0 : index
    %374 = vector.load %arg7[%c32, %c0_132] : memref<40x32xf32, #tpu.memory_space<vmem>>, vector<1x32xf32>
    %375 = vector.broadcast %374 : vector<1x32xf32> to vector<8x32xf32>
    %376 = arith.addf %373, %375 : vector<8x32xf32>
    %cst_133 = arith.constant dense<0.000000e+00> : vector<8xf32>
    %377 = vector.multi_reduction <add>, %376, %cst_133 [1] : vector<8x32xf32> to vector<8xf32>
    %378 = vector.shape_cast %377 : vector<8xf32> to vector<8x1xf32>
    %cst_134 = arith.constant 3.200000e+01 : f32
    %379 = vector.broadcast %cst_134 : f32 to vector<8x1xf32>
    %380 = arith.divf %378, %379 : vector<8x1xf32>
    %381 = vector.broadcast %380 : vector<8x1xf32> to vector<8x32xf32>
    %382 = arith.subf %376, %381 : vector<8x32xf32>
    %383 = arith.mulf %382, %382 : vector<8x32xf32>
    %cst_135 = arith.constant dense<0.000000e+00> : vector<8xf32>
    %384 = vector.multi_reduction <add>, %383, %cst_135 [1] : vector<8x32xf32> to vector<8xf32>
    %385 = vector.shape_cast %384 : vector<8xf32> to vector<8x1xf32>
    %cst_136 = arith.constant 3.200000e+01 : f32
    %386 = vector.broadcast %cst_136 : f32 to vector<8x1xf32>
    %387 = arith.divf %385, %386 : vector<8x1xf32>
    %388 = vector.broadcast %380 : vector<8x1xf32> to vector<8x32xf32>
    %389 = arith.subf %376, %388 : vector<8x32xf32>
    %cst_137 = arith.constant 9.99999974E-6 : f32
    %390 = vector.broadcast %cst_137 : f32 to vector<8x1xf32>
    %391 = arith.addf %387, %390 : vector<8x1xf32>
    %392 = math.rsqrt %391 : vector<8x1xf32>
    %393 = vector.broadcast %392 : vector<8x1xf32> to vector<8x32xf32>
    %394 = arith.mulf %389, %393 : vector<8x32xf32>
    %c33 = arith.constant 33 : index
    %c0_138 = arith.constant 0 : index
    %395 = vector.load %arg7[%c33, %c0_138] : memref<40x32xf32, #tpu.memory_space<vmem>>, vector<1x32xf32>
    %396 = vector.broadcast %395 : vector<1x32xf32> to vector<8x32xf32>
    %397 = arith.mulf %394, %396 : vector<8x32xf32>
    %c34 = arith.constant 34 : index
    %c0_139 = arith.constant 0 : index
    %398 = vector.load %arg7[%c34, %c0_139] : memref<40x32xf32, #tpu.memory_space<vmem>>, vector<1x32xf32>
    %399 = vector.broadcast %398 : vector<1x32xf32> to vector<8x32xf32>
    %400 = arith.addf %397, %399 : vector<8x32xf32>
    %c35 = arith.constant 35 : index
    %c0_140 = arith.constant 0 : index
    %401 = vector.load %arg7[%c35, %c0_140] : memref<40x32xf32, #tpu.memory_space<vmem>>, vector<1x32xf32>
    %402 = vector.broadcast %401 : vector<1x32xf32> to vector<8x32xf32>
    %403 = arith.mulf %400, %402 : vector<8x32xf32>
    %cst_141 = arith.constant dense<0.000000e+00> : vector<8xf32>
    %404 = vector.multi_reduction <add>, %403, %cst_141 [1] : vector<8x32xf32> to vector<8xf32>
    %405 = vector.shape_cast %404 : vector<8xf32> to vector<8x1xf32>
    %c36 = arith.constant 36 : index
    %c0_142 = arith.constant 0 : index
    %406 = vector.load %arg7[%c36, %c0_142] : memref<40x32xf32, #tpu.memory_space<vmem>>, vector<1x32xf32>
    %407 = vector.extract_strided_slice %406 {offsets = [0, 0], sizes = [1, 1], strides = [1, 1]} : vector<1x32xf32> to vector<1x1xf32>
    %408 = vector.broadcast %407 : vector<1x1xf32> to vector<8x1xf32>
    %409 = arith.addf %405, %408 : vector<8x1xf32>
    %c0_143 = arith.constant 0 : index
    %c0_144 = arith.constant 0 : index
    %410 = vector.load %arg8[%c0_143, %c0_144] : memref<8x1xf32, #tpu.memory_space<vmem>>, vector<8x1xf32>
    tpu.vector_store %arg8[%c0_143, %c0_144], %409 {strides = array<i32>} : memref<8x1xf32, #tpu.memory_space<vmem>>, vector<8x1xf32>,
    return
  }
  func.func @transform_0(%arg0: i32) -> (i32, i32) {
    %c0_i32 = arith.constant 0 : i32
    %c0_i32_0 = arith.constant 0 : i32
    %c0_i32_1 = arith.constant 0 : i32
    return %c0_i32, %c0_i32_0 : i32, i32
  }
  func.func @transform_1(%arg0: i32) -> (i32, i32) {
    %c0_i32 = arith.constant 0 : i32
    %c0_i32_0 = arith.constant 0 : i32
    %c0_i32_1 = arith.constant 0 : i32
    return %c0_i32, %c0_i32_0 : i32, i32
  }
  func.func @transform_2(%arg0: i32) -> (i32, i32) {
    %c0_i32 = arith.constant 0 : i32
    %c0_i32_0 = arith.constant 0 : i32
    %c0_i32_1 = arith.constant 0 : i32
    return %c0_i32, %c0_i32_0 : i32, i32
  }
  func.func @transform_3(%arg0: i32) -> (i32, i32, i32) {
    %c0_i32 = arith.constant 0 : i32
    %c0_i32_0 = arith.constant 0 : i32
    %c0_i32_1 = arith.constant 0 : i32
    %c0_i32_2 = arith.constant 0 : i32
    return %c0_i32, %c0_i32_0, %c0_i32_1 : i32, i32, i32
  }
  func.func @transform_4(%arg0: i32) -> (i32, i32) {
    %c0_i32 = arith.constant 0 : i32
    %c0_i32_0 = arith.constant 0 : i32
    %c0_i32_1 = arith.constant 0 : i32
    return %c0_i32, %c0_i32_0 : i32, i32
  }
  func.func @transform_5(%arg0: i32) -> (i32, i32) {
    %c0_i32 = arith.constant 0 : i32
    %c0_i32_0 = arith.constant 0 : i32
    %c0_i32_1 = arith.constant 0 : i32
    return %c0_i32, %c0_i32_0 : i32, i32
  }
  func.func @transform_6(%arg0: i32) -> (i32, i32) {
    %c0_i32 = arith.constant 0 : i32
    %c0_i32_0 = arith.constant 0 : i32
    %c0_i32_1 = arith.constant 0 : i32
    return %c0_i32, %c0_i32_0 : i32, i32
  }
  func.func @transform_7(%arg0: i32) -> (i32, i32) {
    %c0_i32 = arith.constant 0 : i32
    %c0_i32_0 = arith.constant 0 : i32
    %c0_i32_1 = arith.constant 0 : i32
    return %c0_i32, %c0_i32_0 : i32, i32
  }
}

</mosaic_0001>

<llo_original>
// kernel: stock_transformer_forward.1
$region0: #{stock_transformer_forward.1}
  #allocation0 [shape = 'u32[]', space=smem, size = 0x4, offset = 0x4, fixed_abs, tag = 'smem constant byte address 0x4 - core index']
  #allocation1 [shape = 'u32[144,128]{1,0:T(1,128)}', space=vmem, size = 0x12000, scoped, tag = 'internal scratch']
  %s0 = inlined_call_operand.vmem [shape: f32[8,8], index: 0, kind: input, shape index: {}]
  %s1 = inlined_call_operand.vmem [shape: bf16[8,32], index: 1, kind: input, shape index: {}]
  %s2 = inlined_call_operand.hbm [shape: bf16[32,192], index: 2, kind: input, shape index: {}]
  %s3 = inlined_call_operand.hbm [shape: bf16[4,32,2048], index: 3, kind: input, shape index: {}]
  %s4 = inlined_call_operand.vmem [shape: f32[4,2048], index: 4, kind: input, shape index: {}]
  %s5 = inlined_call_operand.hbm [shape: bf16[2048,128], index: 5, kind: input, shape index: {}]
  %s6 = inlined_call_operand.vmem [shape: f32[40,32], index: 6, kind: input, shape index: {}]
  %s7 = inlined_call_operand.vmem [shape: f32[8,1], index: 7, kind: output, shape index: {}]
  %s8 = sld [smem:[#allocation0]]
  $region50: #{stock_transformer_forward.1} parent=0
    _
  %s10 = ssub.s32 1, %s8
  %s11 = scalar_select 0, %s10, %s8
  $region1: #{stock_transformer_forward.1} parent=0
    #allocation2 [shape = 'u8[16384]{0}', space=vmem, size = 0x4000, scoped, tag = 'input window, operand 2, single buffered']
    #allocation3 [shape = 's32[1]{0}', space=sflag, size = 0x4, scoped, tag = 'scoped memory for stock_transformer_forward.1']
    #allocation4 [shape = 'u8[524288]{0}', space=vmem, size = 0x80000, scoped, tag = 'input window, operand 3, single buffered']
    #allocation5 [shape = 's32[1]{0}', space=sflag, size = 0x4, scoped, tag = 'scoped memory for stock_transformer_forward.1']
    #allocation6 [shape = 'u8[524288]{0}', space=vmem, size = 0x80000, scoped, tag = 'input window, operand 5, single buffered']
    %12 = vsyncpa [#allocation3], 0
    %13 = vsyncpa [#allocation5], 0
    // Predicated region
    $region2: #{stock_transformer_forward.1} parent=1 // pred_check
      _
    $region3: #{stock_transformer_forward.1} parent=1 // pred_check_branch
      %15 = sbr.rel (0) target = $region5
    $region4: #{stock_transformer_forward.1} parent=1 // pred_region
      _
    $region5: #{stock_transformer_forward.1} parent=1 // pred_fallthru
      _
    // Predicated region
    $region6: #{stock_transformer_forward.1} parent=1 // pred_check
      _
    $region7: #{stock_transformer_forward.1} parent=1 // pred_check_branch
      %17 = sbr.rel (0) target = $region9
    $region8: #{stock_transformer_forward.1} parent=1 // pred_region
      _
    $region9: #{stock_transformer_forward.1} parent=1 // pred_fallthru
      _
    // Predicated region
    $region10: #{stock_transformer_forward.1} parent=1 // pred_check
      _
    $region11: #{stock_transformer_forward.1} parent=1 // pred_check_branch
      %19 = sbr.rel (0) target = $region13
    $region12: #{stock_transformer_forward.1} parent=1 // pred_region
      %s21 = ssub.s32 512, 512
      %22 = vsyncadd [#allocation3], %s21
      %s23 = sshll.u32 [#allocation2], 4
      %s24 = int_to_ptr.vmem [resolvable:$true] %s23
      %29 = dma.hbm_to_vmem [thread:$0]  %s2, 512, %s24, [#allocation3], 128, 128, 8
    $region13: #{stock_transformer_forward.1} parent=1 // pred_fallthru
      _
    // Predicated region
    $region14: #{stock_transformer_forward.1} parent=1 // pred_check
      _
    $region15: #{stock_transformer_forward.1} parent=1 // pred_check_branch
      %31 = sbr.rel (0) target = $region17
    $region16: #{stock_transformer_forward.1} parent=1 // pred_region
      %s33 = ssub.s32 16384, 16384
      %34 = vsyncadd [#allocation5], %s33
      %s35 = sshll.u32 [#allocation4], 4
      %s36 = int_to_ptr.vmem [resolvable:$true] %s35
      %41 = dma.hbm_to_vmem [thread:$0]  %s3, 16384, %s36, [#allocation5], 1024, 1024, 64
    $region17: #{stock_transformer_forward.1} parent=1 // pred_fallthru
      _
    // Predicated region
    $region18: #{stock_transformer_forward.1} parent=1 // pred_check
      _
    $region19: #{stock_transformer_forward.1} parent=1 // pred_check_branch
      %43 = sbr.rel (0) target = $region21
    $region20: #{stock_transformer_forward.1} parent=1 // pred_region
      _
    $region21: #{stock_transformer_forward.1} parent=1 // pred_fallthru
      _
    // Predicated region
    $region22: #{stock_transformer_forward.1} parent=1 // pred_check
      _
    $region23: #{stock_transformer_forward.1} parent=1 // pred_check_branch
      %45 = sbr.rel (0) target = $region25
    $region24: #{stock_transformer_forward.1} parent=1 // pred_region
      %s47 = ssub.s32 16384, 16384
      %48 = vsyncadd [#allocation5], %s47
      %s49 = sshll.u32 [#allocation6], 4
      %s50 = int_to_ptr.vmem [resolvable:$true] %s49
      %55 = dma.hbm_to_vmem [thread:$0]  %s5, 16384, %s50, [#allocation5], 64, 64, 4
    $region25: #{stock_transformer_forward.1} parent=1 // pred_fallthru
      _
    // Predicated region
    $region26: #{stock_transformer_forward.1} parent=1 // pred_check
      _
    $region27: #{stock_transformer_forward.1} parent=1 // pred_check_branch
      %57 = sbr.rel (0) target = $region29
    $region28: #{stock_transformer_forward.1} parent=1 // pred_region
      _
    $region29: #{stock_transformer_forward.1} parent=1 // pred_fallthru
      _
    // Predicated region
    $region30: #{stock_transformer_forward.1} parent=1 // pred_check
      _
    $region31: #{stock_transformer_forward.1} parent=1 // pred_check_branch
      %59 = sbr.rel (0) target = $region33
    $region32: #{stock_transformer_forward.1} parent=1 // pred_region
      %60 = dma.done [#allocation3], 512
    $region33: #{stock_transformer_forward.1} parent=1 // pred_fallthru
      _
    // Predicated region
    $region34: #{stock_transformer_forward.1} parent=1 // pred_check
      _
    $region35: #{stock_transformer_forward.1} parent=1 // pred_check_branch
      %62 = sbr.rel (0) target = $region37
    $region36: #{stock_transformer_forward.1} parent=1 // pred_region
      %63 = dma.done [#allocation5], 16384
    $region37: #{stock_transformer_forward.1} parent=1 // pred_fallthru
      _
    // Predicated region
    $region38: #{stock_transformer_forward.1} parent=1 // pred_check
      _
    $region39: #{stock_transformer_forward.1} parent=1 // pred_check_branch
      %65 = sbr.rel (0) target = $region41
    $region40: #{stock_transformer_forward.1} parent=1 // pred_region
      %66 = dma.done [#allocation5], 16384
    $region41: #{stock_transformer_forward.1} parent=1 // pred_fallthru
      _
    %v68 = vld [vmem:[#allocation2] sm:$0xff]
    %v69 = vld [vmem:[#allocation2 + $0x8] sm:$0xff]
    %v70 = vld [vmem:[#allocation2 + $0x10] sm:$0xff]
    %v71 = vld [vmem:[#allocation2 + $0x18] sm:$0xff]
    %v72 = vld [vmem:[#allocation6] sm:$0xf]
    %v73 = vld [vmem:[#allocation6 + $0x4] sm:$0xf]
    %v74 = vld [vmem:[#allocation6 + $0x8] sm:$0xf]
    %v75 = vld [vmem:[#allocation6 + $0xc] sm:$0xf]
    %v76 = vld [vmem:[#allocation6 + $0x10] sm:$0xf]
    %v77 = vld [vmem:[#allocation6 + $0x14] sm:$0xf]
    %v78 = vld [vmem:[#allocation6 + $0x18] sm:$0xf]
    %v79 = vld [vmem:[#allocation6 + $0x1c] sm:$0xf]
    %v80 = vld [vmem:[#allocation6 + $0x20] sm:$0xf]
    %v81 = vld [vmem:[#allocation6 + $0x24] sm:$0xf]
    %v82 = vld [vmem:[#allocation6 + $0x28] sm:$0xf]
    %v83 = vld [vmem:[#allocation6 + $0x2c] sm:$0xf]
    %v84 = vld [vmem:[#allocation6 + $0x30] sm:$0xf]
    %v85 = vld [vmem:[#allocation6 + $0x34] sm:$0xf]
    %v86 = vld [vmem:[#allocation6 + $0x38] sm:$0xf]
    %v87 = vld [vmem:[#allocation6 + $0x3c] sm:$0xf]
    %v88 = vld [vmem:[#allocation6 + $0x40] sm:$0xf]
    %v89 = vld [vmem:[#allocation6 + $0x44] sm:$0xf]
    %v90 = vld [vmem:[#allocation6 + $0x48] sm:$0xf]
    %v91 = vld [vmem:[#allocation6 + $0x4c] sm:$0xf]
    %v92 = vld [vmem:[#allocation6 + $0x50] sm:$0xf]
    %v93 = vld [vmem:[#allocation6 + $0x54] sm:$0xf]
    %v94 = vld [vmem:[#allocation6 + $0x58] sm:$0xf]
    %v95 = vld [vmem:[#allocation6 + $0x5c] sm:$0xf]
    %v96 = vld [vmem:[#allocation6 + $0x60] sm:$0xf]
    %v97 = vld [vmem:[#allocation6 + $0x64] sm:$0xf]
    %v98 = vld [vmem:[#allocation6 + $0x68] sm:$0xf]
    %v99 = vld [vmem:[#allocation6 + $0x6c] sm:$0xf]
    %v100 = vld [vmem:[#allocation6 + $0x70] sm:$0xf]
    %v101 = vld [vmem:[#allocation6 + $0x74] sm:$0xf]
    %v102 = vld [vmem:[#allocation6 + $0x78] sm:$0xf]
    %v103 = vld [vmem:[#allocation6 + $0x7c] sm:$0xf]
    %v104 = vld [vmem:[#allocation6 + $0x80] sm:$0xf]
    %v105 = vld [vmem:[#allocation6 + $0x84] sm:$0xf]
    %v106 = vld [vmem:[#allocation6 + $0x88] sm:$0xf]
    %v107 = vld [vmem:[#allocation6 + $0x8c] sm:$0xf]
    %v108 = vld [vmem:[#allocation6 + $0x90] sm:$0xf]
    %v109 = vld [vmem:[#allocation6 + $0x94] sm:$0xf]
    %v110 = vld [vmem:[#allocation6 + $0x98] sm:$0xf]
    %v111 = vld [vmem:[#allocation6 + $0x9c] sm:$0xf]
    %v112 = vld [vmem:[#allocation6 + $0xa0] sm:$0xf]
    %v113 = vld [vmem:[#allocation6 + $0xa4] sm:$0xf]
    %v114 = vld [vmem:[#allocation6 + $0xa8] sm:$0xf]
    %v115 = vld [vmem:[#allocation6 + $0xac] sm:$0xf]
    %v116 = vld [vmem:[#allocation6 + $0xb0] sm:$0xf]
    %v117 = vld [vmem:[#allocation6 + $0xb4] sm:$0xf]
    %v118 = vld [vmem:[#allocation6 + $0xb8] sm:$0xf]
    %v119 = vld [vmem:[#allocation6 + $0xbc] sm:$0xf]
    %v120 = vld [vmem:[#allocation6 + $0xc0] sm:$0xf]
    %v121 = vld [vmem:[#allocation6 + $0xc4] sm:$0xf]
    %v122 = vld [vmem:[#allocation6 + $0xc8] sm:$0xf]
    %v123 = vld [vmem:[#allocation6 + $0xcc] sm:$0xf]
    %v124 = vld [vmem:[#allocation6 + $0xd0] sm:$0xf]
    %v125 = vld [vmem:[#allocation6 + $0xd4] sm:$0xf]
    %v126 = vld [vmem:[#allocation6 + $0xd8] sm:$0xf]
    %v127 = vld [vmem:[#allocation6 + $0xdc] sm:$0xf]
    %v128 = vld [vmem:[#allocation6 + $0xe0] sm:$0xf]
    %v129 = vld [vmem:[#allocation6 + $0xe4] sm:$0xf]
    %v130 = vld [vmem:[#allocation6 + $0xe8] sm:$0xf]
    %v131 = vld [vmem:[#allocation6 + $0xec] sm:$0xf]
    %v132 = vld [vmem:[#allocation6 + $0xf0] sm:$0xf]
    %v133 = vld [vmem:[#allocation6 + $0xf4] sm:$0xf]
    %v134 = vld [vmem:[#allocation6 + $0xf8] sm:$0xf]
    %v135 = vld [vmem:[#allocation6 + $0xfc] sm:$0xf]
    %v136 = vld [vmem:[#allocation6 + $0x100] sm:$0xf]
    %v137 = vld [vmem:[#allocation6 + $0x104] sm:$0xf]
    %v138 = vld [vmem:[#allocation6 + $0x108] sm:$0xf]
    %v139 = vld [vmem:[#allocation6 + $0x10c] sm:$0xf]
    %v140 = vld [vmem:[#allocation6 + $0x110] sm:$0xf]
    %v141 = vld [vmem:[#allocation6 + $0x114] sm:$0xf]
    %v142 = vld [vmem:[#allocation6 + $0x118] sm:$0xf]
    %v143 = vld [vmem:[#allocation6 + $0x11c] sm:$0xf]
    %v144 = vld [vmem:[#allocation6 + $0x120] sm:$0xf]
    %v145 = vld [vmem:[#allocation6 + $0x124] sm:$0xf]
    %v146 = vld [vmem:[#allocation6 + $0x128] sm:$0xf]
    %v147 = vld [vmem:[#allocation6 + $0x12c] sm:$0xf]
    %v148 = vld [vmem:[#allocation6 + $0x130] sm:$0xf]
    %v149 = vld [vmem:[#allocation6 + $0x134] sm:$0xf]
    %v150 = vld [vmem:[#allocation6 + $0x138] sm:$0xf]
    %v151 = vld [vmem:[#allocation6 + $0x13c] sm:$0xf]
    %v152 = vld [vmem:[#allocation6 + $0x140] sm:$0xf]
    %v153 = vld [vmem:[#allocation6 + $0x144] sm:$0xf]
    %v154 = vld [vmem:[#allocation6 + $0x148] sm:$0xf]
    %v155 = vld [vmem:[#allocation6 + $0x14c] sm:$0xf]
    %v156 = vld [vmem:[#allocation6 + $0x150] sm:$0xf]
    %v157 = vld [vmem:[#allocation6 + $0x154] sm:$0xf]
    %v158 = vld [vmem:[#allocation6 + $0x158] sm:$0xf]
    %v159 = vld [vmem:[#allocation6 + $0x15c] sm:$0xf]
    %v160 = vld [vmem:[#allocation6 + $0x160] sm:$0xf]
    %v161 = vld [vmem:[#allocation6 + $0x164] sm:$0xf]
    %v162 = vld [vmem:[#allocation6 + $0x168] sm:$0xf]
    %v163 = vld [vmem:[#allocation6 + $0x16c] sm:$0xf]
    %v164 = vld [vmem:[#allocation6 + $0x170] sm:$0xf]
    %v165 = vld [vmem:[#allocation6 + $0x174] sm:$0xf]
    %v166 = vld [vmem:[#allocation6 + $0x178] sm:$0xf]
    %v167 = vld [vmem:[#allocation6 + $0x17c] sm:$0xf]
    %v168 = vld [vmem:[#allocation6 + $0x180] sm:$0xf]
    %v169 = vld [vmem:[#allocation6 + $0x184] sm:$0xf]
    %v170 = vld [vmem:[#allocation6 + $0x188] sm:$0xf]
    %v171 = vld [vmem:[#allocation6 + $0x18c] sm:$0xf]
    %v172 = vld [vmem:[#allocation6 + $0x190] sm:$0xf]
    %v173 = vld [vmem:[#allocation6 + $0x194] sm:$0xf]
    %v174 = vld [vmem:[#allocation6 + $0x198] sm:$0xf]
    %v175 = vld [vmem:[#allocation6 + $0x19c] sm:$0xf]
    %v176 = vld [vmem:[#allocation6 + $0x1a0] sm:$0xf]
    %v177 = vld [vmem:[#allocation6 + $0x1a4] sm:$0xf]
    %v178 = vld [vmem:[#allocation6 + $0x1a8] sm:$0xf]
    %v179 = vld [vmem:[#allocation6 + $0x1ac] sm:$0xf]
    %v180 = vld [vmem:[#allocation6 + $0x1b0] sm:$0xf]
    %v181 = vld [vmem:[#allocation6 + $0x1b4] sm:$0xf]
    %v182 = vld [vmem:[#allocation6 + $0x1b8] sm:$0xf]
    %v183 = vld [vmem:[#allocation6 + $0x1bc] sm:$0xf]
    %v184 = vld [vmem:[#allocation6 + $0x1c0] sm:$0xf]
    %v185 = vld [vmem:[#allocation6 + $0x1c4] sm:$0xf]
    %v186 = vld [vmem:[#allocation6 + $0x1c8] sm:$0xf]
    %v187 = vld [vmem:[#allocation6 + $0x1cc] sm:$0xf]
    %v188 = vld [vmem:[#allocation6 + $0x1d0] sm:$0xf]
    %v189 = vld [vmem:[#allocation6 + $0x1d4] sm:$0xf]
    %v190 = vld [vmem:[#allocation6 + $0x1d8] sm:$0xf]
    %v191 = vld [vmem:[#allocation6 + $0x1dc] sm:$0xf]
    %v192 = vld [vmem:[#allocation6 + $0x1e0] sm:$0xf]
    %v193 = vld [vmem:[#allocation6 + $0x1e4] sm:$0xf]
    %v194 = vld [vmem:[#allocation6 + $0x1e8] sm:$0xf]
    %v195 = vld [vmem:[#allocation6 + $0x1ec] sm:$0xf]
    %v196 = vld [vmem:[#allocation6 + $0x1f0] sm:$0xf]
    %v197 = vld [vmem:[#allocation6 + $0x1f4] sm:$0xf]
    %v198 = vld [vmem:[#allocation6 + $0x1f8] sm:$0xf]
    %v199 = vld [vmem:[#allocation6 + $0x1fc] sm:$0xf]
    %v200 = vld [vmem:[#allocation6 + $0x200] sm:$0xf]
    %v201 = vld [vmem:[#allocation6 + $0x204] sm:$0xf]
    %v202 = vld [vmem:[#allocation6 + $0x208] sm:$0xf]
    %v203 = vld [vmem:[#allocation6 + $0x20c] sm:$0xf]
    %v204 = vld [vmem:[#allocation6 + $0x210] sm:$0xf]
    %v205 = vld [vmem:[#allocation6 + $0x214] sm:$0xf]
    %v206 = vld [vmem:[#allocation6 + $0x218] sm:$0xf]
    %v207 = vld [vmem:[#allocation6 + $0x21c] sm:$0xf]
    %v208 = vld [vmem:[#allocation6 + $0x220] sm:$0xf]
    %v209 = vld [vmem:[#allocation6 + $0x224] sm:$0xf]
    %v210 = vld [vmem:[#allocation6 + $0x228] sm:$0xf]
    %v211 = vld [vmem:[#allocation6 + $0x22c] sm:$0xf]
    %v212 = vld [vmem:[#allocation6 + $0x230] sm:$0xf]
    %v213 = vld [vmem:[#allocation6 + $0x234] sm:$0xf]
    %v214 = vld [vmem:[#allocation6 + $0x238] sm:$0xf]
    %v215 = vld [vmem:[#allocation6 + $0x23c] sm:$0xf]
    %v216 = vld [vmem:[#allocation6 + $0x240] sm:$0xf]
    %v217 = vld [vmem:[#allocation6 + $0x244] sm:$0xf]
    %v218 = vld [vmem:[#allocation6 + $0x248] sm:$0xf]
    %v219 = vld [vmem:[#allocation6 + $0x24c] sm:$0xf]
    %v220 = vld [vmem:[#allocation6 + $0x250] sm:$0xf]
    %v221 = vld [vmem:[#allocation6 + $0x254] sm:$0xf]
    %v222 = vld [vmem:[#allocation6 + $0x258] sm:$0xf]
    %v223 = vld [vmem:[#allocation6 + $0x25c] sm:$0xf]
    %v224 = vld [vmem:[#allocation6 + $0x260] sm:$0xf]
    %v225 = vld [vmem:[#allocation6 + $0x264] sm:$0xf]
    %v226 = vld [vmem:[#allocation6 + $0x268] sm:$0xf]
    %v227 = vld [vmem:[#allocation6 + $0x26c] sm:$0xf]
    %v228 = vld [vmem:[#allocation6 + $0x270] sm:$0xf]
    %v229 = vld [vmem:[#allocation6 + $0x274] sm:$0xf]
    %v230 = vld [vmem:[#allocation6 + $0x278] sm:$0xf]
    %v231 = vld [vmem:[#allocation6 + $0x27c] sm:$0xf]
    %v232 = vld [vmem:[#allocation6 + $0x280] sm:$0xf]
    %v233 = vld [vmem:[#allocation6 + $0x284] sm:$0xf]
    %v234 = vld [vmem:[#allocation6 + $0x288] sm:$0xf]
    %v235 = vld [vmem:[#allocation6 + $0x28c] sm:$0xf]
    %v236 = vld [vmem:[#allocation6 + $0x290] sm:$0xf]
    %v237 = vld [vmem:[#allocation6 + $0x294] sm:$0xf]
    %v238 = vld [vmem:[#allocation6 + $0x298] sm:$0xf]
    %v239 = vld [vmem:[#allocation6 + $0x29c] sm:$0xf]
    %v240 = vld [vmem:[#allocation6 + $0x2a0] sm:$0xf]
    %v241 = vld [vmem:[#allocation6 + $0x2a4] sm:$0xf]
    %v242 = vld [vmem:[#allocation6 + $0x2a8] sm:$0xf]
    %v243 = vld [vmem:[#allocation6 + $0x2ac] sm:$0xf]
    %v244 = vld [vmem:[#allocation6 + $0x2b0] sm:$0xf]
    %v245 = vld [vmem:[#allocation6 + $0x2b4] sm:$0xf]
    %v246 = vld [vmem:[#allocation6 + $0x2b8] sm:$0xf]
    %v247 = vld [vmem:[#allocation6 + $0x2bc] sm:$0xf]
    %v248 = vld [vmem:[#allocation6 + $0x2c0] sm:$0xf]
    %v249 = vld [vmem:[#allocation6 + $0x2c4] sm:$0xf]
    %v250 = vld [vmem:[#allocation6 + $0x2c8] sm:$0xf]
    %v251 = vld [vmem:[#allocation6 + $0x2cc] sm:$0xf]
    %v252 = vld [vmem:[#allocation6 + $0x2d0] sm:$0xf]
    %v253 = vld [vmem:[#allocation6 + $0x2d4] sm:$0xf]
    %v254 = vld [vmem:[#allocation6 + $0x2d8] sm:$0xf]
    %v255 = vld [vmem:[#allocation6 + $0x2dc] sm:$0xf]
    %v256 = vld [vmem:[#allocation6 + $0x2e0] sm:$0xf]
    %v257 = vld [vmem:[#allocation6 + $0x2e4] sm:$0xf]
    %v258 = vld [vmem:[#allocation6 + $0x2e8] sm:$0xf]
    %v259 = vld [vmem:[#allocation6 + $0x2ec] sm:$0xf]
    %v260 = vld [vmem:[#allocation6 + $0x2f0] sm:$0xf]
    %v261 = vld [vmem:[#allocation6 + $0x2f4] sm:$0xf]
    %v262 = vld [vmem:[#allocation6 + $0x2f8] sm:$0xf]
    %v263 = vld [vmem:[#allocation6 + $0x2fc] sm:$0xf]
    %v264 = vld [vmem:[#allocation6 + $0x300] sm:$0xf]
    %v265 = vld [vmem:[#allocation6 + $0x304] sm:$0xf]
    %v266 = vld [vmem:[#allocation6 + $0x308] sm:$0xf]
    %v267 = vld [vmem:[#allocation6 + $0x30c] sm:$0xf]
    %v268 = vld [vmem:[#allocation6 + $0x310] sm:$0xf]
    %v269 = vld [vmem:[#allocation6 + $0x314] sm:$0xf]
    %v270 = vld [vmem:[#allocation6 + $0x318] sm:$0xf]
    %v271 = vld [vmem:[#allocation6 + $0x31c] sm:$0xf]
    %v272 = vld [vmem:[#allocation6 + $0x320] sm:$0xf]
    %v273 = vld [vmem:[#allocation6 + $0x324] sm:$0xf]
    %v274 = vld [vmem:[#allocation6 + $0x328] sm:$0xf]
    %v275 = vld [vmem:[#allocation6 + $0x32c] sm:$0xf]
    %v276 = vld [vmem:[#allocation6 + $0x330] sm:$0xf]
    %v277 = vld [vmem:[#allocation6 + $0x334] sm:$0xf]
    %v278 = vld [vmem:[#allocation6 + $0x338] sm:$0xf]
    %v279 = vld [vmem:[#allocation6 + $0x33c] sm:$0xf]
    %v280 = vld [vmem:[#allocation6 + $0x340] sm:$0xf]
    %v281 = vld [vmem:[#allocation6 + $0x344] sm:$0xf]
    %v282 = vld [vmem:[#allocation6 + $0x348] sm:$0xf]
    %v283 = vld [vmem:[#allocation6 + $0x34c] sm:$0xf]
    %v284 = vld [vmem:[#allocation6 + $0x350] sm:$0xf]
    %v285 = vld [vmem:[#allocation6 + $0x354] sm:$0xf]
    %v286 = vld [vmem:[#allocation6 + $0x358] sm:$0xf]
    %v287 = vld [vmem:[#allocation6 + $0x35c] sm:$0xf]
    %v288 = vld [vmem:[#allocation6 + $0x360] sm:$0xf]
    %v289 = vld [vmem:[#allocation6 + $0x364] sm:$0xf]
    %v290 = vld [vmem:[#allocation6 + $0x368] sm:$0xf]
    %v291 = vld [vmem:[#allocation6 + $0x36c] sm:$0xf]
    %v292 = vld [vmem:[#allocation6 + $0x370] sm:$0xf]
    %v293 = vld [vmem:[#allocation6 + $0x374] sm:$0xf]
    %v294 = vld [vmem:[#allocation6 + $0x378] sm:$0xf]
    %v295 = vld [vmem:[#allocation6 + $0x37c] sm:$0xf]
    %v296 = vld [vmem:[#allocation6 + $0x380] sm:$0xf]
    %v297 = vld [vmem:[#allocation6 + $0x384] sm:$0xf]
    %v298 = vld [vmem:[#allocation6 + $0x388] sm:$0xf]
    %v299 = vld [vmem:[#allocation6 + $0x38c] sm:$0xf]
    %v300 = vld [vmem:[#allocation6 + $0x390] sm:$0xf]
    %v301 = vld [vmem:[#allocation6 + $0x394] sm:$0xf]
    %v302 = vld [vmem:[#allocation6 + $0x398] sm:$0xf]
    %v303 = vld [vmem:[#allocation6 + $0x39c] sm:$0xf]
    %v304 = vld [vmem:[#allocation6 + $0x3a0] sm:$0xf]
    %v305 = vld [vmem:[#allocation6 + $0x3a4] sm:$0xf]
    %v306 = vld [vmem:[#allocation6 + $0x3a8] sm:$0xf]
    %v307 = vld [vmem:[#allocation6 + $0x3ac] sm:$0xf]
    %v308 = vld [vmem:[#allocation6 + $0x3b0] sm:$0xf]
    %v309 = vld [vmem:[#allocation6 + $0x3b4] sm:$0xf]
    %v310 = vld [vmem:[#allocation6 + $0x3b8] sm:$0xf]
    %v311 = vld [vmem:[#allocation6 + $0x3bc] sm:$0xf]
    %v312 = vld [vmem:[#allocation6 + $0x3c0] sm:$0xf]
    %v313 = vld [vmem:[#allocation6 + $0x3c4] sm:$0xf]
    %v314 = vld [vmem:[#allocation6 + $0x3c8] sm:$0xf]
    %v315 = vld [vmem:[#allocation6 + $0x3cc] sm:$0xf]
    %v316 = vld [vmem:[#allocation6 + $0x3d0] sm:$0xf]
    %v317 = vld [vmem:[#allocation6 + $0x3d4] sm:$0xf]
    %v318 = vld [vmem:[#allocation6 + $0x3d8] sm:$0xf]
    %v319 = vld [vmem:[#allocation6 + $0x3dc] sm:$0xf]
    %v320 = vld [vmem:[#allocation6 + $0x3e0] sm:$0xf]
    %v321 = vld [vmem:[#allocation6 + $0x3e4] sm:$0xf]
    %v322 = vld [vmem:[#allocation6 + $0x3e8] sm:$0xf]
    %v323 = vld [vmem:[#allocation6 + $0x3ec] sm:$0xf]
    %v324 = vld [vmem:[#allocation6 + $0x3f0] sm:$0xf]
    %v325 = vld [vmem:[#allocation6 + $0x3f4] sm:$0xf]
    %v326 = vld [vmem:[#allocation6 + $0x3f8] sm:$0xf]
    %v327 = vld [vmem:[#allocation6 + $0x3fc] sm:$0xf]
    %v328 = vld [vmem:[%s0] sm:$0xff]
    %v329 = vpack.c.bf16 %v328, %v328
    %v330 = vld [vmem:[%s1] sm:$0xf]
    %v331 = vld [vmem:[%s6] sm:$0x1]
    %v332 = vlaneseq
    %v333 = vshrl.u32 %v332, 7
    %v334 = vsub.s32 0, %v333
    %v335 = vrot.slane %v331, %v334
    %vm336 = vcmask 64512
    %v338 = vsel %vm336, %v329, 0
    %vm340 = vcmask 1043456
    %v342 = vsel %vm340, %v330, 0
    %344 = vmatprep.subr.bf16.mxu0 0
    %345 = vmatpush1.bf16.msra.mxu0 %v342
    %346 = vmatprep.subr.bf16.mxu0 0
    %347 = vmatpush1.bf16.msra.mxu0 0
    %348 = vmatprep.subr.bf16.mxu0 0
    %349 = vmatpush1.bf16.msra.mxu0 0
    %350 = vmatprep.subr.bf16.mxu0 0
    %351 = vmatpush1.bf16.msra.mxu0 0
    %352 = vmatprep.subr.bf16.mxu0 0
    %353 = vmatpush1.bf16.msra.mxu0 0
    %354 = vmatprep.subr.bf16.mxu0 0
    %355 = vmatpush1.bf16.msra.mxu0 0
    %356 = vmatprep.subr.bf16.mxu0 0
    %357 = vmatpush1.bf16.msra.mxu0 0
    %358 = vmatprep.subr.bf16.mxu0 0
    %359 = vmatpush1.bf16.msra.mxu0 0
    %360 = vmatprep.subr.bf16.mxu0 0
    %361 = vmatpush1.bf16.msra.mxu0 0
    %362 = vmatprep.subr.bf16.mxu0 0
    %363 = vmatpush1.bf16.msra.mxu0 0
    %364 = vmatprep.subr.bf16.mxu0 0
    %365 = vmatpush1.bf16.msra.mxu0 0
    %366 = vmatprep.subr.bf16.mxu0 0
    %367 = vmatpush1.bf16.msra.mxu0 0
    %368 = vmatprep.subr.bf16.mxu0 0
    %369 = vmatpush1.bf16.msra.mxu0 0
    %370 = vmatprep.subr.bf16.mxu0 0
    %371 = vmatpush1.bf16.msra.mxu0 0
    %372 = vmatprep.subr.bf16.mxu0 0
    %373 = vmatpush1.bf16.msra.mxu0 0
    %374 = vmatprep.subr.bf16.mxu0 0
    %375 = vmatpush1.bf16.msra.mxu0 0
    %376 = vmatprep.mubr.bf16.mxu0 0
    %377 = vmatmul.mubr.bf16.gmra.mrb[0].mxu0 %v338
    %v378 = vpop.f32.mrb[0].mxu0
    %v379 = vadd.f32 %v335, %v378
    %v380 = vpop.f32.mrb[0].mxu0
    %v381 = vpop.f32.mrb[0].mxu0
    %v382 = vpop.f32.mrb[0].mxu0
    %383 = vdwg.mxu0
    %v384 = vpack.c.bf16 %v379, %v379
    %v389 = vunpack.c.l.b16 %v68
    %v390 = vunpack.c.h.b16 %v68
    %v391 = vunpack.c.l.b16 %v69
    %v392 = vunpack.c.h.b16 %v69
    %v393 = vunpack.c.l.b16 %v70
    %v394 = vunpack.c.h.b16 %v70
    %v395 = vunpack.c.l.b16 %v71
    %v396 = vunpack.c.h.b16 %v71
    %v397 = vpack.c.b16 %v391, %v389
    %v398 = vpack.c.b16 %v392, %v390
    %v399 = vpack.c.b16 %v395, %v393
    %v400 = vpack.c.b16 %v396, %v394
    %vm405 = vcmask 261120
    %v407 = vsel %vm405, %v384, 0
    %409 = vmatprep.subr.bf16.mxu0 %v398
    %410 = vmatpush1.bf16.msra.mxu0 %v397
    %411 = vmatprep.subr.bf16.mxu0 %v400
    %412 = vmatpush1.bf16.msra.mxu0 %v399
    %413 = vmatprep.subr.bf16.mxu0 0
    %414 = vmatpush1.bf16.msra.mxu0 0
    %415 = vmatprep.subr.bf16.mxu0 0
    %416 = vmatpush1.bf16.msra.mxu0 0
    %417 = vmatprep.subr.bf16.mxu0 0
    %418 = vmatpush1.bf16.msra.mxu0 0
    %419 = vmatprep.subr.bf16.mxu0 0
    %420 = vmatpush1.bf16.msra.mxu0 0
    %421 = vmatprep.subr.bf16.mxu0 0
    %422 = vmatpush1.bf16.msra.mxu0 0
    %423 = vmatprep.subr.bf16.mxu0 0
    %424 = vmatpush1.bf16.msra.mxu0 0
    %425 = vmatprep.subr.bf16.mxu0 0
    %426 = vmatpush1.bf16.msra.mxu0 0
    %427 = vmatprep.subr.bf16.mxu0 0
    %428 = vmatpush1.bf16.msra.mxu0 0
    %429 = vmatprep.subr.bf16.mxu0 0
    %430 = vmatpush1.bf16.msra.mxu0 0
    %431 = vmatprep.subr.bf16.mxu0 0
    %432 = vmatpush1.bf16.msra.mxu0 0
    %433 = vmatprep.subr.bf16.mxu0 0
    %434 = vmatpush1.bf16.msra.mxu0 0
    %435 = vmatprep.subr.bf16.mxu0 0
    %436 = vmatpush1.bf16.msra.mxu0 0
    %437 = vmatprep.subr.bf16.mxu0 0
    %438 = vmatpush1.bf16.msra.mxu0 0
    %439 = vmatprep.subr.bf16.mxu0 0
    %440 = vmatpush1.bf16.msra.mxu0 0
    %441 = vmatprep.mubr.bf16.mxu0 0
    %442 = vmatmul.mubr.bf16.gmra.mrb[0].mxu0 %v407
    %v443 = vpop.f32.mrb[0].mxu0
    %v444 = vadd.f32 0.0, %v443
    %v445 = vpop.f32.mrb[0].mxu0
    %v446 = vpop.f32.mrb[0].mxu0
    %v447 = vpop.f32.mrb[0].mxu0
    %448 = vdwg.mxu0
    %v449 = vld [vmem:[%s6 + $0x1] sm:$0x1]
    %v450 = vlaneseq
    %v451 = vshrl.u32 %v450, 7
    %v452 = vsub.s32 0, %v451
    %v453 = vrot.slane %v449, %v452
    %v454 = vadd.f32 %v444, %v453
    %v455 = vadd.f32 %v379, %v454
    %v456 = vsel %vm405, %v455, 0.0
    %457 = vadd.xlane.f32.xlu0 %v456
    %v458 = vpop.xlane.xlu0 %457
    %v459 = vrcp.pop 32.0
    %v460 = vmul.f32 %v458, %v459
    %v461 = vsub.f32 %v455, %v460
    %v462 = vmul.f32 %v461, %v461
    %v463 = vsel %vm405, %v462, 0.0
    %464 = vadd.xlane.f32.xlu0 %v463
    %v465 = vpop.xlane.xlu0 %464
    %v466 = vmul.f32 %v465, %v459
    %v467 = vadd.f32 %v466, 1e-05
    %v468 = vrsqrt.pop %v467
    %v469 = vmul.f32 %v461, %v468
    %v470 = vld [vmem:[%s6 + $0x3] sm:$0x1]
    %v471 = vlaneseq
    %v472 = vshrl.u32 %v471, 7
    %v473 = vsub.s32 0, %v472
    %v474 = vrot.slane %v470, %v473
    %v475 = vmul.f32 %v469, %v474
    %v476 = vld [vmem:[%s6 + $0x4] sm:$0x1]
    %v477 = vlaneseq
    %v478 = vshrl.u32 %v477, 7
    %v479 = vsub.s32 0, %v478
    %v480 = vrot.slane %v476, %v479
    %v481 = vadd.f32 %v475, %v480
    %v482 = vpack.c.bf16 %v481, %v481
    %v483 = vld [vmem:[#allocation4] sm:$0xff]
    %v484 = vld [vmem:[#allocation4 + $0x8] sm:$0xff]
    %v485 = vld [vmem:[#allocation4 + $0x10] sm:$0xff]
    %v486 = vld [vmem:[#allocation4 + $0x18] sm:$0xff]
    %v487 = vld [vmem:[#allocation4 + $0x20] sm:$0xff]
    %v488 = vld [vmem:[#allocation4 + $0x28] sm:$0xff]
    %v489 = vld [vmem:[#allocation4 + $0x30] sm:$0xff]
    %v490 = vld [vmem:[#allocation4 + $0x38] sm:$0xff]
    %v491 = vld [vmem:[#allocation4 + $0x40] sm:$0xff]
    %v492 = vld [vmem:[#allocation4 + $0x48] sm:$0xff]
    %v493 = vld [vmem:[#allocation4 + $0x50] sm:$0xff]
    %v494 = vld [vmem:[#allocation4 + $0x58] sm:$0xff]
    %v495 = vld [vmem:[#allocation4 + $0x60] sm:$0xff]
    %v496 = vld [vmem:[#allocation4 + $0x68] sm:$0xff]
    %v497 = vld [vmem:[#allocation4 + $0x70] sm:$0xff]
    %v498 = vld [vmem:[#allocation4 + $0x78] sm:$0xff]
    %v499 = vld [vmem:[#allocation4 + $0x80] sm:$0xff]
    %v500 = vld [vmem:[#allocation4 + $0x88] sm:$0xff]
    %v501 = vld [vmem:[#allocation4 + $0x90] sm:$0xff]
    %v502 = vld [vmem:[#allocation4 + $0x98] sm:$0xff]
    %v503 = vld [vmem:[#allocation4 + $0xa0] sm:$0xff]
    %v504 = vld [vmem:[#allocation4 + $0xa8] sm:$0xff]
    %v505 = vld [vmem:[#allocation4 + $0xb0] sm:$0xff]
    %v506 = vld [vmem:[#allocation4 + $0xb8] sm:$0xff]
    %v507 = vld [vmem:[#allocation4 + $0xc0] sm:$0xff]
    %v508 = vld [vmem:[#allocation4 + $0xc8] sm:$0xff]
    %v509 = vld [vmem:[#allocation4 + $0xd0] sm:$0xff]
    %v510 = vld [vmem:[#allocation4 + $0xd8] sm:$0xff]
    %v511 = vld [vmem:[#allocation4 + $0xe0] sm:$0xff]
    %v512 = vld [vmem:[#allocation4 + $0xe8] sm:$0xff]
    %v513 = vld [vmem:[#allocation4 + $0xf0] sm:$0xff]
    %v514 = vld [vmem:[#allocation4 + $0xf8] sm:$0xff]
    %v515 = vld [vmem:[%s4] ss:$4 sm:$0xff]
    %s516 = scalar_lea.vmem %s4, 32
    %v517 = vld [vmem:[%s516] ss:$4 sm:$0xff]
    %v520 = vlaneseq
    %v521 = vshrl.u32 %v520, 7
    %v522 = vsub.s32 0, %v521
    %v523 = vrot.slane %v515, %v522
    %v524 = vlaneseq
    %v525 = vshrl.u32 %v524, 7
    %v526 = vsub.s32 1, %v525
    %v527 = vrot.slane %v515, %v526
    %v528 = vlaneseq
    %v529 = vshrl.u32 %v528, 7
    %v530 = vsub.s32 2, %v529
    %v531 = vrot.slane %v515, %v530
    %v532 = vlaneseq
    %v533 = vshrl.u32 %v532, 7
    %v534 = vsub.s32 3, %v533
    %v535 = vrot.slane %v515, %v534
    %v536 = vlaneseq
    %v537 = vshrl.u32 %v536, 7
    %v538 = vsub.s32 4, %v537
    %v539 = vrot.slane %v515, %v538
    %v540 = vlaneseq
    %v541 = vshrl.u32 %v540, 7
    %v542 = vsub.s32 5, %v541
    %v543 = vrot.slane %v515, %v542
    %v544 = vlaneseq
    %v545 = vshrl.u32 %v544, 7
    %v546 = vsub.s32 6, %v545
    %v547 = vrot.slane %v515, %v546
    %v548 = vlaneseq
    %v549 = vshrl.u32 %v548, 7
    %v550 = vsub.s32 7, %v549
    %v551 = vrot.slane %v515, %v550
    %v552 = vlaneseq
    %v553 = vshrl.u32 %v552, 7
    %v554 = vsub.s32 0, %v553
    %v555 = vrot.slane %v517, %v554
    %v556 = vlaneseq
    %v557 = vshrl.u32 %v556, 7
    %v558 = vsub.s32 1, %v557
    %v559 = vrot.slane %v517, %v558
    %v560 = vlaneseq
    %v561 = vshrl.u32 %v560, 7
    %v562 = vsub.s32 2, %v561
    %v563 = vrot.slane %v517, %v562
    %v564 = vlaneseq
    %v565 = vshrl.u32 %v564, 7
    %v566 = vsub.s32 3, %v565
    %v567 = vrot.slane %v517, %v566
    %v568 = vlaneseq
    %v569 = vshrl.u32 %v568, 7
    %v570 = vsub.s32 4, %v569
    %v571 = vrot.slane %v517, %v570
    %v572 = vlaneseq
    %v573 = vshrl.u32 %v572, 7
    %v574 = vsub.s32 5, %v573
    %v575 = vrot.slane %v517, %v574
    %v576 = vlaneseq
    %v577 = vshrl.u32 %v576, 7
    %v578 = vsub.s32 6, %v577
    %v579 = vrot.slane %v517, %v578
    %v580 = vlaneseq
    %v581 = vshrl.u32 %v580, 7
    %v582 = vsub.s32 7, %v581
    %v583 = vrot.slane %v517, %v582
    %v632 = vunpack.c.l.b16 %v483
    %v633 = vunpack.c.h.b16 %v483
    %v634 = vunpack.c.l.b16 %v484
    %v635 = vunpack.c.h.b16 %v484
    %v636 = vunpack.c.l.b16 %v485
    %v637 = vunpack.c.h.b16 %v485
    %v638 = vunpack.c.l.b16 %v486
    %v639 = vunpack.c.h.b16 %v486
    %v640 = vunpack.c.l.b16 %v487
    %v641 = vunpack.c.h.b16 %v487
    %v642 = vunpack.c.l.b16 %v488
    %v643 = vunpack.c.h.b16 %v488
    %v644 = vunpack.c.l.b16 %v489
    %v645 = vunpack.c.h.b16 %v489
    %v646 = vunpack.c.l.b16 %v490
    %v647 = vunpack.c.h.b16 %v490
    %v648 = vunpack.c.l.b16 %v491
    %v649 = vunpack.c.h.b16 %v491
    %v650 = vunpack.c.l.b16 %v492
    %v651 = vunpack.c.h.b16 %v492
    %v652 = vunpack.c.l.b16 %v493
    %v653 = vunpack.c.h.b16 %v493
    %v654 = vunpack.c.l.b16 %v494
    %v655 = vunpack.c.h.b16 %v494
    %v656 = vunpack.c.l.b16 %v495
    %v657 = vunpack.c.h.b16 %v495
    %v658 = vunpack.c.l.b16 %v496
    %v659 = vunpack.c.h.b16 %v496
    %v660 = vunpack.c.l.b16 %v497
    %v661 = vunpack.c.h.b16 %v497
    %v662 = vunpack.c.l.b16 %v498
    %v663 = vunpack.c.h.b16 %v498
    %v664 = vunpack.c.l.b16 %v499
    %v665 = vunpack.c.h.b16 %v499
    %v666 = vunpack.c.l.b16 %v500
    %v667 = vunpack.c.h.b16 %v500
    %v668 = vunpack.c.l.b16 %v501
    %v669 = vunpack.c.h.b16 %v501
    %v670 = vunpack.c.l.b16 %v502
    %v671 = vunpack.c.h.b16 %v502
    %v672 = vunpack.c.l.b16 %v503
    %v673 = vunpack.c.h.b16 %v503
    %v674 = vunpack.c.l.b16 %v504
    %v675 = vunpack.c.h.b16 %v504
    %v676 = vunpack.c.l.b16 %v505
    %v677 = vunpack.c.h.b16 %v505
    %v678 = vunpack.c.l.b16 %v506
    %v679 = vunpack.c.h.b16 %v506
    %v680 = vunpack.c.l.b16 %v507
    %v681 = vunpack.c.h.b16 %v507
    %v682 = vunpack.c.l.b16 %v508
    %v683 = vunpack.c.h.b16 %v508
    %v684 = vunpack.c.l.b16 %v509
    %v685 = vunpack.c.h.b16 %v509
    %v686 = vunpack.c.l.b16 %v510
    %v687 = vunpack.c.h.b16 %v510
    %v688 = vunpack.c.l.b16 %v511
    %v689 = vunpack.c.h.b16 %v511
    %v690 = vunpack.c.l.b16 %v512
    %v691 = vunpack.c.h.b16 %v512
    %v692 = vunpack.c.l.b16 %v513
    %v693 = vunpack.c.h.b16 %v513
    %v694 = vunpack.c.l.b16 %v514
    %v695 = vunpack.c.h.b16 %v514
    %v696 = vpack.c.b16 %v648, %v632
    %v697 = vpack.c.b16 %v649, %v633
    %v698 = vpack.c.b16 %v650, %v634
    %v699 = vpack.c.b16 %v651, %v635
    %v700 = vpack.c.b16 %v652, %v636
    %v701 = vpack.c.b16 %v653, %v637
    %v702 = vpack.c.b16 %v654, %v638
    %v703 = vpack.c.b16 %v655, %v639
    %v704 = vpack.c.b16 %v656, %v640
    %v705 = vpack.c.b16 %v657, %v641
    %v706 = vpack.c.b16 %v658, %v642
    %v707 = vpack.c.b16 %v659, %v643
    %v708 = vpack.c.b16 %v660, %v644
    %v709 = vpack.c.b16 %v661, %v645
    %v710 = vpack.c.b16 %v662, %v646
    %v711 = vpack.c.b16 %v663, %v647
    %v712 = vpack.c.b16 %v680, %v664
    %v713 = vpack.c.b16 %v681, %v665
    %v714 = vpack.c.b16 %v682, %v666
    %v715 = vpack.c.b16 %v683, %v667
    %v716 = vpack.c.b16 %v684, %v668
    %v717 = vpack.c.b16 %v685, %v669
    %v718 = vpack.c.b16 %v686, %v670
    %v719 = vpack.c.b16 %v687, %v671
    %v720 = vpack.c.b16 %v688, %v672
    %v721 = vpack.c.b16 %v689, %v673
    %v722 = vpack.c.b16 %v690, %v674
    %v723 = vpack.c.b16 %v691, %v675
    %v724 = vpack.c.b16 %v692, %v676
    %v725 = vpack.c.b16 %v693, %v677
    %v726 = vpack.c.b16 %v694, %v678
    %v727 = vpack.c.b16 %v695, %v679
    %v761 = vsel %vm405, %v482, 0
    %763 = vmatprep.subr.bf16.mxu0 %v697
    %764 = vmatpush1.bf16.msra.mxu0 %v696
    %765 = vmatprep.subr.bf16.mxu0 %v713
    %766 = vmatpush1.bf16.msra.mxu0 %v712
    %767 = vmatprep.subr.bf16.mxu0 0
    %768 = vmatpush1.bf16.msra.mxu0 0
    %769 = vmatprep.subr.bf16.mxu0 0
    %770 = vmatpush1.bf16.msra.mxu0 0
    %771 = vmatprep.subr.bf16.mxu0 0
    %772 = vmatpush1.bf16.msra.mxu0 0
    %773 = vmatprep.subr.bf16.mxu0 0
    %774 = vmatpush1.bf16.msra.mxu0 0
    %775 = vmatprep.subr.bf16.mxu0 0
    %776 = vmatpush1.bf16.msra.mxu0 0
    %777 = vmatprep.subr.bf16.mxu0 0
    %778 = vmatpush1.bf16.msra.mxu0 0
    %779 = vmatprep.subr.bf16.mxu0 0
    %780 = vmatpush1.bf16.msra.mxu0 0
    %781 = vmatprep.subr.bf16.mxu0 0
    %782 = vmatpush1.bf16.msra.mxu0 0
    %783 = vmatprep.subr.bf16.mxu0 0
    %784 = vmatpush1.bf16.msra.mxu0 0
    %785 = vmatprep.subr.bf16.mxu0 0
    %786 = vmatpush1.bf16.msra.mxu0 0
    %787 = vmatprep.subr.bf16.mxu0 0
    %788 = vmatpush1.bf16.msra.mxu0 0
    %789 = vmatprep.subr.bf16.mxu0 0
    %790 = vmatpush1.bf16.msra.mxu0 0
    %791 = vmatprep.subr.bf16.mxu0 0
    %792 = vmatpush1.bf16.msra.mxu0 0
    %793 = vmatprep.subr.bf16.mxu0 0
    %794 = vmatpush1.bf16.msra.mxu0 0
    %795 = vmatprep.mubr.bf16.mxu0 0
    %796 = vmatmul.mubr.bf16.gmra.mrb[0].mxu0 %v761
    %v797 = vpop.f32.mrb[0].mxu0
    %v798 = vadd.f32 %v523, %v797
    %v799 = vpop.f32.mrb[0].mxu0
    %v800 = vadd.f32 %v527, %v799
    %v801 = vpop.f32.mrb[0].mxu0
    %v802 = vpop.f32.mrb[0].mxu0
    %803 = vdwg.mxu0
    %804 = vmatprep.subr.bf16.mxu0 %v699
    %805 = vmatpush1.bf16.msra.mxu0 %v698
    %806 = vmatprep.subr.bf16.mxu0 %v715
    %807 = vmatpush1.bf16.msra.mxu0 %v714
    %808 = vmatprep.subr.bf16.mxu0 0
    %809 = vmatpush1.bf16.msra.mxu0 0
    %810 = vmatprep.subr.bf16.mxu0 0
    %811 = vmatpush1.bf16.msra.mxu0 0
    %812 = vmatprep.subr.bf16.mxu0 0
    %813 = vmatpush1.bf16.msra.mxu0 0
    %814 = vmatprep.subr.bf16.mxu0 0
    %815 = vmatpush1.bf16.msra.mxu0 0
    %816 = vmatprep.subr.bf16.mxu0 0
    %817 = vmatpush1.bf16.msra.mxu0 0
    %818 = vmatprep.subr.bf16.mxu0 0
    %819 = vmatpush1.bf16.msra.mxu0 0
    %820 = vmatprep.subr.bf16.mxu0 0
    %821 = vmatpush1.bf16.msra.mxu0 0
    %822 = vmatprep.subr.bf16.mxu0 0
    %823 = vmatpush1.bf16.msra.mxu0 0
    %824 = vmatprep.subr.bf16.mxu0 0
    %825 = vmatpush1.bf16.msra.mxu0 0
    %826 = vmatprep.subr.bf16.mxu0 0
    %827 = vmatpush1.bf16.msra.mxu0 0
    %828 = vmatprep.subr.bf16.mxu0 0
    %829 = vmatpush1.bf16.msra.mxu0 0
    %830 = vmatprep.subr.bf16.mxu0 0
    %831 = vmatpush1.bf16.msra.mxu0 0
    %832 = vmatprep.subr.bf16.mxu0 0
    %833 = vmatpush1.bf16.msra.mxu0 0
    %834 = vmatprep.subr.bf16.mxu0 0
    %835 = vmatpush1.bf16.msra.mxu0 0
    %836 = vmatprep.mubr.bf16.mxu0 0
    %837 = vmatmul.mubr.bf16.gmra.mrb[0].mxu0 %v761
    %v838 = vpop.f32.mrb[0].mxu0
    %v839 = vadd.f32 %v531, %v838
    %v840 = vpop.f32.mrb[0].mxu0
    %v841 = vadd.f32 %v535, %v840
    %v842 = vpop.f32.mrb[0].mxu0
    %v843 = vpop.f32.mrb[0].mxu0
    %844 = vdwg.mxu0
    %845 = vmatprep.subr.bf16.mxu0 %v701
    %846 = vmatpush1.bf16.msra.mxu0 %v700
    %847 = vmatprep.subr.bf16.mxu0 %v717
    %848 = vmatpush1.bf16.msra.mxu0 %v716
    %849 = vmatprep.subr.bf16.mxu0 0
    %850 = vmatpush1.bf16.msra.mxu0 0
    %851 = vmatprep.subr.bf16.mxu0 0
    %852 = vmatpush1.bf16.msra.mxu0 0
    %853 = vmatprep.subr.bf16.mxu0 0
    %854 = vmatpush1.bf16.msra.mxu0 0
    %855 = vmatprep.subr.bf16.mxu0 0
    %856 = vmatpush1.bf16.msra.mxu0 0
    %857 = vmatprep.subr.bf16.mxu0 0
    %858 = vmatpush1.bf16.msra.mxu0 0
    %859 = vmatprep.subr.bf16.mxu0 0
    %860 = vmatpush1.bf16.msra.mxu0 0
    %861 = vmatprep.subr.bf16.mxu0 0
    %862 = vmatpush1.bf16.msra.mxu0 0
    %863 = vmatprep.subr.bf16.mxu0 0
    %864 = vmatpush1.bf16.msra.mxu0 0
    %865 = vmatprep.subr.bf16.mxu0 0
    %866 = vmatpush1.bf16.msra.mxu0 0
    %867 = vmatprep.subr.bf16.mxu0 0
    %868 = vmatpush1.bf16.msra.mxu0 0
    %869 = vmatprep.subr.bf16.mxu0 0
    %870 = vmatpush1.bf16.msra.mxu0 0
    %871 = vmatprep.subr.bf16.mxu0 0
    %872 = vmatpush1.bf16.msra.mxu0 0
    %873 = vmatprep.subr.bf16.mxu0 0
    %874 = vmatpush1.bf16.msra.mxu0 0
    %875 = vmatprep.subr.bf16.mxu0 0
    %876 = vmatpush1.bf16.msra.mxu0 0
    %877 = vmatprep.mubr.bf16.mxu0 0
    %878 = vmatmul.mubr.bf16.gmra.mrb[0].mxu0 %v761
    %v879 = vpop.f32.mrb[0].mxu0
    %v880 = vadd.f32 %v539, %v879
    %v881 = vpop.f32.mrb[0].mxu0
    %v882 = vadd.f32 %v543, %v881
    %v883 = vpop.f32.mrb[0].mxu0
    %v884 = vpop.f32.mrb[0].mxu0
    %885 = vdwg.mxu0
    %886 = vmatprep.subr.bf16.mxu0 %v703
    %887 = vmatpush1.bf16.msra.mxu0 %v702
    %888 = vmatprep.subr.bf16.mxu0 %v719
    %889 = vmatpush1.bf16.msra.mxu0 %v718
    %890 = vmatprep.subr.bf16.mxu0 0
    %891 = vmatpush1.bf16.msra.mxu0 0
    %892 = vmatprep.subr.bf16.mxu0 0
    %893 = vmatpush1.bf16.msra.mxu0 0
    %894 = vmatprep.subr.bf16.mxu0 0
    %895 = vmatpush1.bf16.msra.mxu0 0
    %896 = vmatprep.subr.bf16.mxu0 0
    %897 = vmatpush1.bf16.msra.mxu0 0
    %898 = vmatprep.subr.bf16.mxu0 0
    %899 = vmatpush1.bf16.msra.mxu0 0
    %900 = vmatprep.subr.bf16.mxu0 0
    %901 = vmatpush1.bf16.msra.mxu0 0
    %902 = vmatprep.subr.bf16.mxu0 0
    %903 = vmatpush1.bf16.msra.mxu0 0
    %904 = vmatprep.subr.bf16.mxu0 0
    %905 = vmatpush1.bf16.msra.mxu0 0
    %906 = vmatprep.subr.bf16.mxu0 0
    %907 = vmatpush1.bf16.msra.mxu0 0
    %908 = vmatprep.subr.bf16.mxu0 0
    %909 = vmatpush1.bf16.msra.mxu0 0
    %910 = vmatprep.subr.bf16.mxu0 0
    %911 = vmatpush1.bf16.msra.mxu0 0
    %912 = vmatprep.subr.bf16.mxu0 0
    %913 = vmatpush1.bf16.msra.mxu0 0
    %914 = vmatprep.subr.bf16.mxu0 0
    %915 = vmatpush1.bf16.msra.mxu0 0
    %916 = vmatprep.subr.bf16.mxu0 0
    %917 = vmatpush1.bf16.msra.mxu0 0
    %918 = vmatprep.mubr.bf16.mxu0 0
    %919 = vmatmul.mubr.bf16.gmra.mrb[0].mxu0 %v761
    %v920 = vpop.f32.mrb[0].mxu0
    %v921 = vadd.f32 %v547, %v920
    %v922 = vpop.f32.mrb[0].mxu0
    %v923 = vadd.f32 %v551, %v922
    %v924 = vpop.f32.mrb[0].mxu0
    %v925 = vpop.f32.mrb[0].mxu0
    %926 = vdwg.mxu0
    %927 = vmatprep.subr.bf16.mxu0 %v705
    %928 = vmatpush1.bf16.msra.mxu0 %v704
    %929 = vmatprep.subr.bf16.mxu0 %v721
    %930 = vmatpush1.bf16.msra.mxu0 %v720
    %931 = vmatprep.subr.bf16.mxu0 0
    %932 = vmatpush1.bf16.msra.mxu0 0
    %933 = vmatprep.subr.bf16.mxu0 0
    %934 = vmatpush1.bf16.msra.mxu0 0
    %935 = vmatprep.subr.bf16.mxu0 0
    %936 = vmatpush1.bf16.msra.mxu0 0
    %937 = vmatprep.subr.bf16.mxu0 0
    %938 = vmatpush1.bf16.msra.mxu0 0
    %939 = vmatprep.subr.bf16.mxu0 0
    %940 = vmatpush1.bf16.msra.mxu0 0
    %941 = vmatprep.subr.bf16.mxu0 0
    %942 = vmatpush1.bf16.msra.mxu0 0
    %943 = vmatprep.subr.bf16.mxu0 0
    %944 = vmatpush1.bf16.msra.mxu0 0
    %945 = vmatprep.subr.bf16.mxu0 0
    %946 = vmatpush1.bf16.msra.mxu0 0
    %947 = vmatprep.subr.bf16.mxu0 0
    %948 = vmatpush1.bf16.msra.mxu0 0
    %949 = vmatprep.subr.bf16.mxu0 0
    %950 = vmatpush1.bf16.msra.mxu0 0
    %951 = vmatprep.subr.bf16.mxu0 0
    %952 = vmatpush1.bf16.msra.mxu0 0
    %953 = vmatprep.subr.bf16.mxu0 0
    %954 = vmatpush1.bf16.msra.mxu0 0
    %955 = vmatprep.subr.bf16.mxu0 0
    %956 = vmatpush1.bf16.msra.mxu0 0
    %957 = vmatprep.subr.bf16.mxu0 0
    %958 = vmatpush1.bf16.msra.mxu0 0
    %959 = vmatprep.mubr.bf16.mxu0 0
    %960 = vmatmul.mubr.bf16.gmra.mrb[0].mxu0 %v761
    %v961 = vpop.f32.mrb[0].mxu0
    %v962 = vadd.f32 %v555, %v961
    %v963 = vpop.f32.mrb[0].mxu0
    %v964 = vadd.f32 %v559, %v963
    %v965 = vpop.f32.mrb[0].mxu0
    %v966 = vpop.f32.mrb[0].mxu0
    %967 = vdwg.mxu0
    %968 = vmatprep.subr.bf16.mxu0 %v707
    %969 = vmatpush1.bf16.msra.mxu0 %v706
    %970 = vmatprep.subr.bf16.mxu0 %v723
    %971 = vmatpush1.bf16.msra.mxu0 %v722
    %972 = vmatprep.subr.bf16.mxu0 0
    %973 = vmatpush1.bf16.msra.mxu0 0
    %974 = vmatprep.subr.bf16.mxu0 0
    %975 = vmatpush1.bf16.msra.mxu0 0
    %976 = vmatprep.subr.bf16.mxu0 0
    %977 = vmatpush1.bf16.msra.mxu0 0
    %978 = vmatprep.subr.bf16.mxu0 0
    %979 = vmatpush1.bf16.msra.mxu0 0
    %980 = vmatprep.subr.bf16.mxu0 0
    %981 = vmatpush1.bf16.msra.mxu0 0
    %982 = vmatprep.subr.bf16.mxu0 0
    %983 = vmatpush1.bf16.msra.mxu0 0
    %984 = vmatprep.subr.bf16.mxu0 0
    %985 = vmatpush1.bf16.msra.mxu0 0
    %986 = vmatprep.subr.bf16.mxu0 0
    %987 = vmatpush1.bf16.msra.mxu0 0
    %988 = vmatprep.subr.bf16.mxu0 0
    %989 = vmatpush1.bf16.msra.mxu0 0
    %990 = vmatprep.subr.bf16.mxu0 0
    %991 = vmatpush1.bf16.msra.mxu0 0
    %992 = vmatprep.subr.bf16.mxu0 0
    %993 = vmatpush1.bf16.msra.mxu0 0
    %994 = vmatprep.subr.bf16.mxu0 0
    %995 = vmatpush1.bf16.msra.mxu0 0
    %996 = vmatprep.subr.bf16.mxu0 0
    %997 = vmatpush1.bf16.msra.mxu0 0
    %998 = vmatprep.subr.bf16.mxu0 0
    %999 = vmatpush1.bf16.msra.mxu0 0
    %1000 = vmatprep.mubr.bf16.mxu0 0
    %1001 = vmatmul.mubr.bf16.gmra.mrb[0].mxu0 %v761
    %v1002 = vpop.f32.mrb[0].mxu0
    %v1003 = vadd.f32 %v563, %v1002
    %v1004 = vpop.f32.mrb[0].mxu0
    %v1005 = vadd.f32 %v567, %v1004
    %v1006 = vpop.f32.mrb[0].mxu0
    %v1007 = vpop.f32.mrb[0].mxu0
    %1008 = vdwg.mxu0
    %1009 = vmatprep.subr.bf16.mxu0 %v709
    %1010 = vmatpush1.bf16.msra.mxu0 %v708
    %1011 = vmatprep.subr.bf16.mxu0 %v725
    %1012 = vmatpush1.bf16.msra.mxu0 %v724
    %1013 = vmatprep.subr.bf16.mxu0 0
    %1014 = vmatpush1.bf16.msra.mxu0 0
    %1015 = vmatprep.subr.bf16.mxu0 0
    %1016 = vmatpush1.bf16.msra.mxu0 0
    %1017 = vmatprep.subr.bf16.mxu0 0
    %1018 = vmatpush1.bf16.msra.mxu0 0
    %1019 = vmatprep.subr.bf16.mxu0 0
    %1020 = vmatpush1.bf16.msra.mxu0 0
    %1021 = vmatprep.subr.bf16.mxu0 0
    %1022 = vmatpush1.bf16.msra.mxu0 0
    %1023 = vmatprep.subr.bf16.mxu0 0
    %1024 = vmatpush1.bf16.msra.mxu0 0
    %1025 = vmatprep.subr.bf16.mxu0 0
    %1026 = vmatpush1.bf16.msra.mxu0 0
    %1027 = vmatprep.subr.bf16.mxu0 0
    %1028 = vmatpush1.bf16.msra.mxu0 0
    %1029 = vmatprep.subr.bf16.mxu0 0
    %1030 = vmatpush1.bf16.msra.mxu0 0
    %1031 = vmatprep.subr.bf16.mxu0 0
    %1032 = vmatpush1.bf16.msra.mxu0 0
    %1033 = vmatprep.subr.bf16.mxu0 0
    %1034 = vmatpush1.bf16.msra.mxu0 0
    %1035 = vmatprep.subr.bf16.mxu0 0
    %1036 = vmatpush1.bf16.msra.mxu0 0
    %1037 = vmatprep.subr.bf16.mxu0 0
    %1038 = vmatpush1.bf16.msra.mxu0 0
    %1039 = vmatprep.subr.bf16.mxu0 0
    %1040 = vmatpush1.bf16.msra.mxu0 0
    %1041 = vmatprep.mubr.bf16.mxu0 0
    %1042 = vmatmul.mubr.bf16.gmra.mrb[0].mxu0 %v761
    %v1043 = vpop.f32.mrb[0].mxu0
    %v1044 = vadd.f32 %v571, %v1043
    %v1045 = vpop.f32.mrb[0].mxu0
    %v1046 = vadd.f32 %v575, %v1045
    %v1047 = vpop.f32.mrb[0].mxu0
    %v1048 = vpop.f32.mrb[0].mxu0
    %1049 = vdwg.mxu0
    %1050 = vmatprep.subr.bf16.mxu0 %v711
    %1051 = vmatpush1.bf16.msra.mxu0 %v710
    %1052 = vmatprep.subr.bf16.mxu0 %v727
    %1053 = vmatpush1.bf16.msra.mxu0 %v726
    %1054 = vmatprep.subr.bf16.mxu0 0
    %1055 = vmatpush1.bf16.msra.mxu0 0
    %1056 = vmatprep.subr.bf16.mxu0 0
    %1057 = vmatpush1.bf16.msra.mxu0 0
    %1058 = vmatprep.subr.bf16.mxu0 0
    %1059 = vmatpush1.bf16.msra.mxu0 0
    %1060 = vmatprep.subr.bf16.mxu0 0
    %1061 = vmatpush1.bf16.msra.mxu0 0
    %1062 = vmatprep.subr.bf16.mxu0 0
    %1063 = vmatpush1.bf16.msra.mxu0 0
    %1064 = vmatprep.subr.bf16.mxu0 0
    %1065 = vmatpush1.bf16.msra.mxu0 0
    %1066 = vmatprep.subr.bf16.mxu0 0
    %1067 = vmatpush1.bf16.msra.mxu0 0
    %1068 = vmatprep.subr.bf16.mxu0 0
    %1069 = vmatpush1.bf16.msra.mxu0 0
    %1070 = vmatprep.subr.bf16.mxu0 0
    %1071 = vmatpush1.bf16.msra.mxu0 0
    %1072 = vmatprep.subr.bf16.mxu0 0
    %1073 = vmatpush1.bf16.msra.mxu0 0
    %1074 = vmatprep.subr.bf16.mxu0 0
    %1075 = vmatpush1.bf16.msra.mxu0 0
    %1076 = vmatprep.subr.bf16.mxu0 0
    %1077 = vmatpush1.bf16.msra.mxu0 0
    %1078 = vmatprep.subr.bf16.mxu0 0
    %1079 = vmatpush1.bf16.msra.mxu0 0
    %1080 = vmatprep.subr.bf16.mxu0 0
    %1081 = vmatpush1.bf16.msra.mxu0 0
    %1082 = vmatprep.mubr.bf16.mxu0 0
    %1083 = vmatmul.mubr.bf16.gmra.mrb[0].mxu0 %v761
    %v1084 = vpop.f32.mrb[0].mxu0
    %v1085 = vadd.f32 %v579, %v1084
    %v1086 = vpop.f32.mrb[0].mxu0
    %v1087 = vadd.f32 %v583, %v1086
    %v1088 = vpop.f32.mrb[0].mxu0
    %v1089 = vpop.f32.mrb[0].mxu0
    %1090 = vdwg.mxu0
    %v1091 = vmax.f32 %v798, 0.0
    %v1092 = vmax.f32 %v800, 0.0
    %v1093 = vmax.f32 %v839, 0.0
    %v1094 = vmax.f32 %v841, 0.0
    %v1095 = vmax.f32 %v880, 0.0
    %v1096 = vmax.f32 %v882, 0.0
    %v1097 = vmax.f32 %v921, 0.0
    %v1098 = vmax.f32 %v923, 0.0
    %v1099 = vmax.f32 %v962, 0.0
    %v1100 = vmax.f32 %v964, 0.0
    %v1101 = vmax.f32 %v1003, 0.0
    %v1102 = vmax.f32 %v1005, 0.0
    %v1103 = vmax.f32 %v1044, 0.0
    %v1104 = vmax.f32 %v1046, 0.0
    %v1105 = vmax.f32 %v1085, 0.0
    %v1106 = vmax.f32 %v1087, 0.0
    %v1107 = vpack.c.bf16 %v1091, %v1091
    %v1108 = vpack.c.bf16 %v1092, %v1092
    %v1109 = vpack.c.bf16 %v1093, %v1093
    %v1110 = vpack.c.bf16 %v1094, %v1094
    %v1111 = vpack.c.bf16 %v1095, %v1095
    %v1112 = vpack.c.bf16 %v1096, %v1096
    %v1113 = vpack.c.bf16 %v1097, %v1097
    %v1114 = vpack.c.bf16 %v1098, %v1098
    %v1115 = vpack.c.bf16 %v1099, %v1099
    %v1116 = vpack.c.bf16 %v1100, %v1100
    %v1117 = vpack.c.bf16 %v1101, %v1101
    %v1118 = vpack.c.bf16 %v1102, %v1102
    %v1119 = vpack.c.bf16 %v1103, %v1103
    %v1120 = vpack.c.bf16 %v1104, %v1104
    %v1121 = vpack.c.bf16 %v1105, %v1105
    %v1122 = vpack.c.bf16 %v1106, %v1106
    %v1379 = vunpack.c.l.b16 %v72
    %v1380 = vunpack.c.l.b16 %v73
    %v1381 = vunpack.c.l.b16 %v74
    %v1382 = vunpack.c.l.b16 %v75
    %v1383 = vunpack.c.l.b16 %v76
    %v1384 = vunpack.c.l.b16 %v77
    %v1385 = vunpack.c.l.b16 %v78
    %v1386 = vunpack.c.l.b16 %v79
    %v1387 = vunpack.c.l.b16 %v80
    %v1388 = vunpack.c.l.b16 %v81
    %v1389 = vunpack.c.l.b16 %v82
    %v1390 = vunpack.c.l.b16 %v83
    %v1391 = vunpack.c.l.b16 %v84
    %v1392 = vunpack.c.l.b16 %v85
    %v1393 = vunpack.c.l.b16 %v86
    %v1394 = vunpack.c.l.b16 %v87
    %v1395 = vunpack.c.l.b16 %v88
    %v1396 = vunpack.c.l.b16 %v89
    %v1397 = vunpack.c.l.b16 %v90
    %v1398 = vunpack.c.l.b16 %v91
    %v1399 = vunpack.c.l.b16 %v92
    %v1400 = vunpack.c.l.b16 %v93
    %v1401 = vunpack.c.l.b16 %v94
    %v1402 = vunpack.c.l.b16 %v95
    %v1403 = vunpack.c.l.b16 %v96
    %v1404 = vunpack.c.l.b16 %v97
    %v1405 = vunpack.c.l.b16 %v98
    %v1406 = vunpack.c.l.b16 %v99
    %v1407 = vunpack.c.l.b16 %v100
    %v1408 = vunpack.c.l.b16 %v101
    %v1409 = vunpack.c.l.b16 %v102
    %v1410 = vunpack.c.l.b16 %v103
    %v1411 = vunpack.c.l.b16 %v104
    %v1412 = vunpack.c.l.b16 %v105
    %v1413 = vunpack.c.l.b16 %v106
    %v1414 = vunpack.c.l.b16 %v107
    %v1415 = vunpack.c.l.b16 %v108
    %v1416 = vunpack.c.l.b16 %v109
    %v1417 = vunpack.c.l.b16 %v110
    %v1418 = vunpack.c.l.b16 %v111
    %v1419 = vunpack.c.l.b16 %v112
    %v1420 = vunpack.c.l.b16 %v113
    %v1421 = vunpack.c.l.b16 %v114
    %v1422 = vunpack.c.l.b16 %v115
    %v1423 = vunpack.c.l.b16 %v116
    %v1424 = vunpack.c.l.b16 %v117
    %v1425 = vunpack.c.l.b16 %v118
    %v1426 = vunpack.c.l.b16 %v119
    %v1427 = vunpack.c.l.b16 %v120
    %v1428 = vunpack.c.l.b16 %v121
    %v1429 = vunpack.c.l.b16 %v122
    %v1430 = vunpack.c.l.b16 %v123
    %v1431 = vunpack.c.l.b16 %v124
    %v1432 = vunpack.c.l.b16 %v125
    %v1433 = vunpack.c.l.b16 %v126
    %v1434 = vunpack.c.l.b16 %v127
    %v1435 = vunpack.c.l.b16 %v128
    %v1436 = vunpack.c.l.b16 %v129
    %v1437 = vunpack.c.l.b16 %v130
    %v1438 = vunpack.c.l.b16 %v131
    %v1439 = vunpack.c.l.b16 %v132
    %v1440 = vunpack.c.l.b16 %v133
    %v1441 = vunpack.c.l.b16 %v134
    %v1442 = vunpack.c.l.b16 %v135
    %v1443 = vunpack.c.l.b16 %v136
    %v1444 = vunpack.c.l.b16 %v137
    %v1445 = vunpack.c.l.b16 %v138
    %v1446 = vunpack.c.l.b16 %v139
    %v1447 = vunpack.c.l.b16 %v140
    %v1448 = vunpack.c.l.b16 %v141
    %v1449 = vunpack.c.l.b16 %v142
    %v1450 = vunpack.c.l.b16 %v143
    %v1451 = vunpack.c.l.b16 %v144
    %v1452 = vunpack.c.l.b16 %v145
    %v1453 = vunpack.c.l.b16 %v146
    %v1454 = vunpack.c.l.b16 %v147
    %v1455 = vunpack.c.l.b16 %v148
    %v1456 = vunpack.c.l.b16 %v149
    %v1457 = vunpack.c.l.b16 %v150
    %v1458 = vunpack.c.l.b16 %v151
    %v1459 = vunpack.c.l.b16 %v152
    %v1460 = vunpack.c.l.b16 %v153
    %v1461 = vunpack.c.l.b16 %v154
    %v1462 = vunpack.c.l.b16 %v155
    %v1463 = vunpack.c.l.b16 %v156
    %v1464 = vunpack.c.l.b16 %v157
    %v1465 = vunpack.c.l.b16 %v158
    %v1466 = vunpack.c.l.b16 %v159
    %v1467 = vunpack.c.l.b16 %v160
    %v1468 = vunpack.c.l.b16 %v161
    %v1469 = vunpack.c.l.b16 %v162
    %v1470 = vunpack.c.l.b16 %v163
    %v1471 = vunpack.c.l.b16 %v164
    %v1472 = vunpack.c.l.b16 %v165
    %v1473 = vunpack.c.l.b16 %v166
    %v1474 = vunpack.c.l.b16 %v167
    %v1475 = vunpack.c.l.b16 %v168
    %v1476 = vunpack.c.l.b16 %v169
    %v1477 = vunpack.c.l.b16 %v170
    %v1478 = vunpack.c.l.b16 %v171
    %v1479 = vunpack.c.l.b16 %v172
    %v1480 = vunpack.c.l.b16 %v173
    %v1481 = vunpack.c.l.b16 %v174
    %v1482 = vunpack.c.l.b16 %v175
    %v1483 = vunpack.c.l.b16 %v176
    %v1484 = vunpack.c.l.b16 %v177
    %v1485 = vunpack.c.l.b16 %v178
    %v1486 = vunpack.c.l.b16 %v179
    %v1487 = vunpack.c.l.b16 %v180
    %v1488 = vunpack.c.l.b16 %v181
    %v1489 = vunpack.c.l.b16 %v182
    %v1490 = vunpack.c.l.b16 %v183
    %v1491 = vunpack.c.l.b16 %v184
    %v1492 = vunpack.c.l.b16 %v185
    %v1493 = vunpack.c.l.b16 %v186
    %v1494 = vunpack.c.l.b16 %v187
    %v1495 = vunpack.c.l.b16 %v188
    %v1496 = vunpack.c.l.b16 %v189
    %v1497 = vunpack.c.l.b16 %v190
    %v1498 = vunpack.c.l.b16 %v191
    %v1499 = vunpack.c.l.b16 %v192
    %v1500 = vunpack.c.l.b16 %v193
    %v1501 = vunpack.c.l.b16 %v194
    %v1502 = vunpack.c.l.b16 %v195
    %v1503 = vunpack.c.l.b16 %v196
    %v1504 = vunpack.c.l.b16 %v197
    %v1505 = vunpack.c.l.b16 %v198
    %v1506 = vunpack.c.l.b16 %v199
    %v1507 = vunpack.c.l.b16 %v200
    %v1508 = vunpack.c.l.b16 %v201
    %v1509 = vunpack.c.l.b16 %v202
    %v1510 = vunpack.c.l.b16 %v203
    %v1511 = vunpack.c.l.b16 %v204
    %v1512 = vunpack.c.l.b16 %v205
    %v1513 = vunpack.c.l.b16 %v206
    %v1514 = vunpack.c.l.b16 %v207
    %v1515 = vunpack.c.l.b16 %v208
    %v1516 = vunpack.c.l.b16 %v209
    %v1517 = vunpack.c.l.b16 %v210
    %v1518 = vunpack.c.l.b16 %v211
    %v1519 = vunpack.c.l.b16 %v212
    %v1520 = vunpack.c.l.b16 %v213
    %v1521 = vunpack.c.l.b16 %v214
    %v1522 = vunpack.c.l.b16 %v215
    %v1523 = vunpack.c.l.b16 %v216
    %v1524 = vunpack.c.l.b16 %v217
    %v1525 = vunpack.c.l.b16 %v218
    %v1526 = vunpack.c.l.b16 %v219
    %v1527 = vunpack.c.l.b16 %v220
    %v1528 = vunpack.c.l.b16 %v221
    %v1529 = vunpack.c.l.b16 %v222
    %v1530 = vunpack.c.l.b16 %v223
    %v1531 = vunpack.c.l.b16 %v224
    %v1532 = vunpack.c.l.b16 %v225
    %v1533 = vunpack.c.l.b16 %v226
    %v1534 = vunpack.c.l.b16 %v227
    %v1535 = vunpack.c.l.b16 %v228
    %v1536 = vunpack.c.l.b16 %v229
    %v1537 = vunpack.c.l.b16 %v230
    %v1538 = vunpack.c.l.b16 %v231
    %v1539 = vunpack.c.l.b16 %v232
    %v1540 = vunpack.c.l.b16 %v233
    %v1541 = vunpack.c.l.b16 %v234
    %v1542 = vunpack.c.l.b16 %v235
    %v1543 = vunpack.c.l.b16 %v236
    %v1544 = vunpack.c.l.b16 %v237
    %v1545 = vunpack.c.l.b16 %v238
    %v1546 = vunpack.c.l.b16 %v239
    %v1547 = vunpack.c.l.b16 %v240
    %v1548 = vunpack.c.l.b16 %v241
    %v1549 = vunpack.c.l.b16 %v242
    %v1550 = vunpack.c.l.b16 %v243
    %v1551 = vunpack.c.l.b16 %v244
    %v1552 = vunpack.c.l.b16 %v245
    %v1553 = vunpack.c.l.b16 %v246
    %v1554 = vunpack.c.l.b16 %v247
    %v1555 = vunpack.c.l.b16 %v248
    %v1556 = vunpack.c.l.b16 %v249
    %v1557 = vunpack.c.l.b16 %v250
    %v1558 = vunpack.c.l.b16 %v251
    %v1559 = vunpack.c.l.b16 %v252
    %v1560 = vunpack.c.l.b16 %v253
    %v1561 = vunpack.c.l.b16 %v254
    %v1562 = vunpack.c.l.b16 %v255
    %v1563 = vunpack.c.l.b16 %v256
    %v1564 = vunpack.c.l.b16 %v257
    %v1565 = vunpack.c.l.b16 %v258
    %v1566 = vunpack.c.l.b16 %v259
    %v1567 = vunpack.c.l.b16 %v260
    %v1568 = vunpack.c.l.b16 %v261
    %v1569 = vunpack.c.l.b16 %v262
    %v1570 = vunpack.c.l.b16 %v263
    %v1571 = vunpack.c.l.b16 %v264
    %v1572 = vunpack.c.l.b16 %v265
    %v1573 = vunpack.c.l.b16 %v266
    %v1574 = vunpack.c.l.b16 %v267
    %v1575 = vunpack.c.l.b16 %v268
    %v1576 = vunpack.c.l.b16 %v269
    %v1577 = vunpack.c.l.b16 %v270
    %v1578 = vunpack.c.l.b16 %v271
    %v1579 = vunpack.c.l.b16 %v272
    %v1580 = vunpack.c.l.b16 %v273
    %v1581 = vunpack.c.l.b16 %v274
    %v1582 = vunpack.c.l.b16 %v275
    %v1583 = vunpack.c.l.b16 %v276
    %v1584 = vunpack.c.l.b16 %v277
    %v1585 = vunpack.c.l.b16 %v278
    %v1586 = vunpack.c.l.b16 %v279
    %v1587 = vunpack.c.l.b16 %v280
    %v1588 = vunpack.c.l.b16 %v281
    %v1589 = vunpack.c.l.b16 %v282
    %v1590 = vunpack.c.l.b16 %v283
    %v1591 = vunpack.c.l.b16 %v284
    %v1592 = vunpack.c.l.b16 %v285
    %v1593 = vunpack.c.l.b16 %v286
    %v1594 = vunpack.c.l.b16 %v287
    %v1595 = vunpack.c.l.b16 %v288
    %v1596 = vunpack.c.l.b16 %v289
    %v1597 = vunpack.c.l.b16 %v290
    %v1598 = vunpack.c.l.b16 %v291
    %v1599 = vunpack.c.l.b16 %v292
    %v1600 = vunpack.c.l.b16 %v293
    %v1601 = vunpack.c.l.b16 %v294
    %v1602 = vunpack.c.l.b16 %v295
    %v1603 = vunpack.c.l.b16 %v296
    %v1604 = vunpack.c.l.b16 %v297
    %v1605 = vunpack.c.l.b16 %v298
    %v1606 = vunpack.c.l.b16 %v299
    %v1607 = vunpack.c.l.b16 %v300
    %v1608 = vunpack.c.l.b16 %v301
    %v1609 = vunpack.c.l.b16 %v302
    %v1610 = vunpack.c.l.b16 %v303
    %v1611 = vunpack.c.l.b16 %v304
    %v1612 = vunpack.c.l.b16 %v305
    %v1613 = vunpack.c.l.b16 %v306
    %v1614 = vunpack.c.l.b16 %v307
    %v1615 = vunpack.c.l.b16 %v308
    %v1616 = vunpack.c.l.b16 %v309
    %v1617 = vunpack.c.l.b16 %v310
    %v1618 = vunpack.c.l.b16 %v311
    %v1619 = vunpack.c.l.b16 %v312
    %v1620 = vunpack.c.l.b16 %v313
    %v1621 = vunpack.c.l.b16 %v314
    %v1622 = vunpack.c.l.b16 %v315
    %v1623 = vunpack.c.l.b16 %v316
    %v1624 = vunpack.c.l.b16 %v317
    %v1625 = vunpack.c.l.b16 %v318
    %v1626 = vunpack.c.l.b16 %v319
    %v1627 = vunpack.c.l.b16 %v320
    %v1628 = vunpack.c.l.b16 %v321
    %v1629 = vunpack.c.l.b16 %v322
    %v1630 = vunpack.c.l.b16 %v323
    %v1631 = vunpack.c.l.b16 %v324
    %v1632 = vunpack.c.l.b16 %v325
    %v1633 = vunpack.c.l.b16 %v326
    %v1634 = vunpack.c.l.b16 %v327
    %v1635 = vpack.c.b16 %v1380, %v1379
    %v1636 = vpack.c.b16 %v1382, %v1381
    %v1637 = vpack.c.b16 %v1384, %v1383
    %v1638 = vpack.c.b16 %v1386, %v1385
    %v1639 = vpack.c.b16 %v1388, %v1387
    %v1640 = vpack.c.b16 %v1390, %v1389
    %v1641 = vpack.c.b16 %v1392, %v1391
    %v1642 = vpack.c.b16 %v1394, %v1393
    %v1643 = vpack.c.b16 %v1396, %v1395
    %v1644 = vpack.c.b16 %v1398, %v1397
    %v1645 = vpack.c.b16 %v1400, %v1399
    %v1646 = vpack.c.b16 %v1402, %v1401
    %v1647 = vpack.c.b16 %v1404, %v1403
    %v1648 = vpack.c.b16 %v1406, %v1405
    %v1649 = vpack.c.b16 %v1408, %v1407
    %v1650 = vpack.c.b16 %v1410, %v1409
    %v1651 = vpack.c.b16 %v1412, %v1411
    %v1652 = vpack.c.b16 %v1414, %v1413
    %v1653 = vpack.c.b16 %v1416, %v1415
    %v1654 = vpack.c.b16 %v1418, %v1417
    %v1655 = vpack.c.b16 %v1420, %v1419
    %v1656 = vpack.c.b16 %v1422, %v1421
    %v1657 = vpack.c.b16 %v1424, %v1423
    %v1658 = vpack.c.b16 %v1426, %v1425
    %v1659 = vpack.c.b16 %v1428, %v1427
    %v1660 = vpack.c.b16 %v1430, %v1429
    %v1661 = vpack.c.b16 %v1432, %v1431
    %v1662 = vpack.c.b16 %v1434, %v1433
    %v1663 = vpack.c.b16 %v1436, %v1435
    %v1664 = vpack.c.b16 %v1438, %v1437
    %v1665 = vpack.c.b16 %v1440, %v1439
    %v1666 = vpack.c.b16 %v1442, %v1441
    %v1667 = vpack.c.b16 %v1444, %v1443
    %v1668 = vpack.c.b16 %v1446, %v1445
    %v1669 = vpack.c.b16 %v1448, %v1447
    %v1670 = vpack.c.b16 %v1450, %v1449
    %v1671 = vpack.c.b16 %v1452, %v1451
    %v1672 = vpack.c.b16 %v1454, %v1453
    %v1673 = vpack.c.b16 %v1456, %v1455
    %v1674 = vpack.c.b16 %v1458, %v1457
    %v1675 = vpack.c.b16 %v1460, %v1459
    %v1676 = vpack.c.b16 %v1462, %v1461
    %v1677 = vpack.c.b16 %v1464, %v1463
    %v1678 = vpack.c.b16 %v1466, %v1465
    %v1679 = vpack.c.b16 %v1468, %v1467
    %v1680 = vpack.c.b16 %v1470, %v1469
    %v1681 = vpack.c.b16 %v1472, %v1471
    %v1682 = vpack.c.b16 %v1474, %v1473
    %v1683 = vpack.c.b16 %v1476, %v1475
    %v1684 = vpack.c.b16 %v1478, %v1477
    %v1685 = vpack.c.b16 %v1480, %v1479
    %v1686 = vpack.c.b16 %v1482, %v1481
    %v1687 = vpack.c.b16 %v1484, %v1483
    %v1688 = vpack.c.b16 %v1486, %v1485
    %v1689 = vpack.c.b16 %v1488, %v1487
    %v1690 = vpack.c.b16 %v1490, %v1489
    %v1691 = vpack.c.b16 %v1492, %v1491
    %v1692 = vpack.c.b16 %v1494, %v1493
    %v1693 = vpack.c.b16 %v1496, %v1495
    %v1694 = vpack.c.b16 %v1498, %v1497
    %v1695 = vpack.c.b16 %v1500, %v1499
    %v1696 = vpack.c.b16 %v1502, %v1501
    %v1697 = vpack.c.b16 %v1504, %v1503
    %v1698 = vpack.c.b16 %v1506, %v1505
    %v1699 = vpack.c.b16 %v1508, %v1507
    %v1700 = vpack.c.b16 %v1510, %v1509
    %v1701 = vpack.c.b16 %v1512, %v1511
    %v1702 = vpack.c.b16 %v1514, %v1513
    %v1703 = vpack.c.b16 %v1516, %v1515
    %v1704 = vpack.c.b16 %v1518, %v1517
    %v1705 = vpack.c.b16 %v1520, %v1519
    %v1706 = vpack.c.b16 %v1522, %v1521
    %v1707 = vpack.c.b16 %v1524, %v1523
    %v1708 = vpack.c.b16 %v1526, %v1525
    %v1709 = vpack.c.b16 %v1528, %v1527
    %v1710 = vpack.c.b16 %v1530, %v1529
    %v1711 = vpack.c.b16 %v1532, %v1531
    %v1712 = vpack.c.b16 %v1534, %v1533
    %v1713 = vpack.c.b16 %v1536, %v1535
    %v1714 = vpack.c.b16 %v1538, %v1537
    %v1715 = vpack.c.b16 %v1540, %v1539
    %v1716 = vpack.c.b16 %v1542, %v1541
    %v1717 = vpack.c.b16 %v1544, %v1543
    %v1718 = vpack.c.b16 %v1546, %v1545
    %v1719 = vpack.c.b16 %v1548, %v1547
    %v1720 = vpack.c.b16 %v1550, %v1549
    %v1721 = vpack.c.b16 %v1552, %v1551
    %v1722 = vpack.c.b16 %v1554, %v1553
    %v1723 = vpack.c.b16 %v1556, %v1555
    %v1724 = vpack.c.b16 %v1558, %v1557
    %v1725 = vpack.c.b16 %v1560, %v1559
    %v1726 = vpack.c.b16 %v1562, %v1561
    %v1727 = vpack.c.b16 %v1564, %v1563
    %v1728 = vpack.c.b16 %v1566, %v1565
    %v1729 = vpack.c.b16 %v1568, %v1567
    %v1730 = vpack.c.b16 %v1570, %v1569
    %v1731 = vpack.c.b16 %v1572, %v1571
    %v1732 = vpack.c.b16 %v1574, %v1573
    %v1733 = vpack.c.b16 %v1576, %v1575
    %v1734 = vpack.c.b16 %v1578, %v1577
    %v1735 = vpack.c.b16 %v1580, %v1579
    %v1736 = vpack.c.b16 %v1582, %v1581
    %v1737 = vpack.c.b16 %v1584, %v1583
    %v1738 = vpack.c.b16 %v1586, %v1585
    %v1739 = vpack.c.b16 %v1588, %v1587
    %v1740 = vpack.c.b16 %v1590, %v1589
    %v1741 = vpack.c.b16 %v1592, %v1591
    %v1742 = vpack.c.b16 %v1594, %v1593
    %v1743 = vpack.c.b16 %v1596, %v1595
    %v1744 = vpack.c.b16 %v1598, %v1597
    %v1745 = vpack.c.b16 %v1600, %v1599
    %v1746 = vpack.c.b16 %v1602, %v1601
    %v1747 = vpack.c.b16 %v1604, %v1603
    %v1748 = vpack.c.b16 %v1606, %v1605
    %v1749 = vpack.c.b16 %v1608, %v1607
    %v1750 = vpack.c.b16 %v1610, %v1609
    %v1751 = vpack.c.b16 %v1612, %v1611
    %v1752 = vpack.c.b16 %v1614, %v1613
    %v1753 = vpack.c.b16 %v1616, %v1615
    %v1754 = vpack.c.b16 %v1618, %v1617
    %v1755 = vpack.c.b16 %v1620, %v1619
    %v1756 = vpack.c.b16 %v1622, %v1621
    %v1757 = vpack.c.b16 %v1624, %v1623
    %v1758 = vpack.c.b16 %v1626, %v1625
    %v1759 = vpack.c.b16 %v1628, %v1627
    %v1760 = vpack.c.b16 %v1630, %v1629
    %v1761 = vpack.c.b16 %v1632, %v1631
    %v1762 = vpack.c.b16 %v1634, %v1633
    %1891 = vmatprep.subr.bf16.mxu0 0
    %1892 = vmatpush1.bf16.msra.mxu0 %v1635
    %1893 = vmatprep.subr.bf16.mxu0 0
    %1894 = vmatpush1.bf16.msra.mxu0 %v1636
    %1895 = vmatprep.subr.bf16.mxu0 0
    %1896 = vmatpush1.bf16.msra.mxu0 %v1637
    %1897 = vmatprep.subr.bf16.mxu0 0
    %1898 = vmatpush1.bf16.msra.mxu0 %v1638
    %1899 = vmatprep.subr.bf16.mxu0 0
    %1900 = vmatpush1.bf16.msra.mxu0 %v1639
    %1901 = vmatprep.subr.bf16.mxu0 0
    %1902 = vmatpush1.bf16.msra.mxu0 %v1640
    %1903 = vmatprep.subr.bf16.mxu0 0
    %1904 = vmatpush1.bf16.msra.mxu0 %v1641
    %1905 = vmatprep.subr.bf16.mxu0 0
    %1906 = vmatpush1.bf16.msra.mxu0 %v1642
    %1907 = vmatprep.subr.bf16.mxu0 0
    %1908 = vmatpush1.bf16.msra.mxu0 %v1643
    %1909 = vmatprep.subr.bf16.mxu0 0
    %1910 = vmatpush1.bf16.msra.mxu0 %v1644
    %1911 = vmatprep.subr.bf16.mxu0 0
    %1912 = vmatpush1.bf16.msra.mxu0 %v1645
    %1913 = vmatprep.subr.bf16.mxu0 0
    %1914 = vmatpush1.bf16.msra.mxu0 %v1646
    %1915 = vmatprep.subr.bf16.mxu0 0
    %1916 = vmatpush1.bf16.msra.mxu0 %v1647
    %1917 = vmatprep.subr.bf16.mxu0 0
    %1918 = vmatpush1.bf16.msra.mxu0 %v1648
    %1919 = vmatprep.subr.bf16.mxu0 0
    %1920 = vmatpush1.bf16.msra.mxu0 %v1649
    %1921 = vmatprep.subr.bf16.mxu0 0
    %1922 = vmatpush1.bf16.msra.mxu0 %v1650
    %1923 = vmatprep.mubr.bf16.mxu0 %v1108
    %1924 = vmatmul.mubr.bf16.gmra.mrb[0].mxu0 %v1107
    %v1925 = vpop.f32.mrb[0].mxu0
    %v1926 = vadd.f32 0.0, %v1925
    %v1927 = vpop.f32.mrb[0].mxu0
    %v1928 = vpop.f32.mrb[0].mxu0
    %v1929 = vpop.f32.mrb[0].mxu0
    %1930 = vdwg.mxu0
    %1931 = vmatprep.subr.bf16.mxu0 0
    %1932 = vmatpush1.bf16.msra.mxu0 %v1651
    %1933 = vmatprep.subr.bf16.mxu0 0
    %1934 = vmatpush1.bf16.msra.mxu0 %v1652
    %1935 = vmatprep.subr.bf16.mxu0 0
    %1936 = vmatpush1.bf16.msra.mxu0 %v1653
    %1937 = vmatprep.subr.bf16.mxu0 0
    %1938 = vmatpush1.bf16.msra.mxu0 %v1654
    %1939 = vmatprep.subr.bf16.mxu0 0
    %1940 = vmatpush1.bf16.msra.mxu0 %v1655
    %1941 = vmatprep.subr.bf16.mxu0 0
    %1942 = vmatpush1.bf16.msra.mxu0 %v1656
    %1943 = vmatprep.subr.bf16.mxu0 0
    %1944 = vmatpush1.bf16.msra.mxu0 %v1657
    %1945 = vmatprep.subr.bf16.mxu0 0
    %1946 = vmatpush1.bf16.msra.mxu0 %v1658
    %1947 = vmatprep.subr.bf16.mxu0 0
    %1948 = vmatpush1.bf16.msra.mxu0 %v1659
    %1949 = vmatprep.subr.bf16.mxu0 0
    %1950 = vmatpush1.bf16.msra.mxu0 %v1660
    %1951 = vmatprep.subr.bf16.mxu0 0
    %1952 = vmatpush1.bf16.msra.mxu0 %v1661
    %1953 = vmatprep.subr.bf16.mxu0 0
    %1954 = vmatpush1.bf16.msra.mxu0 %v1662
    %1955 = vmatprep.subr.bf16.mxu0 0
    %1956 = vmatpush1.bf16.msra.mxu0 %v1663
    %1957 = vmatprep.subr.bf16.mxu0 0
    %1958 = vmatpush1.bf16.msra.mxu0 %v1664
    %1959 = vmatprep.subr.bf16.mxu0 0
    %1960 = vmatpush1.bf16.msra.mxu0 %v1665
    %1961 = vmatprep.subr.bf16.mxu0 0
    %1962 = vmatpush1.bf16.msra.mxu0 %v1666
    %1963 = vmatprep.mubr.bf16.mxu0 %v1110
    %1964 = vmatmul.mubr.bf16.gmra.mrb[0].mxu0 %v1109
    %v1965 = vpop.f32.mrb[0].mxu0
    %v1966 = vadd.f32 %v1926, %v1965
    %v1967 = vpop.f32.mrb[0].mxu0
    %v1968 = vpop.f32.mrb[0].mxu0
    %v1969 = vpop.f32.mrb[0].mxu0
    %1970 = vdwg.mxu0
    %1971 = vmatprep.subr.bf16.mxu0 0
    %1972 = vmatpush1.bf16.msra.mxu0 %v1667
    %1973 = vmatprep.subr.bf16.mxu0 0
    %1974 = vmatpush1.bf16.msra.mxu0 %v1668
    %1975 = vmatprep.subr.bf16.mxu0 0
    %1976 = vmatpush1.bf16.msra.mxu0 %v1669
    %1977 = vmatprep.subr.bf16.mxu0 0
    %1978 = vmatpush1.bf16.msra.mxu0 %v1670
    %1979 = vmatprep.subr.bf16.mxu0 0
    %1980 = vmatpush1.bf16.msra.mxu0 %v1671
    %1981 = vmatprep.subr.bf16.mxu0 0
    %1982 = vmatpush1.bf16.msra.mxu0 %v1672
    %1983 = vmatprep.subr.bf16.mxu0 0
    %1984 = vmatpush1.bf16.msra.mxu0 %v1673
    %1985 = vmatprep.subr.bf16.mxu0 0
    %1986 = vmatpush1.bf16.msra.mxu0 %v1674
    %1987 = vmatprep.subr.bf16.mxu0 0
    %1988 = vmatpush1.bf16.msra.mxu0 %v1675
    %1989 = vmatprep.subr.bf16.mxu0 0
    %1990 = vmatpush1.bf16.msra.mxu0 %v1676
    %1991 = vmatprep.subr.bf16.mxu0 0
    %1992 = vmatpush1.bf16.msra.mxu0 %v1677
    %1993 = vmatprep.subr.bf16.mxu0 0
    %1994 = vmatpush1.bf16.msra.mxu0 %v1678
    %1995 = vmatprep.subr.bf16.mxu0 0
    %1996 = vmatpush1.bf16.msra.mxu0 %v1679
    %1997 = vmatprep.subr.bf16.mxu0 0
    %1998 = vmatpush1.bf16.msra.mxu0 %v1680
    %1999 = vmatprep.subr.bf16.mxu0 0
    %2000 = vmatpush1.bf16.msra.mxu0 %v1681
    %2001 = vmatprep.subr.bf16.mxu0 0
    %2002 = vmatpush1.bf16.msra.mxu0 %v1682
    %2003 = vmatprep.mubr.bf16.mxu0 %v1112
    %2004 = vmatmul.mubr.bf16.gmra.mrb[0].mxu0 %v1111
    %v2005 = vpop.f32.mrb[0].mxu0
    %v2006 = vadd.f32 %v1966, %v2005
    %v2007 = vpop.f32.mrb[0].mxu0
    %v2008 = vpop.f32.mrb[0].mxu0
    %v2009 = vpop.f32.mrb[0].mxu0
    %2010 = vdwg.mxu0
    %2011 = vmatprep.subr.bf16.mxu0 0
    %2012 = vmatpush1.bf16.msra.mxu0 %v1683
    %2013 = vmatprep.subr.bf16.mxu0 0
    %2014 = vmatpush1.bf16.msra.mxu0 %v1684
    %2015 = vmatprep.subr.bf16.mxu0 0
    %2016 = vmatpush1.bf16.msra.mxu0 %v1685
    %2017 = vmatprep.subr.bf16.mxu0 0
    %2018 = vmatpush1.bf16.msra.mxu0 %v1686
    %2019 = vmatprep.subr.bf16.mxu0 0
    %2020 = vmatpush1.bf16.msra.mxu0 %v1687
    %2021 = vmatprep.subr.bf16.mxu0 0
    %2022 = vmatpush1.bf16.msra.mxu0 %v1688
    %2023 = vmatprep.subr.bf16.mxu0 0
    %2024 = vmatpush1.bf16.msra.mxu0 %v1689
    %2025 = vmatprep.subr.bf16.mxu0 0
    %2026 = vmatpush1.bf16.msra.mxu0 %v1690
    %2027 = vmatprep.subr.bf16.mxu0 0
    %2028 = vmatpush1.bf16.msra.mxu0 %v1691
    %2029 = vmatprep.subr.bf16.mxu0 0
    %2030 = vmatpush1.bf16.msra.mxu0 %v1692
    %2031 = vmatprep.subr.bf16.mxu0 0
    %2032 = vmatpush1.bf16.msra.mxu0 %v1693
    %2033 = vmatprep.subr.bf16.mxu0 0
    %2034 = vmatpush1.bf16.msra.mxu0 %v1694
    %2035 = vmatprep.subr.bf16.mxu0 0
    %2036 = vmatpush1.bf16.msra.mxu0 %v1695
    %2037 = vmatprep.subr.bf16.mxu0 0
    %2038 = vmatpush1.bf16.msra.mxu0 %v1696
    %2039 = vmatprep.subr.bf16.mxu0 0
    %2040 = vmatpush1.bf16.msra.mxu0 %v1697
    %2041 = vmatprep.subr.bf16.mxu0 0
    %2042 = vmatpush1.bf16.msra.mxu0 %v1698
    %2043 = vmatprep.mubr.bf16.mxu0 %v1114
    %2044 = vmatmul.mubr.bf16.gmra.mrb[0].mxu0 %v1113
    %v2045 = vpop.f32.mrb[0].mxu0
    %v2046 = vadd.f32 %v2006, %v2045
    %v2047 = vpop.f32.mrb[0].mxu0
    %v2048 = vpop.f32.mrb[0].mxu0
    %v2049 = vpop.f32.mrb[0].mxu0
    %2050 = vdwg.mxu0
    %2051 = vmatprep.subr.bf16.mxu0 0
    %2052 = vmatpush1.bf16.msra.mxu0 %v1699
    %2053 = vmatprep.subr.bf16.mxu0 0
    %2054 = vmatpush1.bf16.msra.mxu0 %v1700
    %2055 = vmatprep.subr.bf16.mxu0 0
    %2056 = vmatpush1.bf16.msra.mxu0 %v1701
    %2057 = vmatprep.subr.bf16.mxu0 0
    %2058 = vmatpush1.bf16.msra.mxu0 %v1702
    %2059 = vmatprep.subr.bf16.mxu0 0
    %2060 = vmatpush1.bf16.msra.mxu0 %v1703
    %2061 = vmatprep.subr.bf16.mxu0 0
    %2062 = vmatpush1.bf16.msra.mxu0 %v1704
    %2063 = vmatprep.subr.bf16.mxu0 0
    %2064 = vmatpush1.bf16.msra.mxu0 %v1705
    %2065 = vmatprep.subr.bf16.mxu0 0
    %2066 = vmatpush1.bf16.msra.mxu0 %v1706
    %2067 = vmatprep.subr.bf16.mxu0 0
    %2068 = vmatpush1.bf16.msra.mxu0 %v1707
    %2069 = vmatprep.subr.bf16.mxu0 0
    %2070 = vmatpush1.bf16.msra.mxu0 %v1708
    %2071 = vmatprep.subr.bf16.mxu0 0
    %2072 = vmatpush1.bf16.msra.mxu0 %v1709
    %2073 = vmatprep.subr.bf16.mxu0 0
    %2074 = vmatpush1.bf16.msra.mxu0 %v1710
    %2075 = vmatprep.subr.bf16.mxu0 0
    %2076 = vmatpush1.bf16.msra.mxu0 %v1711
    %2077 = vmatprep.subr.bf16.mxu0 0
    %2078 = vmatpush1.bf16.msra.mxu0 %v1712
    %2079 = vmatprep.subr.bf16.mxu0 0
    %2080 = vmatpush1.bf16.msra.mxu0 %v1713
    %2081 = vmatprep.subr.bf16.mxu0 0
    %2082 = vmatpush1.bf16.msra.mxu0 %v1714
    %2083 = vmatprep.mubr.bf16.mxu0 %v1116
    %2084 = vmatmul.mubr.bf16.gmra.mrb[0].mxu0 %v1115
    %v2085 = vpop.f32.mrb[0].mxu0
    %v2086 = vadd.f32 %v2046, %v2085
    %v2087 = vpop.f32.mrb[0].mxu0
    %v2088 = vpop.f32.mrb[0].mxu0
    %v2089 = vpop.f32.mrb[0].mxu0
    %2090 = vdwg.mxu0
    %2091 = vmatprep.subr.bf16.mxu0 0
    %2092 = vmatpush1.bf16.msra.mxu0 %v1715
    %2093 = vmatprep.subr.bf16.mxu0 0
    %2094 = vmatpush1.bf16.msra.mxu0 %v1716
    %2095 = vmatprep.subr.bf16.mxu0 0
    %2096 = vmatpush1.bf16.msra.mxu0 %v1717
    %2097 = vmatprep.subr.bf16.mxu0 0
    %2098 = vmatpush1.bf16.msra.mxu0 %v1718
    %2099 = vmatprep.subr.bf16.mxu0 0
    %2100 = vmatpush1.bf16.msra.mxu0 %v1719
    %2101 = vmatprep.subr.bf16.mxu0 0
    %2102 = vmatpush1.bf16.msra.mxu0 %v1720
    %2103 = vmatprep.subr.bf16.mxu0 0
    %2104 = vmatpush1.bf16.msra.mxu0 %v1721
    %2105 = vmatprep.subr.bf16.mxu0 0
    %2106 = vmatpush1.bf16.msra.mxu0 %v1722
    %2107 = vmatprep.subr.bf16.mxu0 0
    %2108 = vmatpush1.bf16.msra.mxu0 %v1723
    %2109 = vmatprep.subr.bf16.mxu0 0
    %2110 = vmatpush1.bf16.msra.mxu0 %v1724
    %2111 = vmatprep.subr.bf16.mxu0 0
    %2112 = vmatpush1.bf16.msra.mxu0 %v1725
    %2113 = vmatprep.subr.bf16.mxu0 0
    %2114 = vmatpush1.bf16.msra.mxu0 %v1726
    %2115 = vmatprep.subr.bf16.mxu0 0
    %2116 = vmatpush1.bf16.msra.mxu0 %v1727
    %2117 = vmatprep.subr.bf16.mxu0 0
    %2118 = vmatpush1.bf16.msra.mxu0 %v1728
    %2119 = vmatprep.subr.bf16.mxu0 0
    %2120 = vmatpush1.bf16.msra.mxu0 %v1729
    %2121 = vmatprep.subr.bf16.mxu0 0
    %2122 = vmatpush1.bf16.msra.mxu0 %v1730
    %2123 = vmatprep.mubr.bf16.mxu0 %v1118
    %2124 = vmatmul.mubr.bf16.gmra.mrb[0].mxu0 %v1117
    %v2125 = vpop.f32.mrb[0].mxu0
    %v2126 = vadd.f32 %v2086, %v2125
    %v2127 = vpop.f32.mrb[0].mxu0
    %v2128 = vpop.f32.mrb[0].mxu0
    %v2129 = vpop.f32.mrb[0].mxu0
    %2130 = vdwg.mxu0
    %2131 = vmatprep.subr.bf16.mxu0 0
    %2132 = vmatpush1.bf16.msra.mxu0 %v1731
    %2133 = vmatprep.subr.bf16.mxu0 0
    %2134 = vmatpush1.bf16.msra.mxu0 %v1732
    %2135 = vmatprep.subr.bf16.mxu0 0
    %2136 = vmatpush1.bf16.msra.mxu0 %v1733
    %2137 = vmatprep.subr.bf16.mxu0 0
    %2138 = vmatpush1.bf16.msra.mxu0 %v1734
    %2139 = vmatprep.subr.bf16.mxu0 0
    %2140 = vmatpush1.bf16.msra.mxu0 %v1735
    %2141 = vmatprep.subr.bf16.mxu0 0
    %2142 = vmatpush1.bf16.msra.mxu0 %v1736
    %2143 = vmatprep.subr.bf16.mxu0 0
    %2144 = vmatpush1.bf16.msra.mxu0 %v1737
    %2145 = vmatprep.subr.bf16.mxu0 0
    %2146 = vmatpush1.bf16.msra.mxu0 %v1738
    %2147 = vmatprep.subr.bf16.mxu0 0
    %2148 = vmatpush1.bf16.msra.mxu0 %v1739
    %2149 = vmatprep.subr.bf16.mxu0 0
    %2150 = vmatpush1.bf16.msra.mxu0 %v1740
    %2151 = vmatprep.subr.bf16.mxu0 0
    %2152 = vmatpush1.bf16.msra.mxu0 %v1741
    %2153 = vmatprep.subr.bf16.mxu0 0
    %2154 = vmatpush1.bf16.msra.mxu0 %v1742
    %2155 = vmatprep.subr.bf16.mxu0 0
    %2156 = vmatpush1.bf16.msra.mxu0 %v1743
    %2157 = vmatprep.subr.bf16.mxu0 0
    %2158 = vmatpush1.bf16.msra.mxu0 %v1744
    %2159 = vmatprep.subr.bf16.mxu0 0
    %2160 = vmatpush1.bf16.msra.mxu0 %v1745
    %2161 = vmatprep.subr.bf16.mxu0 0
    %2162 = vmatpush1.bf16.msra.mxu0 %v1746
    %2163 = vmatprep.mubr.bf16.mxu0 %v1120
    %2164 = vmatmul.mubr.bf16.gmra.mrb[0].mxu0 %v1119
    %v2165 = vpop.f32.mrb[0].mxu0
    %v2166 = vadd.f32 %v2126, %v2165
    %v2167 = vpop.f32.mrb[0].mxu0
    %v2168 = vpop.f32.mrb[0].mxu0
    %v2169 = vpop.f32.mrb[0].mxu0
    %2170 = vdwg.mxu0
    %2171 = vmatprep.subr.bf16.mxu0 0
    %2172 = vmatpush1.bf16.msra.mxu0 %v1747
    %2173 = vmatprep.subr.bf16.mxu0 0
    %2174 = vmatpush1.bf16.msra.mxu0 %v1748
    %2175 = vmatprep.subr.bf16.mxu0 0
    %2176 = vmatpush1.bf16.msra.mxu0 %v1749
    %2177 = vmatprep.subr.bf16.mxu0 0
    %2178 = vmatpush1.bf16.msra.mxu0 %v1750
    %2179 = vmatprep.subr.bf16.mxu0 0
    %2180 = vmatpush1.bf16.msra.mxu0 %v1751
    %2181 = vmatprep.subr.bf16.mxu0 0
    %2182 = vmatpush1.bf16.msra.mxu0 %v1752
    %2183 = vmatprep.subr.bf16.mxu0 0
    %2184 = vmatpush1.bf16.msra.mxu0 %v1753
    %2185 = vmatprep.subr.bf16.mxu0 0
    %2186 = vmatpush1.bf16.msra.mxu0 %v1754
    %2187 = vmatprep.subr.bf16.mxu0 0
    %2188 = vmatpush1.bf16.msra.mxu0 %v1755
    %2189 = vmatprep.subr.bf16.mxu0 0
    %2190 = vmatpush1.bf16.msra.mxu0 %v1756
    %2191 = vmatprep.subr.bf16.mxu0 0
    %2192 = vmatpush1.bf16.msra.mxu0 %v1757
    %2193 = vmatprep.subr.bf16.mxu0 0
    %2194 = vmatpush1.bf16.msra.mxu0 %v1758
    %2195 = vmatprep.subr.bf16.mxu0 0
    %2196 = vmatpush1.bf16.msra.mxu0 %v1759
    %2197 = vmatprep.subr.bf16.mxu0 0
    %2198 = vmatpush1.bf16.msra.mxu0 %v1760
    %2199 = vmatprep.subr.bf16.mxu0 0
    %2200 = vmatpush1.bf16.msra.mxu0 %v1761
    %2201 = vmatprep.subr.bf16.mxu0 0
    %2202 = vmatpush1.bf16.msra.mxu0 %v1762
    %2203 = vmatprep.mubr.bf16.mxu0 %v1122
    %2204 = vmatmul.mubr.bf16.gmra.mrb[0].mxu0 %v1121
    %v2205 = vpop.f32.mrb[0].mxu0
    %v2206 = vadd.f32 %v2166, %v2205
    %v2207 = vpop.f32.mrb[0].mxu0
    %v2208 = vpop.f32.mrb[0].mxu0
    %v2209 = vpop.f32.mrb[0].mxu0
    %2210 = vdwg.mxu0
    %v2211 = vld [vmem:[%s6 + $0x2] sm:$0x1]
    %v2212 = vlaneseq
    %v2213 = vshrl.u32 %v2212, 7
    %v2214 = vsub.s32 0, %v2213
    %v2215 = vrot.slane %v2211, %v2214
    %v2216 = vadd.f32 %v2206, %v2215
    %v2217 = vadd.f32 %v481, %v2216
    %v2218 = vsel %vm405, %v2217, 0.0
    %2219 = vadd.xlane.f32.xlu0 %v2218
    %v2220 = vpop.xlane.xlu0 %2219
    %v2221 = vmul.f32 %v2220, %v459
    %v2222 = vsub.f32 %v2217, %v2221
    %v2223 = vmul.f32 %v2222, %v2222
    %v2224 = vsel %vm405, %v2223, 0.0
    %2225 = vadd.xlane.f32.xlu0 %v2224
    %v2226 = vpop.xlane.xlu0 %2225
    %v2227 = vmul.f32 %v2226, %v459
    %v2228 = vadd.f32 %v2227, 1e-05
    %v2229 = vrsqrt.pop %v2228
    %v2230 = vmul.f32 %v2222, %v2229
    %v2231 = vld [vmem:[%s6 + $0x5] sm:$0x1]
    %v2232 = vlaneseq
    %v2233 = vshrl.u32 %v2232, 7
    %v2234 = vsub.s32 0, %v2233
    %v2235 = vrot.slane %v2231, %v2234
    %v2236 = vmul.f32 %v2230, %v2235
    %v2237 = vld [vmem:[%s6 + $0x6] sm:$0x1]
    %v2238 = vlaneseq
    %v2239 = vshrl.u32 %v2238, 7
    %v2240 = vsub.s32 0, %v2239
    %v2241 = vrot.slane %v2237, %v2240
    %v2242 = vadd.f32 %v2236, %v2241
    %v2243 = vpack.c.bf16 %v2242, %v2242
    %v2245 = vsel %vm405, %v2243, 0
    %2247 = vmatprep.subr.bf16.mxu0 %v398
    %2248 = vmatpush1.bf16.msra.mxu0 %v397
    %2249 = vmatprep.subr.bf16.mxu0 %v400
    %2250 = vmatpush1.bf16.msra.mxu0 %v399
    %2251 = vmatprep.subr.bf16.mxu0 0
    %2252 = vmatpush1.bf16.msra.mxu0 0
    %2253 = vmatprep.subr.bf16.mxu0 0
    %2254 = vmatpush1.bf16.msra.mxu0 0
    %2255 = vmatprep.subr.bf16.mxu0 0
    %2256 = vmatpush1.bf16.msra.mxu0 0
    %2257 = vmatprep.subr.bf16.mxu0 0
    %2258 = vmatpush1.bf16.msra.mxu0 0
    %2259 = vmatprep.subr.bf16.mxu0 0
    %2260 = vmatpush1.bf16.msra.mxu0 0
    %2261 = vmatprep.subr.bf16.mxu0 0
    %2262 = vmatpush1.bf16.msra.mxu0 0
    %2263 = vmatprep.subr.bf16.mxu0 0
    %2264 = vmatpush1.bf16.msra.mxu0 0
    %2265 = vmatprep.subr.bf16.mxu0 0
    %2266 = vmatpush1.bf16.msra.mxu0 0
    %2267 = vmatprep.subr.bf16.mxu0 0
    %2268 = vmatpush1.bf16.msra.mxu0 0
    %2269 = vmatprep.subr.bf16.mxu0 0
    %2270 = vmatpush1.bf16.msra.mxu0 0
    %2271 = vmatprep.subr.bf16.mxu0 0
    %2272 = vmatpush1.bf16.msra.mxu0 0
    %2273 = vmatprep.subr.bf16.mxu0 0
    %2274 = vmatpush1.bf16.msra.mxu0 0
    %2275 = vmatprep.subr.bf16.mxu0 0
    %2276 = vmatpush1.bf16.msra.mxu0 0
    %2277 = vmatprep.subr.bf16.mxu0 0
    %2278 = vmatpush1.bf16.msra.mxu0 0
    %2279 = vmatprep.mubr.bf16.mxu0 0
    %2280 = vmatmul.mubr.bf16.gmra.mrb[0].mxu0 %v2245
    %v2281 = vpop.f32.mrb[0].mxu0
    %v2282 = vadd.f32 0.0, %v2281
    %v2283 = vpop.f32.mrb[0].mxu0
    %v2284 = vpop.f32.mrb[0].mxu0
    %v2285 = vpop.f32.mrb[0].mxu0
    %2286 = vdwg.mxu0
    %v2287 = vld [vmem:[%s6 + $0x7] sm:$0x1]
    %v2288 = vlaneseq
    %v2289 = vshrl.u32 %v2288, 7
    %v2290 = vsub.s32 0, %v2289
    %v2291 = vrot.slane %v2287, %v2290
    %2293 = vrot.lane.b32.xlu0 %v2291, 32
    %v2294 = vpop.permute.xlu0 %2293
    %v2296 = vadd.f32 %v2282, %v2294
    %2298 = vrot.lane.b32.xlu0 %v2296, 96
    %v2299 = vpop.permute.xlu0 %2298
    %v2301 = vadd.f32 %v2242, %v2299
    %v2302 = vsel %vm405, %v2301, 0.0
    %2303 = vadd.xlane.f32.xlu0 %v2302
    %v2304 = vpop.xlane.xlu0 %2303
    %v2305 = vmul.f32 %v2304, %v459
    %v2306 = vsub.f32 %v2301, %v2305
    %v2307 = vmul.f32 %v2306, %v2306
    %v2308 = vsel %vm405, %v2307, 0.0
    %2309 = vadd.xlane.f32.xlu0 %v2308
    %v2310 = vpop.xlane.xlu0 %2309
    %v2311 = vmul.f32 %v2310, %v459
    %v2312 = vadd.f32 %v2311, 1e-05
    %v2313 = vrsqrt.pop %v2312
    %v2314 = vmul.f32 %v2306, %v2313
    %v2315 = vld [vmem:[%s6 + $0x9] sm:$0x1]
    %v2316 = vlaneseq
    %v2317 = vshrl.u32 %v2316, 7
    %v2318 = vsub.s32 0, %v2317
    %v2319 = vrot.slane %v2315, %v2318
    %v2320 = vmul.f32 %v2314, %v2319
    %v2321 = vld [vmem:[%s6 + $0xa] sm:$0x1]
    %v2322 = vlaneseq
    %v2323 = vshrl.u32 %v2322, 7
    %v2324 = vsub.s32 0, %v2323
    %v2325 = vrot.slane %v2321, %v2324
    %v2326 = vadd.f32 %v2320, %v2325
    %v2327 = vpack.c.bf16 %v2326, %v2326
    %s2328 = scalar_lea.vmem [#allocation4], 256
    %v2329 = vld [vmem:[%s2328] sm:$0xff]
    %v2330 = vld [vmem:[%s2328 + $0x8] sm:$0xff]
    %v2331 = vld [vmem:[%s2328 + $0x10] sm:$0xff]
    %v2332 = vld [vmem:[%s2328 + $0x18] sm:$0xff]
    %v2333 = vld [vmem:[%s2328 + $0x20] sm:$0xff]
    %v2334 = vld [vmem:[%s2328 + $0x28] sm:$0xff]
    %v2335 = vld [vmem:[%s2328 + $0x30] sm:$0xff]
    %v2336 = vld [vmem:[%s2328 + $0x38] sm:$0xff]
    %v2337 = vld [vmem:[%s2328 + $0x40] sm:$0xff]
    %v2338 = vld [vmem:[%s2328 + $0x48] sm:$0xff]
    %v2339 = vld [vmem:[%s2328 + $0x50] sm:$0xff]
    %v2340 = vld [vmem:[%s2328 + $0x58] sm:$0xff]
    %v2341 = vld [vmem:[%s2328 + $0x60] sm:$0xff]
    %v2342 = vld [vmem:[%s2328 + $0x68] sm:$0xff]
    %v2343 = vld [vmem:[%s2328 + $0x70] sm:$0xff]
    %v2344 = vld [vmem:[%s2328 + $0x78] sm:$0xff]
    %v2345 = vld [vmem:[%s2328 + $0x80] sm:$0xff]
    %v2346 = vld [vmem:[%s2328 + $0x88] sm:$0xff]
    %v2347 = vld [vmem:[%s2328 + $0x90] sm:$0xff]
    %v2348 = vld [vmem:[%s2328 + $0x98] sm:$0xff]
    %v2349 = vld [vmem:[%s2328 + $0xa0] sm:$0xff]
    %v2350 = vld [vmem:[%s2328 + $0xa8] sm:$0xff]
    %v2351 = vld [vmem:[%s2328 + $0xb0] sm:$0xff]
    %v2352 = vld [vmem:[%s2328 + $0xb8] sm:$0xff]
    %v2353 = vld [vmem:[%s2328 + $0xc0] sm:$0xff]
    %v2354 = vld [vmem:[%s2328 + $0xc8] sm:$0xff]
    %v2355 = vld [vmem:[%s2328 + $0xd0] sm:$0xff]
    %v2356 = vld [vmem:[%s2328 + $0xd8] sm:$0xff]
    %v2357 = vld [vmem:[%s2328 + $0xe0] sm:$0xff]
    %v2358 = vld [vmem:[%s2328 + $0xe8] sm:$0xff]
    %v2359 = vld [vmem:[%s2328 + $0xf0] sm:$0xff]
    %v2360 = vld [vmem:[%s2328 + $0xf8] sm:$0xff]
    %s2361 = scalar_lea.vmem %s4, 1
    %v2362 = vld [vmem:[%s2361] ss:$4 sm:$0xff]
    %s2363 = scalar_lea.vmem %s4, 33
    %v2364 = vld [vmem:[%s2363] ss:$4 sm:$0xff]
    %v2367 = vlaneseq
    %v2368 = vshrl.u32 %v2367, 7
    %v2369 = vsub.s32 0, %v2368
    %v2370 = vrot.slane %v2362, %v2369
    %v2371 = vlaneseq
    %v2372 = vshrl.u32 %v2371, 7
    %v2373 = vsub.s32 1, %v2372
    %v2374 = vrot.slane %v2362, %v2373
    %v2375 = vlaneseq
    %v2376 = vshrl.u32 %v2375, 7
    %v2377 = vsub.s32 2, %v2376
    %v2378 = vrot.slane %v2362, %v2377
    %v2379 = vlaneseq
    %v2380 = vshrl.u32 %v2379, 7
    %v2381 = vsub.s32 3, %v2380
    %v2382 = vrot.slane %v2362, %v2381
    %v2383 = vlaneseq
    %v2384 = vshrl.u32 %v2383, 7
    %v2385 = vsub.s32 4, %v2384
    %v2386 = vrot.slane %v2362, %v2385
    %v2387 = vlaneseq
    %v2388 = vshrl.u32 %v2387, 7
    %v2389 = vsub.s32 5, %v2388
    %v2390 = vrot.slane %v2362, %v2389
    %v2391 = vlaneseq
    %v2392 = vshrl.u32 %v2391, 7
    %v2393 = vsub.s32 6, %v2392
    %v2394 = vrot.slane %v2362, %v2393
    %v2395 = vlaneseq
    %v2396 = vshrl.u32 %v2395, 7
    %v2397 = vsub.s32 7, %v2396
    %v2398 = vrot.slane %v2362, %v2397
    %v2399 = vlaneseq
    %v2400 = vshrl.u32 %v2399, 7
    %v2401 = vsub.s32 0, %v2400
    %v2402 = vrot.slane %v2364, %v2401
    %v2403 = vlaneseq
    %v2404 = vshrl.u32 %v2403, 7
    %v2405 = vsub.s32 1, %v2404
    %v2406 = vrot.slane %v2364, %v2405
    %v2407 = vlaneseq
    %v2408 = vshrl.u32 %v2407, 7
    %v2409 = vsub.s32 2, %v2408
    %v2410 = vrot.slane %v2364, %v2409
    %v2411 = vlaneseq
    %v2412 = vshrl.u32 %v2411, 7
    %v2413 = vsub.s32 3, %v2412
    %v2414 = vrot.slane %v2364, %v2413
    %v2415 = vlaneseq
    %v2416 = vshrl.u32 %v2415, 7
    %v2417 = vsub.s32 4, %v2416
    %v2418 = vrot.slane %v2364, %v2417
    %v2419 = vlaneseq
    %v2420 = vshrl.u32 %v2419, 7
    %v2421 = vsub.s32 5, %v2420
    %v2422 = vrot.slane %v2364, %v2421
    %v2423 = vlaneseq
    %v2424 = vshrl.u32 %v2423, 7
    %v2425 = vsub.s32 6, %v2424
    %v2426 = vrot.slane %v2364, %v2425
    %v2427 = vlaneseq
    %v2428 = vshrl.u32 %v2427, 7
    %v2429 = vsub.s32 7, %v2428
    %v2430 = vrot.slane %v2364, %v2429
    %v2479 = vunpack.c.l.b16 %v2329
    %v2480 = vunpack.c.h.b16 %v2329
    %v2481 = vunpack.c.l.b16 %v2330
    %v2482 = vunpack.c.h.b16 %v2330
    %v2483 = vunpack.c.l.b16 %v2331
    %v2484 = vunpack.c.h.b16 %v2331
    %v2485 = vunpack.c.l.b16 %v2332
    %v2486 = vunpack.c.h.b16 %v2332
    %v2487 = vunpack.c.l.b16 %v2333
    %v2488 = vunpack.c.h.b16 %v2333
    %v2489 = vunpack.c.l.b16 %v2334
    %v2490 = vunpack.c.h.b16 %v2334
    %v2491 = vunpack.c.l.b16 %v2335
    %v2492 = vunpack.c.h.b16 %v2335
    %v2493 = vunpack.c.l.b16 %v2336
    %v2494 = vunpack.c.h.b16 %v2336
    %v2495 = vunpack.c.l.b16 %v2337
    %v2496 = vunpack.c.h.b16 %v2337
    %v2497 = vunpack.c.l.b16 %v2338
    %v2498 = vunpack.c.h.b16 %v2338
    %v2499 = vunpack.c.l.b16 %v2339
    %v2500 = vunpack.c.h.b16 %v2339
    %v2501 = vunpack.c.l.b16 %v2340
    %v2502 = vunpack.c.h.b16 %v2340
    %v2503 = vunpack.c.l.b16 %v2341
    %v2504 = vunpack.c.h.b16 %v2341
    %v2505 = vunpack.c.l.b16 %v2342
    %v2506 = vunpack.c.h.b16 %v2342
    %v2507 = vunpack.c.l.b16 %v2343
    %v2508 = vunpack.c.h.b16 %v2343
    %v2509 = vunpack.c.l.b16 %v2344
    %v2510 = vunpack.c.h.b16 %v2344
    %v2511 = vunpack.c.l.b16 %v2345
    %v2512 = vunpack.c.h.b16 %v2345
    %v2513 = vunpack.c.l.b16 %v2346
    %v2514 = vunpack.c.h.b16 %v2346
    %v2515 = vunpack.c.l.b16 %v2347
    %v2516 = vunpack.c.h.b16 %v2347
    %v2517 = vunpack.c.l.b16 %v2348
    %v2518 = vunpack.c.h.b16 %v2348
    %v2519 = vunpack.c.l.b16 %v2349
    %v2520 = vunpack.c.h.b16 %v2349
    %v2521 = vunpack.c.l.b16 %v2350
    %v2522 = vunpack.c.h.b16 %v2350
    %v2523 = vunpack.c.l.b16 %v2351
    %v2524 = vunpack.c.h.b16 %v2351
    %v2525 = vunpack.c.l.b16 %v2352
    %v2526 = vunpack.c.h.b16 %v2352
    %v2527 = vunpack.c.l.b16 %v2353
    %v2528 = vunpack.c.h.b16 %v2353
    %v2529 = vunpack.c.l.b16 %v2354
    %v2530 = vunpack.c.h.b16 %v2354
    %v2531 = vunpack.c.l.b16 %v2355
    %v2532 = vunpack.c.h.b16 %v2355
    %v2533 = vunpack.c.l.b16 %v2356
    %v2534 = vunpack.c.h.b16 %v2356
    %v2535 = vunpack.c.l.b16 %v2357
    %v2536 = vunpack.c.h.b16 %v2357
    %v2537 = vunpack.c.l.b16 %v2358
    %v2538 = vunpack.c.h.b16 %v2358
    %v2539 = vunpack.c.l.b16 %v2359
    %v2540 = vunpack.c.h.b16 %v2359
    %v2541 = vunpack.c.l.b16 %v2360
    %v2542 = vunpack.c.h.b16 %v2360
    %v2543 = vpack.c.b16 %v2495, %v2479
    %v2544 = vpack.c.b16 %v2496, %v2480
    %v2545 = vpack.c.b16 %v2497, %v2481
    %v2546 = vpack.c.b16 %v2498, %v2482
    %v2547 = vpack.c.b16 %v2499, %v2483
    %v2548 = vpack.c.b16 %v2500, %v2484
    %v2549 = vpack.c.b16 %v2501, %v2485
    %v2550 = vpack.c.b16 %v2502, %v2486
    %v2551 = vpack.c.b16 %v2503, %v2487
    %v2552 = vpack.c.b16 %v2504, %v2488
    %v2553 = vpack.c.b16 %v2505, %v2489
    %v2554 = vpack.c.b16 %v2506, %v2490
    %v2555 = vpack.c.b16 %v2507, %v2491
    %v2556 = vpack.c.b16 %v2508, %v2492
    %v2557 = vpack.c.b16 %v2509, %v2493
    %v2558 = vpack.c.b16 %v2510, %v2494
    %v2559 = vpack.c.b16 %v2527, %v2511
    %v2560 = vpack.c.b16 %v2528, %v2512
    %v2561 = vpack.c.b16 %v2529, %v2513
    %v2562 = vpack.c.b16 %v2530, %v2514
    %v2563 = vpack.c.b16 %v2531, %v2515
    %v2564 = vpack.c.b16 %v2532, %v2516
    %v2565 = vpack.c.b16 %v2533, %v2517
    %v2566 = vpack.c.b16 %v2534, %v2518
    %v2567 = vpack.c.b16 %v2535, %v2519
    %v2568 = vpack.c.b16 %v2536, %v2520
    %v2569 = vpack.c.b16 %v2537, %v2521
    %v2570 = vpack.c.b16 %v2538, %v2522
    %v2571 = vpack.c.b16 %v2539, %v2523
    %v2572 = vpack.c.b16 %v2540, %v2524
    %v2573 = vpack.c.b16 %v2541, %v2525
    %v2574 = vpack.c.b16 %v2542, %v2526
    %v2608 = vsel %vm405, %v2327, 0
    %2610 = vmatprep.subr.bf16.mxu0 %v2544
    %2611 = vmatpush1.bf16.msra.mxu0 %v2543
    %2612 = vmatprep.subr.bf16.mxu0 %v2560
    %2613 = vmatpush1.bf16.msra.mxu0 %v2559
    %2614 = vmatprep.subr.bf16.mxu0 0
    %2615 = vmatpush1.bf16.msra.mxu0 0
    %2616 = vmatprep.subr.bf16.mxu0 0
    %2617 = vmatpush1.bf16.msra.mxu0 0
    %2618 = vmatprep.subr.bf16.mxu0 0
    %2619 = vmatpush1.bf16.msra.mxu0 0
    %2620 = vmatprep.subr.bf16.mxu0 0
    %2621 = vmatpush1.bf16.msra.mxu0 0
    %2622 = vmatprep.subr.bf16.mxu0 0
    %2623 = vmatpush1.bf16.msra.mxu0 0
    %2624 = vmatprep.subr.bf16.mxu0 0
    %2625 = vmatpush1.bf16.msra.mxu0 0
    %2626 = vmatprep.subr.bf16.mxu0 0
    %2627 = vmatpush1.bf16.msra.mxu0 0
    %2628 = vmatprep.subr.bf16.mxu0 0
    %2629 = vmatpush1.bf16.msra.mxu0 0
    %2630 = vmatprep.subr.bf16.mxu0 0
    %2631 = vmatpush1.bf16.msra.mxu0 0
    %2632 = vmatprep.subr.bf16.mxu0 0
    %2633 = vmatpush1.bf16.msra.mxu0 0
    %2634 = vmatprep.subr.bf16.mxu0 0
    %2635 = vmatpush1.bf16.msra.mxu0 0
    %2636 = vmatprep.subr.bf16.mxu0 0
    %2637 = vmatpush1.bf16.msra.mxu0 0
    %2638 = vmatprep.subr.bf16.mxu0 0
    %2639 = vmatpush1.bf16.msra.mxu0 0
    %2640 = vmatprep.subr.bf16.mxu0 0
    %2641 = vmatpush1.bf16.msra.mxu0 0
    %2642 = vmatprep.mubr.bf16.mxu0 0
    %2643 = vmatmul.mubr.bf16.gmra.mrb[0].mxu0 %v2608
    %v2644 = vpop.f32.mrb[0].mxu0
    %v2645 = vadd.f32 %v2370, %v2644
    %v2646 = vpop.f32.mrb[0].mxu0
    %v2647 = vadd.f32 %v2374, %v2646
    %v2648 = vpop.f32.mrb[0].mxu0
    %v2649 = vpop.f32.mrb[0].mxu0
    %2650 = vdwg.mxu0
    %2651 = vmatprep.subr.bf16.mxu0 %v2546
    %2652 = vmatpush1.bf16.msra.mxu0 %v2545
    %2653 = vmatprep.subr.bf16.mxu0 %v2562
    %2654 = vmatpush1.bf16.msra.mxu0 %v2561
    %2655 = vmatprep.subr.bf16.mxu0 0
    %2656 = vmatpush1.bf16.msra.mxu0 0
    %2657 = vmatprep.subr.bf16.mxu0 0
    %2658 = vmatpush1.bf16.msra.mxu0 0
    %2659 = vmatprep.subr.bf16.mxu0 0
    %2660 = vmatpush1.bf16.msra.mxu0 0
    %2661 = vmatprep.subr.bf16.mxu0 0
    %2662 = vmatpush1.bf16.msra.mxu0 0
    %2663 = vmatprep.subr.bf16.mxu0 0
    %2664 = vmatpush1.bf16.msra.mxu0 0
    %2665 = vmatprep.subr.bf16.mxu0 0
    %2666 = vmatpush1.bf16.msra.mxu0 0
    %2667 = vmatprep.subr.bf16.mxu0 0
    %2668 = vmatpush1.bf16.msra.mxu0 0
    %2669 = vmatprep.subr.bf16.mxu0 0
    %2670 = vmatpush1.bf16.msra.mxu0 0
    %2671 = vmatprep.subr.bf16.mxu0 0
    %2672 = vmatpush1.bf16.msra.mxu0 0
    %2673 = vmatprep.subr.bf16.mxu0 0
    %2674 = vmatpush1.bf16.msra.mxu0 0
    %2675 = vmatprep.subr.bf16.mxu0 0
    %2676 = vmatpush1.bf16.msra.mxu0 0
    %2677 = vmatprep.subr.bf16.mxu0 0
    %2678 = vmatpush1.bf16.msra.mxu0 0
    %2679 = vmatprep.subr.bf16.mxu0 0
    %2680 = vmatpush1.bf16.msra.mxu0 0
    %2681 = vmatprep.subr.bf16.mxu0 0
    %2682 = vmatpush1.bf16.msra.mxu0 0
    %2683 = vmatprep.mubr.bf16.mxu0 0
    %2684 = vmatmul.mubr.bf16.gmra.mrb[0].mxu0 %v2608
    %v2685 = vpop.f32.mrb[0].mxu0
    %v2686 = vadd.f32 %v2378, %v2685
    %v2687 = vpop.f32.mrb[0].mxu0
    %v2688 = vadd.f32 %v2382, %v2687
    %v2689 = vpop.f32.mrb[0].mxu0
    %v2690 = vpop.f32.mrb[0].mxu0
    %2691 = vdwg.mxu0
    %2692 = vmatprep.subr.bf16.mxu0 %v2548
    %2693 = vmatpush1.bf16.msra.mxu0 %v2547
    %2694 = vmatprep.subr.bf16.mxu0 %v2564
    %2695 = vmatpush1.bf16.msra.mxu0 %v2563
    %2696 = vmatprep.subr.bf16.mxu0 0
    %2697 = vmatpush1.bf16.msra.mxu0 0
    %2698 = vmatprep.subr.bf16.mxu0 0
    %2699 = vmatpush1.bf16.msra.mxu0 0
    %2700 = vmatprep.subr.bf16.mxu0 0
    %2701 = vmatpush1.bf16.msra.mxu0 0
    %2702 = vmatprep.subr.bf16.mxu0 0
    %2703 = vmatpush1.bf16.msra.mxu0 0
    %2704 = vmatprep.subr.bf16.mxu0 0
    %2705 = vmatpush1.bf16.msra.mxu0 0
    %2706 = vmatprep.subr.bf16.mxu0 0
    %2707 = vmatpush1.bf16.msra.mxu0 0
    %2708 = vmatprep.subr.bf16.mxu0 0
    %2709 = vmatpush1.bf16.msra.mxu0 0
    %2710 = vmatprep.subr.bf16.mxu0 0
    %2711 = vmatpush1.bf16.msra.mxu0 0
    %2712 = vmatprep.subr.bf16.mxu0 0
    %2713 = vmatpush1.bf16.msra.mxu0 0
    %2714 = vmatprep.subr.bf16.mxu0 0
    %2715 = vmatpush1.bf16.msra.mxu0 0
    %2716 = vmatprep.subr.bf16.mxu0 0
    %2717 = vmatpush1.bf16.msra.mxu0 0
    %2718 = vmatprep.subr.bf16.mxu0 0
    %2719 = vmatpush1.bf16.msra.mxu0 0
    %2720 = vmatprep.subr.bf16.mxu0 0
    %2721 = vmatpush1.bf16.msra.mxu0 0
    %2722 = vmatprep.subr.bf16.mxu0 0
    %2723 = vmatpush1.bf16.msra.mxu0 0
    %2724 = vmatprep.mubr.bf16.mxu0 0
    %2725 = vmatmul.mubr.bf16.gmra.mrb[0].mxu0 %v2608
    %v2726 = vpop.f32.mrb[0].mxu0
    %v2727 = vadd.f32 %v2386, %v2726
    %v2728 = vpop.f32.mrb[0].mxu0
    %v2729 = vadd.f32 %v2390, %v2728
    %v2730 = vpop.f32.mrb[0].mxu0
    %v2731 = vpop.f32.mrb[0].mxu0
    %2732 = vdwg.mxu0
    %2733 = vmatprep.subr.bf16.mxu0 %v2550
    %2734 = vmatpush1.bf16.msra.mxu0 %v2549
    %2735 = vmatprep.subr.bf16.mxu0 %v2566
    %2736 = vmatpush1.bf16.msra.mxu0 %v2565
    %2737 = vmatprep.subr.bf16.mxu0 0
    %2738 = vmatpush1.bf16.msra.mxu0 0
    %2739 = vmatprep.subr.bf16.mxu0 0
    %2740 = vmatpush1.bf16.msra.mxu0 0
    %2741 = vmatprep.subr.bf16.mxu0 0
    %2742 = vmatpush1.bf16.msra.mxu0 0
    %2743 = vmatprep.subr.bf16.mxu0 0
    %2744 = vmatpush1.bf16.msra.mxu0 0
    %2745 = vmatprep.subr.bf16.mxu0 0
    %2746 = vmatpush1.bf16.msra.mxu0 0
    %2747 = vmatprep.subr.bf16.mxu0 0
    %2748 = vmatpush1.bf16.msra.mxu0 0
    %2749 = vmatprep.subr.bf16.mxu0 0
    %2750 = vmatpush1.bf16.msra.mxu0 0
    %2751 = vmatprep.subr.bf16.mxu0 0
    %2752 = vmatpush1.bf16.msra.mxu0 0
    %2753 = vmatprep.subr.bf16.mxu0 0
    %2754 = vmatpush1.bf16.msra.mxu0 0
    %2755 = vmatprep.subr.bf16.mxu0 0
    %2756 = vmatpush1.bf16.msra.mxu0 0
    %2757 = vmatprep.subr.bf16.mxu0 0
    %2758 = vmatpush1.bf16.msra.mxu0 0
    %2759 = vmatprep.subr.bf16.mxu0 0
    %2760 = vmatpush1.bf16.msra.mxu0 0
    %2761 = vmatprep.subr.bf16.mxu0 0
    %2762 = vmatpush1.bf16.msra.mxu0 0
    %2763 = vmatprep.subr.bf16.mxu0 0
    %2764 = vmatpush1.bf16.msra.mxu0 0
    %2765 = vmatprep.mubr.bf16.mxu0 0
    %2766 = vmatmul.mubr.bf16.gmra.mrb[0].mxu0 %v2608
    %v2767 = vpop.f32.mrb[0].mxu0
    %v2768 = vadd.f32 %v2394, %v2767
    %v2769 = vpop.f32.mrb[0].mxu0
    %v2770 = vadd.f32 %v2398, %v2769
    %v2771 = vpop.f32.mrb[0].mxu0
    %v2772 = vpop.f32.mrb[0].mxu0
    %2773 = vdwg.mxu0
    %2774 = vmatprep.subr.bf16.mxu0 %v2552
    %2775 = vmatpush1.bf16.msra.mxu0 %v2551
    %2776 = vmatprep.subr.bf16.mxu0 %v2568
    %2777 = vmatpush1.bf16.msra.mxu0 %v2567
    %2778 = vmatprep.subr.bf16.mxu0 0
    %2779 = vmatpush1.bf16.msra.mxu0 0
    %2780 = vmatprep.subr.bf16.mxu0 0
    %2781 = vmatpush1.bf16.msra.mxu0 0
    %2782 = vmatprep.subr.bf16.mxu0 0
    %2783 = vmatpush1.bf16.msra.mxu0 0
    %2784 = vmatprep.subr.bf16.mxu0 0
    %2785 = vmatpush1.bf16.msra.mxu0 0
    %2786 = vmatprep.subr.bf16.mxu0 0
    %2787 = vmatpush1.bf16.msra.mxu0 0
    %2788 = vmatprep.subr.bf16.mxu0 0
    %2789 = vmatpush1.bf16.msra.mxu0 0
    %2790 = vmatprep.subr.bf16.mxu0 0
    %2791 = vmatpush1.bf16.msra.mxu0 0
    %2792 = vmatprep.subr.bf16.mxu0 0
    %2793 = vmatpush1.bf16.msra.mxu0 0
    %2794 = vmatprep.subr.bf16.mxu0 0
    %2795 = vmatpush1.bf16.msra.mxu0 0
    %2796 = vmatprep.subr.bf16.mxu0 0
    %2797 = vmatpush1.bf16.msra.mxu0 0
    %2798 = vmatprep.subr.bf16.mxu0 0
    %2799 = vmatpush1.bf16.msra.mxu0 0
    %2800 = vmatprep.subr.bf16.mxu0 0
    %2801 = vmatpush1.bf16.msra.mxu0 0
    %2802 = vmatprep.subr.bf16.mxu0 0
    %2803 = vmatpush1.bf16.msra.mxu0 0
    %2804 = vmatprep.subr.bf16.mxu0 0
    %2805 = vmatpush1.bf16.msra.mxu0 0
    %2806 = vmatprep.mubr.bf16.mxu0 0
    %2807 = vmatmul.mubr.bf16.gmra.mrb[0].mxu0 %v2608
    %v2808 = vpop.f32.mrb[0].mxu0
    %v2809 = vadd.f32 %v2402, %v2808
    %v2810 = vpop.f32.mrb[0].mxu0
    %v2811 = vadd.f32 %v2406, %v2810
    %v2812 = vpop.f32.mrb[0].mxu0
    %v2813 = vpop.f32.mrb[0].mxu0
    %2814 = vdwg.mxu0
    %2815 = vmatprep.subr.bf16.mxu0 %v2554
    %2816 = vmatpush1.bf16.msra.mxu0 %v2553
    %2817 = vmatprep.subr.bf16.mxu0 %v2570
    %2818 = vmatpush1.bf16.msra.mxu0 %v2569
    %2819 = vmatprep.subr.bf16.mxu0 0
    %2820 = vmatpush1.bf16.msra.mxu0 0
    %2821 = vmatprep.subr.bf16.mxu0 0
    %2822 = vmatpush1.bf16.msra.mxu0 0
    %2823 = vmatprep.subr.bf16.mxu0 0
    %2824 = vmatpush1.bf16.msra.mxu0 0
    %2825 = vmatprep.subr.bf16.mxu0 0
    %2826 = vmatpush1.bf16.msra.mxu0 0
    %2827 = vmatprep.subr.bf16.mxu0 0
    %2828 = vmatpush1.bf16.msra.mxu0 0
    %2829 = vmatprep.subr.bf16.mxu0 0
    %2830 = vmatpush1.bf16.msra.mxu0 0
    %2831 = vmatprep.subr.bf16.mxu0 0
    %2832 = vmatpush1.bf16.msra.mxu0 0
    %2833 = vmatprep.subr.bf16.mxu0 0
    %2834 = vmatpush1.bf16.msra.mxu0 0
    %2835 = vmatprep.subr.bf16.mxu0 0
    %2836 = vmatpush1.bf16.msra.mxu0 0
    %2837 = vmatprep.subr.bf16.mxu0 0
    %2838 = vmatpush1.bf16.msra.mxu0 0
    %2839 = vmatprep.subr.bf16.mxu0 0
    %2840 = vmatpush1.bf16.msra.mxu0 0
    %2841 = vmatprep.subr.bf16.mxu0 0
    %2842 = vmatpush1.bf16.msra.mxu0 0
    %2843 = vmatprep.subr.bf16.mxu0 0
    %2844 = vmatpush1.bf16.msra.mxu0 0
    %2845 = vmatprep.subr.bf16.mxu0 0
    %2846 = vmatpush1.bf16.msra.mxu0 0
    %2847 = vmatprep.mubr.bf16.mxu0 0
    %2848 = vmatmul.mubr.bf16.gmra.mrb[0].mxu0 %v2608
    %v2849 = vpop.f32.mrb[0].mxu0
    %v2850 = vadd.f32 %v2410, %v2849
    %v2851 = vpop.f32.mrb[0].mxu0
    %v2852 = vadd.f32 %v2414, %v2851
    %v2853 = vpop.f32.mrb[0].mxu0
    %v2854 = vpop.f32.mrb[0].mxu0
    %2855 = vdwg.mxu0
    %2856 = vmatprep.subr.bf16.mxu0 %v2556
    %2857 = vmatpush1.bf16.msra.mxu0 %v2555
    %2858 = vmatprep.subr.bf16.mxu0 %v2572
    %2859 = vmatpush1.bf16.msra.mxu0 %v2571
    %2860 = vmatprep.subr.bf16.mxu0 0
    %2861 = vmatpush1.bf16.msra.mxu0 0
    %2862 = vmatprep.subr.bf16.mxu0 0
    %2863 = vmatpush1.bf16.msra.mxu0 0
    %2864 = vmatprep.subr.bf16.mxu0 0
    %2865 = vmatpush1.bf16.msra.mxu0 0
    %2866 = vmatprep.subr.bf16.mxu0 0
    %2867 = vmatpush1.bf16.msra.mxu0 0
    %2868 = vmatprep.subr.bf16.mxu0 0
    %2869 = vmatpush1.bf16.msra.mxu0 0
    %2870 = vmatprep.subr.bf16.mxu0 0
    %2871 = vmatpush1.bf16.msra.mxu0 0
    %2872 = vmatprep.subr.bf16.mxu0 0
    %2873 = vmatpush1.bf16.msra.mxu0 0
    %2874 = vmatprep.subr.bf16.mxu0 0
    %2875 = vmatpush1.bf16.msra.mxu0 0
    %2876 = vmatprep.subr.bf16.mxu0 0
    %2877 = vmatpush1.bf16.msra.mxu0 0
    %2878 = vmatprep.subr.bf16.mxu0 0
    %2879 = vmatpush1.bf16.msra.mxu0 0
    %2880 = vmatprep.subr.bf16.mxu0 0
    %2881 = vmatpush1.bf16.msra.mxu0 0
    %2882 = vmatprep.subr.bf16.mxu0 0
    %2883 = vmatpush1.bf16.msra.mxu0 0
    %2884 = vmatprep.subr.bf16.mxu0 0
    %2885 = vmatpush1.bf16.msra.mxu0 0
    %2886 = vmatprep.subr.bf16.mxu0 0
    %2887 = vmatpush1.bf16.msra.mxu0 0
    %2888 = vmatprep.mubr.bf16.mxu0 0
    %2889 = vmatmul.mubr.bf16.gmra.mrb[0].mxu0 %v2608
    %v2890 = vpop.f32.mrb[0].mxu0
    %v2891 = vadd.f32 %v2418, %v2890
    %v2892 = vpop.f32.mrb[0].mxu0
    %v2893 = vadd.f32 %v2422, %v2892
    %v2894 = vpop.f32.mrb[0].mxu0
    %v2895 = vpop.f32.mrb[0].mxu0
    %2896 = vdwg.mxu0
    %2897 = vmatprep.subr.bf16.mxu0 %v2558
    %2898 = vmatpush1.bf16.msra.mxu0 %v2557
    %2899 = vmatprep.subr.bf16.mxu0 %v2574
    %2900 = vmatpush1.bf16.msra.mxu0 %v2573
    %2901 = vmatprep.subr.bf16.mxu0 0
    %2902 = vmatpush1.bf16.msra.mxu0 0
    %2903 = vmatprep.subr.bf16.mxu0 0
    %2904 = vmatpush1.bf16.msra.mxu0 0
    %2905 = vmatprep.subr.bf16.mxu0 0
    %2906 = vmatpush1.bf16.msra.mxu0 0
    %2907 = vmatprep.subr.bf16.mxu0 0
    %2908 = vmatpush1.bf16.msra.mxu0 0
    %2909 = vmatprep.subr.bf16.mxu0 0
    %2910 = vmatpush1.bf16.msra.mxu0 0
    %2911 = vmatprep.subr.bf16.mxu0 0
    %2912 = vmatpush1.bf16.msra.mxu0 0
    %2913 = vmatprep.subr.bf16.mxu0 0
    %2914 = vmatpush1.bf16.msra.mxu0 0
    %2915 = vmatprep.subr.bf16.mxu0 0
    %2916 = vmatpush1.bf16.msra.mxu0 0
    %2917 = vmatprep.subr.bf16.mxu0 0
    %2918 = vmatpush1.bf16.msra.mxu0 0
    %2919 = vmatprep.subr.bf16.mxu0 0
    %2920 = vmatpush1.bf16.msra.mxu0 0
    %2921 = vmatprep.subr.bf16.mxu0 0
    %2922 = vmatpush1.bf16.msra.mxu0 0
    %2923 = vmatprep.subr.bf16.mxu0 0
    %2924 = vmatpush1.bf16.msra.mxu0 0
    %2925 = vmatprep.subr.bf16.mxu0 0
    %2926 = vmatpush1.bf16.msra.mxu0 0
    %2927 = vmatprep.subr.bf16.mxu0 0
    %2928 = vmatpush1.bf16.msra.mxu0 0
    %2929 = vmatprep.mubr.bf16.mxu0 0
    %2930 = vmatmul.mubr.bf16.gmra.mrb[0].mxu0 %v2608
    %v2931 = vpop.f32.mrb[0].mxu0
    %v2932 = vadd.f32 %v2426, %v2931
    %v2933 = vpop.f32.mrb[0].mxu0
    %v2934 = vadd.f32 %v2430, %v2933
    %v2935 = vpop.f32.mrb[0].mxu0
    %v2936 = vpop.f32.mrb[0].mxu0
    %2937 = vdwg.mxu0
    %v2938 = vmax.f32 %v2645, 0.0
    %v2939 = vmax.f32 %v2647, 0.0
    %v2940 = vmax.f32 %v2686, 0.0
    %v2941 = vmax.f32 %v2688, 0.0
    %v2942 = vmax.f32 %v2727, 0.0
    %v2943 = vmax.f32 %v2729, 0.0
    %v2944 = vmax.f32 %v2768, 0.0
    %v2945 = vmax.f32 %v2770, 0.0
    %v2946 = vmax.f32 %v2809, 0.0
    %v2947 = vmax.f32 %v2811, 0.0
    %v2948 = vmax.f32 %v2850, 0.0
    %v2949 = vmax.f32 %v2852, 0.0
    %v2950 = vmax.f32 %v2891, 0.0
    %v2951 = vmax.f32 %v2893, 0.0
    %v2952 = vmax.f32 %v2932, 0.0
    %v2953 = vmax.f32 %v2934, 0.0
    %v2954 = vpack.c.bf16 %v2938, %v2938
    %v2955 = vpack.c.bf16 %v2939, %v2939
    %v2956 = vpack.c.bf16 %v2940, %v2940
    %v2957 = vpack.c.bf16 %v2941, %v2941
    %v2958 = vpack.c.bf16 %v2942, %v2942
    %v2959 = vpack.c.bf16 %v2943, %v2943
    %v2960 = vpack.c.bf16 %v2944, %v2944
    %v2961 = vpack.c.bf16 %v2945, %v2945
    %v2962 = vpack.c.bf16 %v2946, %v2946
    %v2963 = vpack.c.bf16 %v2947, %v2947
    %v2964 = vpack.c.bf16 %v2948, %v2948
    %v2965 = vpack.c.bf16 %v2949, %v2949
    %v2966 = vpack.c.bf16 %v2950, %v2950
    %v2967 = vpack.c.bf16 %v2951, %v2951
    %v2968 = vpack.c.bf16 %v2952, %v2952
    %v2969 = vpack.c.bf16 %v2953, %v2953
    %2970 = vmatprep.subr.bf16.mxu0 0
    %2971 = vmatpush1.bf16.msra.mxu0 %v1635
    %2972 = vmatprep.subr.bf16.mxu0 0
    %2973 = vmatpush1.bf16.msra.mxu0 %v1636
    %2974 = vmatprep.subr.bf16.mxu0 0
    %2975 = vmatpush1.bf16.msra.mxu0 %v1637
    %2976 = vmatprep.subr.bf16.mxu0 0
    %2977 = vmatpush1.bf16.msra.mxu0 %v1638
    %2978 = vmatprep.subr.bf16.mxu0 0
    %2979 = vmatpush1.bf16.msra.mxu0 %v1639
    %2980 = vmatprep.subr.bf16.mxu0 0
    %2981 = vmatpush1.bf16.msra.mxu0 %v1640
    %2982 = vmatprep.subr.bf16.mxu0 0
    %2983 = vmatpush1.bf16.msra.mxu0 %v1641
    %2984 = vmatprep.subr.bf16.mxu0 0
    %2985 = vmatpush1.bf16.msra.mxu0 %v1642
    %2986 = vmatprep.subr.bf16.mxu0 0
    %2987 = vmatpush1.bf16.msra.mxu0 %v1643
    %2988 = vmatprep.subr.bf16.mxu0 0
    %2989 = vmatpush1.bf16.msra.mxu0 %v1644
    %2990 = vmatprep.subr.bf16.mxu0 0
    %2991 = vmatpush1.bf16.msra.mxu0 %v1645
    %2992 = vmatprep.subr.bf16.mxu0 0
    %2993 = vmatpush1.bf16.msra.mxu0 %v1646
    %2994 = vmatprep.subr.bf16.mxu0 0
    %2995 = vmatpush1.bf16.msra.mxu0 %v1647
    %2996 = vmatprep.subr.bf16.mxu0 0
    %2997 = vmatpush1.bf16.msra.mxu0 %v1648
    %2998 = vmatprep.subr.bf16.mxu0 0
    %2999 = vmatpush1.bf16.msra.mxu0 %v1649
    %3000 = vmatprep.subr.bf16.mxu0 0
    %3001 = vmatpush1.bf16.msra.mxu0 %v1650
    %3002 = vmatprep.mubr.bf16.mxu0 %v2955
    %3003 = vmatmul.mubr.bf16.gmra.mrb[0].mxu0 %v2954
    %v3004 = vpop.f32.mrb[0].mxu0
    %v3005 = vadd.f32 0.0, %v3004
    %v3006 = vpop.f32.mrb[0].mxu0
    %v3007 = vpop.f32.mrb[0].mxu0
    %v3008 = vpop.f32.mrb[0].mxu0
    %3009 = vdwg.mxu0
    %3010 = vmatprep.subr.bf16.mxu0 0
    %3011 = vmatpush1.bf16.msra.mxu0 %v1651
    %3012 = vmatprep.subr.bf16.mxu0 0
    %3013 = vmatpush1.bf16.msra.mxu0 %v1652
    %3014 = vmatprep.subr.bf16.mxu0 0
    %3015 = vmatpush1.bf16.msra.mxu0 %v1653
    %3016 = vmatprep.subr.bf16.mxu0 0
    %3017 = vmatpush1.bf16.msra.mxu0 %v1654
    %3018 = vmatprep.subr.bf16.mxu0 0
    %3019 = vmatpush1.bf16.msra.mxu0 %v1655
    %3020 = vmatprep.subr.bf16.mxu0 0
    %3021 = vmatpush1.bf16.msra.mxu0 %v1656
    %3022 = vmatprep.subr.bf16.mxu0 0
    %3023 = vmatpush1.bf16.msra.mxu0 %v1657
    %3024 = vmatprep.subr.bf16.mxu0 0
    %3025 = vmatpush1.bf16.msra.mxu0 %v1658
    %3026 = vmatprep.subr.bf16.mxu0 0
    %3027 = vmatpush1.bf16.msra.mxu0 %v1659
    %3028 = vmatprep.subr.bf16.mxu0 0
    %3029 = vmatpush1.bf16.msra.mxu0 %v1660
    %3030 = vmatprep.subr.bf16.mxu0 0
    %3031 = vmatpush1.bf16.msra.mxu0 %v1661
    %3032 = vmatprep.subr.bf16.mxu0 0
    %3033 = vmatpush1.bf16.msra.mxu0 %v1662
    %3034 = vmatprep.subr.bf16.mxu0 0
    %3035 = vmatpush1.bf16.msra.mxu0 %v1663
    %3036 = vmatprep.subr.bf16.mxu0 0
    %3037 = vmatpush1.bf16.msra.mxu0 %v1664
    %3038 = vmatprep.subr.bf16.mxu0 0
    %3039 = vmatpush1.bf16.msra.mxu0 %v1665
    %3040 = vmatprep.subr.bf16.mxu0 0
    %3041 = vmatpush1.bf16.msra.mxu0 %v1666
    %3042 = vmatprep.mubr.bf16.mxu0 %v2957
    %3043 = vmatmul.mubr.bf16.gmra.mrb[0].mxu0 %v2956
    %v3044 = vpop.f32.mrb[0].mxu0
    %v3045 = vadd.f32 %v3005, %v3044
    %v3046 = vpop.f32.mrb[0].mxu0
    %v3047 = vpop.f32.mrb[0].mxu0
    %v3048 = vpop.f32.mrb[0].mxu0
    %3049 = vdwg.mxu0
    %3050 = vmatprep.subr.bf16.mxu0 0
    %3051 = vmatpush1.bf16.msra.mxu0 %v1667
    %3052 = vmatprep.subr.bf16.mxu0 0
    %3053 = vmatpush1.bf16.msra.mxu0 %v1668
    %3054 = vmatprep.subr.bf16.mxu0 0
    %3055 = vmatpush1.bf16.msra.mxu0 %v1669
    %3056 = vmatprep.subr.bf16.mxu0 0
    %3057 = vmatpush1.bf16.msra.mxu0 %v1670
    %3058 = vmatprep.subr.bf16.mxu0 0
    %3059 = vmatpush1.bf16.msra.mxu0 %v1671
    %3060 = vmatprep.subr.bf16.mxu0 0
    %3061 = vmatpush1.bf16.msra.mxu0 %v1672
    %3062 = vmatprep.subr.bf16.mxu0 0
    %3063 = vmatpush1.bf16.msra.mxu0 %v1673
    %3064 = vmatprep.subr.bf16.mxu0 0
    %3065 = vmatpush1.bf16.msra.mxu0 %v1674
    %3066 = vmatprep.subr.bf16.mxu0 0
    %3067 = vmatpush1.bf16.msra.mxu0 %v1675
    %3068 = vmatprep.subr.bf16.mxu0 0
    %3069 = vmatpush1.bf16.msra.mxu0 %v1676
    %3070 = vmatprep.subr.bf16.mxu0 0
    %3071 = vmatpush1.bf16.msra.mxu0 %v1677
    %3072 = vmatprep.subr.bf16.mxu0 0
    %3073 = vmatpush1.bf16.msra.mxu0 %v1678
    %3074 = vmatprep.subr.bf16.mxu0 0
    %3075 = vmatpush1.bf16.msra.mxu0 %v1679
    %3076 = vmatprep.subr.bf16.mxu0 0
    %3077 = vmatpush1.bf16.msra.mxu0 %v1680
    %3078 = vmatprep.subr.bf16.mxu0 0
    %3079 = vmatpush1.bf16.msra.mxu0 %v1681
    %3080 = vmatprep.subr.bf16.mxu0 0
    %3081 = vmatpush1.bf16.msra.mxu0 %v1682
    %3082 = vmatprep.mubr.bf16.mxu0 %v2959
    %3083 = vmatmul.mubr.bf16.gmra.mrb[0].mxu0 %v2958
    %v3084 = vpop.f32.mrb[0].mxu0
    %v3085 = vadd.f32 %v3045, %v3084
    %v3086 = vpop.f32.mrb[0].mxu0
    %v3087 = vpop.f32.mrb[0].mxu0
    %v3088 = vpop.f32.mrb[0].mxu0
    %3089 = vdwg.mxu0
    %3090 = vmatprep.subr.bf16.mxu0 0
    %3091 = vmatpush1.bf16.msra.mxu0 %v1683
    %3092 = vmatprep.subr.bf16.mxu0 0
    %3093 = vmatpush1.bf16.msra.mxu0 %v1684
    %3094 = vmatprep.subr.bf16.mxu0 0
    %3095 = vmatpush1.bf16.msra.mxu0 %v1685
    %3096 = vmatprep.subr.bf16.mxu0 0
    %3097 = vmatpush1.bf16.msra.mxu0 %v1686
    %3098 = vmatprep.subr.bf16.mxu0 0
    %3099 = vmatpush1.bf16.msra.mxu0 %v1687
    %3100 = vmatprep.subr.bf16.mxu0 0
    %3101 = vmatpush1.bf16.msra.mxu0 %v1688
    %3102 = vmatprep.subr.bf16.mxu0 0
    %3103 = vmatpush1.bf16.msra.mxu0 %v1689
    %3104 = vmatprep.subr.bf16.mxu0 0
    %3105 = vmatpush1.bf16.msra.mxu0 %v1690
    %3106 = vmatprep.subr.bf16.mxu0 0
    %3107 = vmatpush1.bf16.msra.mxu0 %v1691
    %3108 = vmatprep.subr.bf16.mxu0 0
    %3109 = vmatpush1.bf16.msra.mxu0 %v1692
    %3110 = vmatprep.subr.bf16.mxu0 0
    %3111 = vmatpush1.bf16.msra.mxu0 %v1693
    %3112 = vmatprep.subr.bf16.mxu0 0
    %3113 = vmatpush1.bf16.msra.mxu0 %v1694
    %3114 = vmatprep.subr.bf16.mxu0 0
    %3115 = vmatpush1.bf16.msra.mxu0 %v1695
    %3116 = vmatprep.subr.bf16.mxu0 0
    %3117 = vmatpush1.bf16.msra.mxu0 %v1696
    %3118 = vmatprep.subr.bf16.mxu0 0
    %3119 = vmatpush1.bf16.msra.mxu0 %v1697
    %3120 = vmatprep.subr.bf16.mxu0 0
    %3121 = vmatpush1.bf16.msra.mxu0 %v1698
    %3122 = vmatprep.mubr.bf16.mxu0 %v2961
    %3123 = vmatmul.mubr.bf16.gmra.mrb[0].mxu0 %v2960
    %v3124 = vpop.f32.mrb[0].mxu0
    %v3125 = vadd.f32 %v3085, %v3124
    %v3126 = vpop.f32.mrb[0].mxu0
    %v3127 = vpop.f32.mrb[0].mxu0
    %v3128 = vpop.f32.mrb[0].mxu0
    %3129 = vdwg.mxu0
    %3130 = vmatprep.subr.bf16.mxu0 0
    %3131 = vmatpush1.bf16.msra.mxu0 %v1699
    %3132 = vmatprep.subr.bf16.mxu0 0
    %3133 = vmatpush1.bf16.msra.mxu0 %v1700
    %3134 = vmatprep.subr.bf16.mxu0 0
    %3135 = vmatpush1.bf16.msra.mxu0 %v1701
    %3136 = vmatprep.subr.bf16.mxu0 0
    %3137 = vmatpush1.bf16.msra.mxu0 %v1702
    %3138 = vmatprep.subr.bf16.mxu0 0
    %3139 = vmatpush1.bf16.msra.mxu0 %v1703
    %3140 = vmatprep.subr.bf16.mxu0 0
    %3141 = vmatpush1.bf16.msra.mxu0 %v1704
    %3142 = vmatprep.subr.bf16.mxu0 0
    %3143 = vmatpush1.bf16.msra.mxu0 %v1705
    %3144 = vmatprep.subr.bf16.mxu0 0
    %3145 = vmatpush1.bf16.msra.mxu0 %v1706
    %3146 = vmatprep.subr.bf16.mxu0 0
    %3147 = vmatpush1.bf16.msra.mxu0 %v1707
    %3148 = vmatprep.subr.bf16.mxu0 0
    %3149 = vmatpush1.bf16.msra.mxu0 %v1708
    %3150 = vmatprep.subr.bf16.mxu0 0
    %3151 = vmatpush1.bf16.msra.mxu0 %v1709
    %3152 = vmatprep.subr.bf16.mxu0 0
    %3153 = vmatpush1.bf16.msra.mxu0 %v1710
    %3154 = vmatprep.subr.bf16.mxu0 0
    %3155 = vmatpush1.bf16.msra.mxu0 %v1711
    %3156 = vmatprep.subr.bf16.mxu0 0
    %3157 = vmatpush1.bf16.msra.mxu0 %v1712
    %3158 = vmatprep.subr.bf16.mxu0 0
    %3159 = vmatpush1.bf16.msra.mxu0 %v1713
    %3160 = vmatprep.subr.bf16.mxu0 0
    %3161 = vmatpush1.bf16.msra.mxu0 %v1714
    %3162 = vmatprep.mubr.bf16.mxu0 %v2963
    %3163 = vmatmul.mubr.bf16.gmra.mrb[0].mxu0 %v2962
    %v3164 = vpop.f32.mrb[0].mxu0
    %v3165 = vadd.f32 %v3125, %v3164
    %v3166 = vpop.f32.mrb[0].mxu0
    %v3167 = vpop.f32.mrb[0].mxu0
    %v3168 = vpop.f32.mrb[0].mxu0
    %3169 = vdwg.mxu0
    %3170 = vmatprep.subr.bf16.mxu0 0
    %3171 = vmatpush1.bf16.msra.mxu0 %v1715
    %3172 = vmatprep.subr.bf16.mxu0 0
    %3173 = vmatpush1.bf16.msra.mxu0 %v1716
    %3174 = vmatprep.subr.bf16.mxu0 0
    %3175 = vmatpush1.bf16.msra.mxu0 %v1717
    %3176 = vmatprep.subr.bf16.mxu0 0
    %3177 = vmatpush1.bf16.msra.mxu0 %v1718
    %3178 = vmatprep.subr.bf16.mxu0 0
    %3179 = vmatpush1.bf16.msra.mxu0 %v1719
    %3180 = vmatprep.subr.bf16.mxu0 0
    %3181 = vmatpush1.bf16.msra.mxu0 %v1720
    %3182 = vmatprep.subr.bf16.mxu0 0
    %3183 = vmatpush1.bf16.msra.mxu0 %v1721
    %3184 = vmatprep.subr.bf16.mxu0 0
    %3185 = vmatpush1.bf16.msra.mxu0 %v1722
    %3186 = vmatprep.subr.bf16.mxu0 0
    %3187 = vmatpush1.bf16.msra.mxu0 %v1723
    %3188 = vmatprep.subr.bf16.mxu0 0
    %3189 = vmatpush1.bf16.msra.mxu0 %v1724
    %3190 = vmatprep.subr.bf16.mxu0 0
    %3191 = vmatpush1.bf16.msra.mxu0 %v1725
    %3192 = vmatprep.subr.bf16.mxu0 0
    %3193 = vmatpush1.bf16.msra.mxu0 %v1726
    %3194 = vmatprep.subr.bf16.mxu0 0
    %3195 = vmatpush1.bf16.msra.mxu0 %v1727
    %3196 = vmatprep.subr.bf16.mxu0 0
    %3197 = vmatpush1.bf16.msra.mxu0 %v1728
    %3198 = vmatprep.subr.bf16.mxu0 0
    %3199 = vmatpush1.bf16.msra.mxu0 %v1729
    %3200 = vmatprep.subr.bf16.mxu0 0
    %3201 = vmatpush1.bf16.msra.mxu0 %v1730
    %3202 = vmatprep.mubr.bf16.mxu0 %v2965
    %3203 = vmatmul.mubr.bf16.gmra.mrb[0].mxu0 %v2964
    %v3204 = vpop.f32.mrb[0].mxu0
    %v3205 = vadd.f32 %v3165, %v3204
    %v3206 = vpop.f32.mrb[0].mxu0
    %v3207 = vpop.f32.mrb[0].mxu0
    %v3208 = vpop.f32.mrb[0].mxu0
    %3209 = vdwg.mxu0
    %3210 = vmatprep.subr.bf16.mxu0 0
    %3211 = vmatpush1.bf16.msra.mxu0 %v1731
    %3212 = vmatprep.subr.bf16.mxu0 0
    %3213 = vmatpush1.bf16.msra.mxu0 %v1732
    %3214 = vmatprep.subr.bf16.mxu0 0
    %3215 = vmatpush1.bf16.msra.mxu0 %v1733
    %3216 = vmatprep.subr.bf16.mxu0 0
    %3217 = vmatpush1.bf16.msra.mxu0 %v1734
    %3218 = vmatprep.subr.bf16.mxu0 0
    %3219 = vmatpush1.bf16.msra.mxu0 %v1735
    %3220 = vmatprep.subr.bf16.mxu0 0
    %3221 = vmatpush1.bf16.msra.mxu0 %v1736
    %3222 = vmatprep.subr.bf16.mxu0 0
    %3223 = vmatpush1.bf16.msra.mxu0 %v1737
    %3224 = vmatprep.subr.bf16.mxu0 0
    %3225 = vmatpush1.bf16.msra.mxu0 %v1738
    %3226 = vmatprep.subr.bf16.mxu0 0
    %3227 = vmatpush1.bf16.msra.mxu0 %v1739
    %3228 = vmatprep.subr.bf16.mxu0 0
    %3229 = vmatpush1.bf16.msra.mxu0 %v1740
    %3230 = vmatprep.subr.bf16.mxu0 0
    %3231 = vmatpush1.bf16.msra.mxu0 %v1741
    %3232 = vmatprep.subr.bf16.mxu0 0
    %3233 = vmatpush1.bf16.msra.mxu0 %v1742
    %3234 = vmatprep.subr.bf16.mxu0 0
    %3235 = vmatpush1.bf16.msra.mxu0 %v1743
    %3236 = vmatprep.subr.bf16.mxu0 0
    %3237 = vmatpush1.bf16.msra.mxu0 %v1744
    %3238 = vmatprep.subr.bf16.mxu0 0
    %3239 = vmatpush1.bf16.msra.mxu0 %v1745
    %3240 = vmatprep.subr.bf16.mxu0 0
    %3241 = vmatpush1.bf16.msra.mxu0 %v1746
    %3242 = vmatprep.mubr.bf16.mxu0 %v2967
    %3243 = vmatmul.mubr.bf16.gmra.mrb[0].mxu0 %v2966
    %v3244 = vpop.f32.mrb[0].mxu0
    %v3245 = vadd.f32 %v3205, %v3244
    %v3246 = vpop.f32.mrb[0].mxu0
    %v3247 = vpop.f32.mrb[0].mxu0
    %v3248 = vpop.f32.mrb[0].mxu0
    %3249 = vdwg.mxu0
    %3250 = vmatprep.subr.bf16.mxu0 0
    %3251 = vmatpush1.bf16.msra.mxu0 %v1747
    %3252 = vmatprep.subr.bf16.mxu0 0
    %3253 = vmatpush1.bf16.msra.mxu0 %v1748
    %3254 = vmatprep.subr.bf16.mxu0 0
    %3255 = vmatpush1.bf16.msra.mxu0 %v1749
    %3256 = vmatprep.subr.bf16.mxu0 0
    %3257 = vmatpush1.bf16.msra.mxu0 %v1750
    %3258 = vmatprep.subr.bf16.mxu0 0
    %3259 = vmatpush1.bf16.msra.mxu0 %v1751
    %3260 = vmatprep.subr.bf16.mxu0 0
    %3261 = vmatpush1.bf16.msra.mxu0 %v1752
    %3262 = vmatprep.subr.bf16.mxu0 0
    %3263 = vmatpush1.bf16.msra.mxu0 %v1753
    %3264 = vmatprep.subr.bf16.mxu0 0
    %3265 = vmatpush1.bf16.msra.mxu0 %v1754
    %3266 = vmatprep.subr.bf16.mxu0 0
    %3267 = vmatpush1.bf16.msra.mxu0 %v1755
    %3268 = vmatprep.subr.bf16.mxu0 0
    %3269 = vmatpush1.bf16.msra.mxu0 %v1756
    %3270 = vmatprep.subr.bf16.mxu0 0
    %3271 = vmatpush1.bf16.msra.mxu0 %v1757
    %3272 = vmatprep.subr.bf16.mxu0 0
    %3273 = vmatpush1.bf16.msra.mxu0 %v1758
    %3274 = vmatprep.subr.bf16.mxu0 0
    %3275 = vmatpush1.bf16.msra.mxu0 %v1759
    %3276 = vmatprep.subr.bf16.mxu0 0
    %3277 = vmatpush1.bf16.msra.mxu0 %v1760
    %3278 = vmatprep.subr.bf16.mxu0 0
    %3279 = vmatpush1.bf16.msra.mxu0 %v1761
    %3280 = vmatprep.subr.bf16.mxu0 0
    %3281 = vmatpush1.bf16.msra.mxu0 %v1762
    %3282 = vmatprep.mubr.bf16.mxu0 %v2969
    %3283 = vmatmul.mubr.bf16.gmra.mrb[0].mxu0 %v2968
    %v3284 = vpop.f32.mrb[0].mxu0
    %v3285 = vadd.f32 %v3245, %v3284
    %v3286 = vpop.f32.mrb[0].mxu0
    %v3287 = vpop.f32.mrb[0].mxu0
    %v3288 = vpop.f32.mrb[0].mxu0
    %3289 = vdwg.mxu0
    %v3290 = vld [vmem:[%s6 + $0x8] sm:$0x1]
    %v3291 = vlaneseq
    %v3292 = vshrl.u32 %v3291, 7
    %v3293 = vsub.s32 0, %v3292
    %v3294 = vrot.slane %v3290, %v3293
    %3296 = vrot.lane.b32.xlu0 %v3294, 32
    %v3297 = vpop.permute.xlu0 %3296
    %v3299 = vadd.f32 %v3285, %v3297
    %3301 = vrot.lane.b32.xlu0 %v3299, 96
    %v3302 = vpop.permute.xlu0 %3301
    %v3304 = vadd.f32 %v2326, %v3302
    %v3305 = vsel %vm405, %v3304, 0.0
    %3306 = vadd.xlane.f32.xlu0 %v3305
    %v3307 = vpop.xlane.xlu0 %3306
    %v3308 = vmul.f32 %v3307, %v459
    %v3309 = vsub.f32 %v3304, %v3308
    %v3310 = vmul.f32 %v3309, %v3309
    %v3311 = vsel %vm405, %v3310, 0.0
    %3312 = vadd.xlane.f32.xlu0 %v3311
    %v3313 = vpop.xlane.xlu0 %3312
    %v3314 = vmul.f32 %v3313, %v459
    %v3315 = vadd.f32 %v3314, 1e-05
    %v3316 = vrsqrt.pop %v3315
    %v3317 = vmul.f32 %v3309, %v3316
    %v3318 = vld [vmem:[%s6 + $0xb] sm:$0x1]
    %v3319 = vlaneseq
    %v3320 = vshrl.u32 %v3319, 7
    %v3321 = vsub.s32 0, %v3320
    %v3322 = vrot.slane %v3318, %v3321
    %v3323 = vmul.f32 %v3317, %v3322
    %v3324 = vld [vmem:[%s6 + $0xc] sm:$0x1]
    %v3325 = vlaneseq
    %v3326 = vshrl.u32 %v3325, 7
    %v3327 = vsub.s32 0, %v3326
    %v3328 = vrot.slane %v3324, %v3327
    %v3329 = vadd.f32 %v3323, %v3328
    %v3330 = vsel %vm405, %v3329, 0.0
    %3331 = vadd.xlane.f32.xlu0 %v3330
    %v3332 = vpop.xlane.xlu0 %3331
    %v3333 = vmul.f32 %v3332, %v459
    %v3334 = vsub.f32 %v3329, %v3333
    %v3335 = vmul.f32 %v3334, %v3334
    %v3336 = vsel %vm405, %v3335, 0.0
    %3337 = vadd.xlane.f32.xlu0 %v3336
    %v3338 = vpop.xlane.xlu0 %3337
    %v3339 = vmul.f32 %v3338, %v459
    %v3340 = vadd.f32 %v3339, 1e-05
    %v3341 = vrsqrt.pop %v3340
    %v3342 = vmul.f32 %v3334, %v3341
    %v3343 = vld [vmem:[%s6 + $0xd] sm:$0x1]
    %v3344 = vlaneseq
    %v3345 = vshrl.u32 %v3344, 7
    %v3346 = vsub.s32 0, %v3345
    %v3347 = vrot.slane %v3343, %v3346
    %v3348 = vmul.f32 %v3342, %v3347
    %v3349 = vld [vmem:[%s6 + $0xe] sm:$0x1]
    %v3350 = vlaneseq
    %v3351 = vshrl.u32 %v3350, 7
    %v3352 = vsub.s32 0, %v3351
    %v3353 = vrot.slane %v3349, %v3352
    %v3354 = vadd.f32 %v3348, %v3353
    %v3355 = vpack.c.bf16 %v3354, %v3354
    %v3357 = vsel %vm405, %v3355, 0
    %3359 = vmatprep.subr.bf16.mxu0 %v398
    %3360 = vmatpush1.bf16.msra.mxu0 %v397
    %3361 = vmatprep.subr.bf16.mxu0 %v400
    %3362 = vmatpush1.bf16.msra.mxu0 %v399
    %3363 = vmatprep.subr.bf16.mxu0 0
    %3364 = vmatpush1.bf16.msra.mxu0 0
    %3365 = vmatprep.subr.bf16.mxu0 0
    %3366 = vmatpush1.bf16.msra.mxu0 0
    %3367 = vmatprep.subr.bf16.mxu0 0
    %3368 = vmatpush1.bf16.msra.mxu0 0
    %3369 = vmatprep.subr.bf16.mxu0 0
    %3370 = vmatpush1.bf16.msra.mxu0 0
    %3371 = vmatprep.subr.bf16.mxu0 0
    %3372 = vmatpush1.bf16.msra.mxu0 0
    %3373 = vmatprep.subr.bf16.mxu0 0
    %3374 = vmatpush1.bf16.msra.mxu0 0
    %3375 = vmatprep.subr.bf16.mxu0 0
    %3376 = vmatpush1.bf16.msra.mxu0 0
    %3377 = vmatprep.subr.bf16.mxu0 0
    %3378 = vmatpush1.bf16.msra.mxu0 0
    %3379 = vmatprep.subr.bf16.mxu0 0
    %3380 = vmatpush1.bf16.msra.mxu0 0
    %3381 = vmatprep.subr.bf16.mxu0 0
    %3382 = vmatpush1.bf16.msra.mxu0 0
    %3383 = vmatprep.subr.bf16.mxu0 0
    %3384 = vmatpush1.bf16.msra.mxu0 0
    %3385 = vmatprep.subr.bf16.mxu0 0
    %3386 = vmatpush1.bf16.msra.mxu0 0
    %3387 = vmatprep.subr.bf16.mxu0 0
    %3388 = vmatpush1.bf16.msra.mxu0 0
    %3389 = vmatprep.subr.bf16.mxu0 0
    %3390 = vmatpush1.bf16.msra.mxu0 0
    %3391 = vmatprep.mubr.bf16.mxu0 0
    %3392 = vmatmul.mubr.bf16.gmra.mrb[0].mxu0 %v3357
    %v3393 = vpop.f32.mrb[0].mxu0
    %v3394 = vpop.f32.mrb[0].mxu0
    %v3395 = vadd.f32 0.0, %v3394
    %v3396 = vpop.f32.mrb[0].mxu0
    %v3397 = vpop.f32.mrb[0].mxu0
    %3398 = vdwg.mxu0
    %v3399 = vld [vmem:[%s6 + $0xf] sm:$0x1]
    %v3400 = vlaneseq
    %v3401 = vshrl.u32 %v3400, 7
    %v3402 = vsub.s32 0, %v3401
    %v3403 = vrot.slane %v3399, %v3402
    %3405 = vrot.lane.b32.xlu0 %v3403, 64
    %v3406 = vpop.permute.xlu0 %3405
    %v3408 = vadd.f32 %v444, %v3406
    %3410 = vrot.lane.b32.xlu0 %v3408, 64
    %v3411 = vpop.permute.xlu0 %3410
    %v3413 = vadd.f32 %v379, %v3411
    %v3414 = vsel %vm405, %v3413, 0.0
    %3415 = vadd.xlane.f32.xlu0 %v3414
    %v3416 = vpop.xlane.xlu0 %3415
    %v3417 = vmul.f32 %v3416, %v459
    %v3418 = vsub.f32 %v3413, %v3417
    %v3419 = vmul.f32 %v3418, %v3418
    %v3420 = vsel %vm405, %v3419, 0.0
    %3421 = vadd.xlane.f32.xlu0 %v3420
    %v3422 = vpop.xlane.xlu0 %3421
    %v3423 = vmul.f32 %v3422, %v459
    %v3424 = vadd.f32 %v3423, 1e-05
    %v3425 = vrsqrt.pop %v3424
    %v3426 = vmul.f32 %v3418, %v3425
    %v3427 = vld [vmem:[%s6 + $0x12] sm:$0x1]
    %v3428 = vlaneseq
    %v3429 = vshrl.u32 %v3428, 7
    %v3430 = vsub.s32 0, %v3429
    %v3431 = vrot.slane %v3427, %v3430
    %v3432 = vmul.f32 %v3426, %v3431
    %v3433 = vld [vmem:[%s6 + $0x13] sm:$0x1]
    %v3434 = vlaneseq
    %v3435 = vshrl.u32 %v3434, 7
    %v3436 = vsub.s32 0, %v3435
    %v3437 = vrot.slane %v3433, %v3436
    %v3438 = vadd.f32 %v3432, %v3437
    %v3439 = vld [vmem:[%s6 + $0x10] sm:$0x1]
    %v3440 = vlaneseq
    %v3441 = vshrl.u32 %v3440, 7
    %v3442 = vsub.s32 0, %v3441
    %v3443 = vrot.slane %v3439, %v3442
    %v3444 = vadd.f32 %v3395, %v3443
    %v3445 = vadd.f32 %v3438, %v3444
    %v3446 = vsel %vm405, %v3445, 0.0
    %3447 = vadd.xlane.f32.xlu0 %v3446
    %v3448 = vpop.xlane.xlu0 %3447
    %v3449 = vmul.f32 %v3448, %v459
    %v3450 = vsub.f32 %v3445, %v3449
    %v3451 = vmul.f32 %v3450, %v3450
    %v3452 = vsel %vm405, %v3451, 0.0
    %3453 = vadd.xlane.f32.xlu0 %v3452
    %v3454 = vpop.xlane.xlu0 %3453
    %v3455 = vmul.f32 %v3454, %v459
    %v3456 = vadd.f32 %v3455, 1e-05
    %v3457 = vrsqrt.pop %v3456
    %v3458 = vmul.f32 %v3450, %v3457
    %v3459 = vld [vmem:[%s6 + $0x14] sm:$0x1]
    %v3460 = vlaneseq
    %v3461 = vshrl.u32 %v3460, 7
    %v3462 = vsub.s32 0, %v3461
    %v3463 = vrot.slane %v3459, %v3462
    %v3464 = vmul.f32 %v3458, %v3463
    %v3465 = vld [vmem:[%s6 + $0x15] sm:$0x1]
    %v3466 = vlaneseq
    %v3467 = vshrl.u32 %v3466, 7
    %v3468 = vsub.s32 0, %v3467
    %v3469 = vrot.slane %v3465, %v3468
    %v3470 = vadd.f32 %v3464, %v3469
    %v3471 = vpack.c.bf16 %v3470, %v3470
    %s3472 = scalar_lea.vmem [#allocation4], 512
    %v3473 = vld [vmem:[%s3472] sm:$0xff]
    %v3474 = vld [vmem:[%s3472 + $0x8] sm:$0xff]
    %v3475 = vld [vmem:[%s3472 + $0x10] sm:$0xff]
    %v3476 = vld [vmem:[%s3472 + $0x18] sm:$0xff]
    %v3477 = vld [vmem:[%s3472 + $0x20] sm:$0xff]
    %v3478 = vld [vmem:[%s3472 + $0x28] sm:$0xff]
    %v3479 = vld [vmem:[%s3472 + $0x30] sm:$0xff]
    %v3480 = vld [vmem:[%s3472 + $0x38] sm:$0xff]
    %v3481 = vld [vmem:[%s3472 + $0x40] sm:$0xff]
    %v3482 = vld [vmem:[%s3472 + $0x48] sm:$0xff]
    %v3483 = vld [vmem:[%s3472 + $0x50] sm:$0xff]
    %v3484 = vld [vmem:[%s3472 + $0x58] sm:$0xff]
    %v3485 = vld [vmem:[%s3472 + $0x60] sm:$0xff]
    %v3486 = vld [vmem:[%s3472 + $0x68] sm:$0xff]
    %v3487 = vld [vmem:[%s3472 + $0x70] sm:$0xff]
    %v3488 = vld [vmem:[%s3472 + $0x78] sm:$0xff]
    %v3489 = vld [vmem:[%s3472 + $0x80] sm:$0xff]
    %v3490 = vld [vmem:[%s3472 + $0x88] sm:$0xff]
    %v3491 = vld [vmem:[%s3472 + $0x90] sm:$0xff]
    %v3492 = vld [vmem:[%s3472 + $0x98] sm:$0xff]
    %v3493 = vld [vmem:[%s3472 + $0xa0] sm:$0xff]
    %v3494 = vld [vmem:[%s3472 + $0xa8] sm:$0xff]
    %v3495 = vld [vmem:[%s3472 + $0xb0] sm:$0xff]
    %v3496 = vld [vmem:[%s3472 + $0xb8] sm:$0xff]
    %v3497 = vld [vmem:[%s3472 + $0xc0] sm:$0xff]
    %v3498 = vld [vmem:[%s3472 + $0xc8] sm:$0xff]
    %v3499 = vld [vmem:[%s3472 + $0xd0] sm:$0xff]
    %v3500 = vld [vmem:[%s3472 + $0xd8] sm:$0xff]
    %v3501 = vld [vmem:[%s3472 + $0xe0] sm:$0xff]
    %v3502 = vld [vmem:[%s3472 + $0xe8] sm:$0xff]
    %v3503 = vld [vmem:[%s3472 + $0xf0] sm:$0xff]
    %v3504 = vld [vmem:[%s3472 + $0xf8] sm:$0xff]
    %s3505 = scalar_lea.vmem %s4, 2
    %v3506 = vld [vmem:[%s3505] ss:$4 sm:$0xff]
    %s3507 = scalar_lea.vmem %s4, 34
    %v3508 = vld [vmem:[%s3507] ss:$4 sm:$0xff]
    %v3511 = vlaneseq
    %v3512 = vshrl.u32 %v3511, 7
    %v3513 = vsub.s32 0, %v3512
    %v3514 = vrot.slane %v3506, %v3513
    %v3515 = vlaneseq
    %v3516 = vshrl.u32 %v3515, 7
    %v3517 = vsub.s32 1, %v3516
    %v3518 = vrot.slane %v3506, %v3517
    %v3519 = vlaneseq
    %v3520 = vshrl.u32 %v3519, 7
    %v3521 = vsub.s32 2, %v3520
    %v3522 = vrot.slane %v3506, %v3521
    %v3523 = vlaneseq
    %v3524 = vshrl.u32 %v3523, 7
    %v3525 = vsub.s32 3, %v3524
    %v3526 = vrot.slane %v3506, %v3525
    %v3527 = vlaneseq
    %v3528 = vshrl.u32 %v3527, 7
    %v3529 = vsub.s32 4, %v3528
    %v3530 = vrot.slane %v3506, %v3529
    %v3531 = vlaneseq
    %v3532 = vshrl.u32 %v3531, 7
    %v3533 = vsub.s32 5, %v3532
    %v3534 = vrot.slane %v3506, %v3533
    %v3535 = vlaneseq
    %v3536 = vshrl.u32 %v3535, 7
    %v3537 = vsub.s32 6, %v3536
    %v3538 = vrot.slane %v3506, %v3537
    %v3539 = vlaneseq
    %v3540 = vshrl.u32 %v3539, 7
    %v3541 = vsub.s32 7, %v3540
    %v3542 = vrot.slane %v3506, %v3541
    %v3543 = vlaneseq
    %v3544 = vshrl.u32 %v3543, 7
    %v3545 = vsub.s32 0, %v3544
    %v3546 = vrot.slane %v3508, %v3545
    %v3547 = vlaneseq
    %v3548 = vshrl.u32 %v3547, 7
    %v3549 = vsub.s32 1, %v3548
    %v3550 = vrot.slane %v3508, %v3549
    %v3551 = vlaneseq
    %v3552 = vshrl.u32 %v3551, 7
    %v3553 = vsub.s32 2, %v3552
    %v3554 = vrot.slane %v3508, %v3553
    %v3555 = vlaneseq
    %v3556 = vshrl.u32 %v3555, 7
    %v3557 = vsub.s32 3, %v3556
    %v3558 = vrot.slane %v3508, %v3557
    %v3559 = vlaneseq
    %v3560 = vshrl.u32 %v3559, 7
    %v3561 = vsub.s32 4, %v3560
    %v3562 = vrot.slane %v3508, %v3561
    %v3563 = vlaneseq
    %v3564 = vshrl.u32 %v3563, 7
    %v3565 = vsub.s32 5, %v3564
    %v3566 = vrot.slane %v3508, %v3565
    %v3567 = vlaneseq
    %v3568 = vshrl.u32 %v3567, 7
    %v3569 = vsub.s32 6, %v3568
    %v3570 = vrot.slane %v3508, %v3569
    %v3571 = vlaneseq
    %v3572 = vshrl.u32 %v3571, 7
    %v3573 = vsub.s32 7, %v3572
    %v3574 = vrot.slane %v3508, %v3573
    %v3623 = vunpack.c.l.b16 %v3473
    %v3624 = vunpack.c.h.b16 %v3473
    %v3625 = vunpack.c.l.b16 %v3474
    %v3626 = vunpack.c.h.b16 %v3474
    %v3627 = vunpack.c.l.b16 %v3475
    %v3628 = vunpack.c.h.b16 %v3475
    %v3629 = vunpack.c.l.b16 %v3476
    %v3630 = vunpack.c.h.b16 %v3476
    %v3631 = vunpack.c.l.b16 %v3477
    %v3632 = vunpack.c.h.b16 %v3477
    %v3633 = vunpack.c.l.b16 %v3478
    %v3634 = vunpack.c.h.b16 %v3478
    %v3635 = vunpack.c.l.b16 %v3479
    %v3636 = vunpack.c.h.b16 %v3479
    %v3637 = vunpack.c.l.b16 %v3480
    %v3638 = vunpack.c.h.b16 %v3480
    %v3639 = vunpack.c.l.b16 %v3481
    %v3640 = vunpack.c.h.b16 %v3481
    %v3641 = vunpack.c.l.b16 %v3482
    %v3642 = vunpack.c.h.b16 %v3482
    %v3643 = vunpack.c.l.b16 %v3483
    %v3644 = vunpack.c.h.b16 %v3483
    %v3645 = vunpack.c.l.b16 %v3484
    %v3646 = vunpack.c.h.b16 %v3484
    %v3647 = vunpack.c.l.b16 %v3485
    %v3648 = vunpack.c.h.b16 %v3485
    %v3649 = vunpack.c.l.b16 %v3486
    %v3650 = vunpack.c.h.b16 %v3486
    %v3651 = vunpack.c.l.b16 %v3487
    %v3652 = vunpack.c.h.b16 %v3487
    %v3653 = vunpack.c.l.b16 %v3488
    %v3654 = vunpack.c.h.b16 %v3488
    %v3655 = vunpack.c.l.b16 %v3489
    %v3656 = vunpack.c.h.b16 %v3489
    %v3657 = vunpack.c.l.b16 %v3490
    %v3658 = vunpack.c.h.b16 %v3490
    %v3659 = vunpack.c.l.b16 %v3491
    %v3660 = vunpack.c.h.b16 %v3491
    %v3661 = vunpack.c.l.b16 %v3492
    %v3662 = vunpack.c.h.b16 %v3492
    %v3663 = vunpack.c.l.b16 %v3493
    %v3664 = vunpack.c.h.b16 %v3493
    %v3665 = vunpack.c.l.b16 %v3494
    %v3666 = vunpack.c.h.b16 %v3494
    %v3667 = vunpack.c.l.b16 %v3495
    %v3668 = vunpack.c.h.b16 %v3495
    %v3669 = vunpack.c.l.b16 %v3496
    %v3670 = vunpack.c.h.b16 %v3496
    %v3671 = vunpack.c.l.b16 %v3497
    %v3672 = vunpack.c.h.b16 %v3497
    %v3673 = vunpack.c.l.b16 %v3498
    %v3674 = vunpack.c.h.b16 %v3498
    %v3675 = vunpack.c.l.b16 %v3499
    %v3676 = vunpack.c.h.b16 %v3499
    %v3677 = vunpack.c.l.b16 %v3500
    %v3678 = vunpack.c.h.b16 %v3500
    %v3679 = vunpack.c.l.b16 %v3501
    %v3680 = vunpack.c.h.b16 %v3501
    %v3681 = vunpack.c.l.b16 %v3502
    %v3682 = vunpack.c.h.b16 %v3502
    %v3683 = vunpack.c.l.b16 %v3503
    %v3684 = vunpack.c.h.b16 %v3503
    %v3685 = vunpack.c.l.b16 %v3504
    %v3686 = vunpack.c.h.b16 %v3504
    %v3687 = vpack.c.b16 %v3639, %v3623
    %v3688 = vpack.c.b16 %v3640, %v3624
    %v3689 = vpack.c.b16 %v3641, %v3625
    %v3690 = vpack.c.b16 %v3642, %v3626
    %v3691 = vpack.c.b16 %v3643, %v3627
    %v3692 = vpack.c.b16 %v3644, %v3628
    %v3693 = vpack.c.b16 %v3645, %v3629
    %v3694 = vpack.c.b16 %v3646, %v3630
    %v3695 = vpack.c.b16 %v3647, %v3631
    %v3696 = vpack.c.b16 %v3648, %v3632
    %v3697 = vpack.c.b16 %v3649, %v3633
    %v3698 = vpack.c.b16 %v3650, %v3634
    %v3699 = vpack.c.b16 %v3651, %v3635
    %v3700 = vpack.c.b16 %v3652, %v3636
    %v3701 = vpack.c.b16 %v3653, %v3637
    %v3702 = vpack.c.b16 %v3654, %v3638
    %v3703 = vpack.c.b16 %v3671, %v3655
    %v3704 = vpack.c.b16 %v3672, %v3656
    %v3705 = vpack.c.b16 %v3673, %v3657
    %v3706 = vpack.c.b16 %v3674, %v3658
    %v3707 = vpack.c.b16 %v3675, %v3659
    %v3708 = vpack.c.b16 %v3676, %v3660
    %v3709 = vpack.c.b16 %v3677, %v3661
    %v3710 = vpack.c.b16 %v3678, %v3662
    %v3711 = vpack.c.b16 %v3679, %v3663
    %v3712 = vpack.c.b16 %v3680, %v3664
    %v3713 = vpack.c.b16 %v3681, %v3665
    %v3714 = vpack.c.b16 %v3682, %v3666
    %v3715 = vpack.c.b16 %v3683, %v3667
    %v3716 = vpack.c.b16 %v3684, %v3668
    %v3717 = vpack.c.b16 %v3685, %v3669
    %v3718 = vpack.c.b16 %v3686, %v3670
    %v3752 = vsel %vm405, %v3471, 0
    %3754 = vmatprep.subr.bf16.mxu0 %v3688
    %3755 = vmatpush1.bf16.msra.mxu0 %v3687
    %3756 = vmatprep.subr.bf16.mxu0 %v3704
    %3757 = vmatpush1.bf16.msra.mxu0 %v3703
    %3758 = vmatprep.subr.bf16.mxu0 0
    %3759 = vmatpush1.bf16.msra.mxu0 0
    %3760 = vmatprep.subr.bf16.mxu0 0
    %3761 = vmatpush1.bf16.msra.mxu0 0
    %3762 = vmatprep.subr.bf16.mxu0 0
    %3763 = vmatpush1.bf16.msra.mxu0 0
    %3764 = vmatprep.subr.bf16.mxu0 0
    %3765 = vmatpush1.bf16.msra.mxu0 0
    %3766 = vmatprep.subr.bf16.mxu0 0
    %3767 = vmatpush1.bf16.msra.mxu0 0
    %3768 = vmatprep.subr.bf16.mxu0 0
    %3769 = vmatpush1.bf16.msra.mxu0 0
    %3770 = vmatprep.subr.bf16.mxu0 0
    %3771 = vmatpush1.bf16.msra.mxu0 0
    %3772 = vmatprep.subr.bf16.mxu0 0
    %3773 = vmatpush1.bf16.msra.mxu0 0
    %3774 = vmatprep.subr.bf16.mxu0 0
    %3775 = vmatpush1.bf16.msra.mxu0 0
    %3776 = vmatprep.subr.bf16.mxu0 0
    %3777 = vmatpush1.bf16.msra.mxu0 0
    %3778 = vmatprep.subr.bf16.mxu0 0
    %3779 = vmatpush1.bf16.msra.mxu0 0
    %3780 = vmatprep.subr.bf16.mxu0 0
    %3781 = vmatpush1.bf16.msra.mxu0 0
    %3782 = vmatprep.subr.bf16.mxu0 0
    %3783 = vmatpush1.bf16.msra.mxu0 0
    %3784 = vmatprep.subr.bf16.mxu0 0
    %3785 = vmatpush1.bf16.msra.mxu0 0
    %3786 = vmatprep.mubr.bf16.mxu0 0
    %3787 = vmatmul.mubr.bf16.gmra.mrb[0].mxu0 %v3752
    %v3788 = vpop.f32.mrb[0].mxu0
    %v3789 = vadd.f32 %v3514, %v3788
    %v3790 = vpop.f32.mrb[0].mxu0
    %v3791 = vadd.f32 %v3518, %v3790
    %v3792 = vpop.f32.mrb[0].mxu0
    %v3793 = vpop.f32.mrb[0].mxu0
    %3794 = vdwg.mxu0
    %3795 = vmatprep.subr.bf16.mxu0 %v3690
    %3796 = vmatpush1.bf16.msra.mxu0 %v3689
    %3797 = vmatprep.subr.bf16.mxu0 %v3706
    %3798 = vmatpush1.bf16.msra.mxu0 %v3705
    %3799 = vmatprep.subr.bf16.mxu0 0
    %3800 = vmatpush1.bf16.msra.mxu0 0
    %3801 = vmatprep.subr.bf16.mxu0 0
    %3802 = vmatpush1.bf16.msra.mxu0 0
    %3803 = vmatprep.subr.bf16.mxu0 0
    %3804 = vmatpush1.bf16.msra.mxu0 0
    %3805 = vmatprep.subr.bf16.mxu0 0
    %3806 = vmatpush1.bf16.msra.mxu0 0
    %3807 = vmatprep.subr.bf16.mxu0 0
    %3808 = vmatpush1.bf16.msra.mxu0 0
    %3809 = vmatprep.subr.bf16.mxu0 0
    %3810 = vmatpush1.bf16.msra.mxu0 0
    %3811 = vmatprep.subr.bf16.mxu0 0
    %3812 = vmatpush1.bf16.msra.mxu0 0
    %3813 = vmatprep.subr.bf16.mxu0 0
    %3814 = vmatpush1.bf16.msra.mxu0 0
    %3815 = vmatprep.subr.bf16.mxu0 0
    %3816 = vmatpush1.bf16.msra.mxu0 0
    %3817 = vmatprep.subr.bf16.mxu0 0
    %3818 = vmatpush1.bf16.msra.mxu0 0
    %3819 = vmatprep.subr.bf16.mxu0 0
    %3820 = vmatpush1.bf16.msra.mxu0 0
    %3821 = vmatprep.subr.bf16.mxu0 0
    %3822 = vmatpush1.bf16.msra.mxu0 0
    %3823 = vmatprep.subr.bf16.mxu0 0
    %3824 = vmatpush1.bf16.msra.mxu0 0
    %3825 = vmatprep.subr.bf16.mxu0 0
    %3826 = vmatpush1.bf16.msra.mxu0 0
    %3827 = vmatprep.mubr.bf16.mxu0 0
    %3828 = vmatmul.mubr.bf16.gmra.mrb[0].mxu0 %v3752
    %v3829 = vpop.f32.mrb[0].mxu0
    %v3830 = vadd.f32 %v3522, %v3829
    %v3831 = vpop.f32.mrb[0].mxu0
    %v3832 = vadd.f32 %v3526, %v3831
    %v3833 = vpop.f32.mrb[0].mxu0
    %v3834 = vpop.f32.mrb[0].mxu0
    %3835 = vdwg.mxu0
    %3836 = vmatprep.subr.bf16.mxu0 %v3692
    %3837 = vmatpush1.bf16.msra.mxu0 %v3691
    %3838 = vmatprep.subr.bf16.mxu0 %v3708
    %3839 = vmatpush1.bf16.msra.mxu0 %v3707
    %3840 = vmatprep.subr.bf16.mxu0 0
    %3841 = vmatpush1.bf16.msra.mxu0 0
    %3842 = vmatprep.subr.bf16.mxu0 0
    %3843 = vmatpush1.bf16.msra.mxu0 0
    %3844 = vmatprep.subr.bf16.mxu0 0
    %3845 = vmatpush1.bf16.msra.mxu0 0
    %3846 = vmatprep.subr.bf16.mxu0 0
    %3847 = vmatpush1.bf16.msra.mxu0 0
    %3848 = vmatprep.subr.bf16.mxu0 0
    %3849 = vmatpush1.bf16.msra.mxu0 0
    %3850 = vmatprep.subr.bf16.mxu0 0
    %3851 = vmatpush1.bf16.msra.mxu0 0
    %3852 = vmatprep.subr.bf16.mxu0 0
    %3853 = vmatpush1.bf16.msra.mxu0 0
    %3854 = vmatprep.subr.bf16.mxu0 0
    %3855 = vmatpush1.bf16.msra.mxu0 0
    %3856 = vmatprep.subr.bf16.mxu0 0
    %3857 = vmatpush1.bf16.msra.mxu0 0
    %3858 = vmatprep.subr.bf16.mxu0 0
    %3859 = vmatpush1.bf16.msra.mxu0 0
    %3860 = vmatprep.subr.bf16.mxu0 0
    %3861 = vmatpush1.bf16.msra.mxu0 0
    %3862 = vmatprep.subr.bf16.mxu0 0
    %3863 = vmatpush1.bf16.msra.mxu0 0
    %3864 = vmatprep.subr.bf16.mxu0 0
    %3865 = vmatpush1.bf16.msra.mxu0 0
    %3866 = vmatprep.subr.bf16.mxu0 0
    %3867 = vmatpush1.bf16.msra.mxu0 0
    %3868 = vmatprep.mubr.bf16.mxu0 0
    %3869 = vmatmul.mubr.bf16.gmra.mrb[0].mxu0 %v3752
    %v3870 = vpop.f32.mrb[0].mxu0
    %v3871 = vadd.f32 %v3530, %v3870
    %v3872 = vpop.f32.mrb[0].mxu0
    %v3873 = vadd.f32 %v3534, %v3872
    %v3874 = vpop.f32.mrb[0].mxu0
    %v3875 = vpop.f32.mrb[0].mxu0
    %3876 = vdwg.mxu0
    %3877 = vmatprep.subr.bf16.mxu0 %v3694
    %3878 = vmatpush1.bf16.msra.mxu0 %v3693
    %3879 = vmatprep.subr.bf16.mxu0 %v3710
    %3880 = vmatpush1.bf16.msra.mxu0 %v3709
    %3881 = vmatprep.subr.bf16.mxu0 0
    %3882 = vmatpush1.bf16.msra.mxu0 0
    %3883 = vmatprep.subr.bf16.mxu0 0
    %3884 = vmatpush1.bf16.msra.mxu0 0
    %3885 = vmatprep.subr.bf16.mxu0 0
    %3886 = vmatpush1.bf16.msra.mxu0 0
    %3887 = vmatprep.subr.bf16.mxu0 0
    %3888 = vmatpush1.bf16.msra.mxu0 0
    %3889 = vmatprep.subr.bf16.mxu0 0
    %3890 = vmatpush1.bf16.msra.mxu0 0
    %3891 = vmatprep.subr.bf16.mxu0 0
    %3892 = vmatpush1.bf16.msra.mxu0 0
    %3893 = vmatprep.subr.bf16.mxu0 0
    %3894 = vmatpush1.bf16.msra.mxu0 0
    %3895 = vmatprep.subr.bf16.mxu0 0
    %3896 = vmatpush1.bf16.msra.mxu0 0
    %3897 = vmatprep.subr.bf16.mxu0 0
    %3898 = vmatpush1.bf16.msra.mxu0 0
    %3899 = vmatprep.subr.bf16.mxu0 0
    %3900 = vmatpush1.bf16.msra.mxu0 0
    %3901 = vmatprep.subr.bf16.mxu0 0
    %3902 = vmatpush1.bf16.msra.mxu0 0
    %3903 = vmatprep.subr.bf16.mxu0 0
    %3904 = vmatpush1.bf16.msra.mxu0 0
    %3905 = vmatprep.subr.bf16.mxu0 0
    %3906 = vmatpush1.bf16.msra.mxu0 0
    %3907 = vmatprep.subr.bf16.mxu0 0
    %3908 = vmatpush1.bf16.msra.mxu0 0
    %3909 = vmatprep.mubr.bf16.mxu0 0
    %3910 = vmatmul.mubr.bf16.gmra.mrb[0].mxu0 %v3752
    %v3911 = vpop.f32.mrb[0].mxu0
    %v3912 = vadd.f32 %v3538, %v3911
    %v3913 = vpop.f32.mrb[0].mxu0
    %v3914 = vadd.f32 %v3542, %v3913
    %v3915 = vpop.f32.mrb[0].mxu0
    %v3916 = vpop.f32.mrb[0].mxu0
    %3917 = vdwg.mxu0
    %3918 = vmatprep.subr.bf16.mxu0 %v3696
    %3919 = vmatpush1.bf16.msra.mxu0 %v3695
    %3920 = vmatprep.subr.bf16.mxu0 %v3712
    %3921 = vmatpush1.bf16.msra.mxu0 %v3711
    %3922 = vmatprep.subr.bf16.mxu0 0
    %3923 = vmatpush1.bf16.msra.mxu0 0
    %3924 = vmatprep.subr.bf16.mxu0 0
    %3925 = vmatpush1.bf16.msra.mxu0 0
    %3926 = vmatprep.subr.bf16.mxu0 0
    %3927 = vmatpush1.bf16.msra.mxu0 0
    %3928 = vmatprep.subr.bf16.mxu0 0
    %3929 = vmatpush1.bf16.msra.mxu0 0
    %3930 = vmatprep.subr.bf16.mxu0 0
    %3931 = vmatpush1.bf16.msra.mxu0 0
    %3932 = vmatprep.subr.bf16.mxu0 0
    %3933 = vmatpush1.bf16.msra.mxu0 0
    %3934 = vmatprep.subr.bf16.mxu0 0
    %3935 = vmatpush1.bf16.msra.mxu0 0
    %3936 = vmatprep.subr.bf16.mxu0 0
    %3937 = vmatpush1.bf16.msra.mxu0 0
    %3938 = vmatprep.subr.bf16.mxu0 0
    %3939 = vmatpush1.bf16.msra.mxu0 0
    %3940 = vmatprep.subr.bf16.mxu0 0
    %3941 = vmatpush1.bf16.msra.mxu0 0
    %3942 = vmatprep.subr.bf16.mxu0 0
    %3943 = vmatpush1.bf16.msra.mxu0 0
    %3944 = vmatprep.subr.bf16.mxu0 0
    %3945 = vmatpush1.bf16.msra.mxu0 0
    %3946 = vmatprep.subr.bf16.mxu0 0
    %3947 = vmatpush1.bf16.msra.mxu0 0
    %3948 = vmatprep.subr.bf16.mxu0 0
    %3949 = vmatpush1.bf16.msra.mxu0 0
    %3950 = vmatprep.mubr.bf16.mxu0 0
    %3951 = vmatmul.mubr.bf16.gmra.mrb[0].mxu0 %v3752
    %v3952 = vpop.f32.mrb[0].mxu0
    %v3953 = vadd.f32 %v3546, %v3952
    %v3954 = vpop.f32.mrb[0].mxu0
    %v3955 = vadd.f32 %v3550, %v3954
    %v3956 = vpop.f32.mrb[0].mxu0
    %v3957 = vpop.f32.mrb[0].mxu0
    %3958 = vdwg.mxu0
    %3959 = vmatprep.subr.bf16.mxu0 %v3698
    %3960 = vmatpush1.bf16.msra.mxu0 %v3697
    %3961 = vmatprep.subr.bf16.mxu0 %v3714
    %3962 = vmatpush1.bf16.msra.mxu0 %v3713
    %3963 = vmatprep.subr.bf16.mxu0 0
    %3964 = vmatpush1.bf16.msra.mxu0 0
    %3965 = vmatprep.subr.bf16.mxu0 0
    %3966 = vmatpush1.bf16.msra.mxu0 0
    %3967 = vmatprep.subr.bf16.mxu0 0
    %3968 = vmatpush1.bf16.msra.mxu0 0
    %3969 = vmatprep.subr.bf16.mxu0 0
    %3970 = vmatpush1.bf16.msra.mxu0 0
    %3971 = vmatprep.subr.bf16.mxu0 0
    %3972 = vmatpush1.bf16.msra.mxu0 0
    %3973 = vmatprep.subr.bf16.mxu0 0
    %3974 = vmatpush1.bf16.msra.mxu0 0
    %3975 = vmatprep.subr.bf16.mxu0 0
    %3976 = vmatpush1.bf16.msra.mxu0 0
    %3977 = vmatprep.subr.bf16.mxu0 0
    %3978 = vmatpush1.bf16.msra.mxu0 0
    %3979 = vmatprep.subr.bf16.mxu0 0
    %3980 = vmatpush1.bf16.msra.mxu0 0
    %3981 = vmatprep.subr.bf16.mxu0 0
    %3982 = vmatpush1.bf16.msra.mxu0 0
    %3983 = vmatprep.subr.bf16.mxu0 0
    %3984 = vmatpush1.bf16.msra.mxu0 0
    %3985 = vmatprep.subr.bf16.mxu0 0
    %3986 = vmatpush1.bf16.msra.mxu0 0
    %3987 = vmatprep.subr.bf16.mxu0 0
    %3988 = vmatpush1.bf16.msra.mxu0 0
    %3989 = vmatprep.subr.bf16.mxu0 0
    %3990 = vmatpush1.bf16.msra.mxu0 0
    %3991 = vmatprep.mubr.bf16.mxu0 0
    %3992 = vmatmul.mubr.bf16.gmra.mrb[0].mxu0 %v3752
    %v3993 = vpop.f32.mrb[0].mxu0
    %v3994 = vadd.f32 %v3554, %v3993
    %v3995 = vpop.f32.mrb[0].mxu0
    %v3996 = vadd.f32 %v3558, %v3995
    %v3997 = vpop.f32.mrb[0].mxu0
    %v3998 = vpop.f32.mrb[0].mxu0
    %3999 = vdwg.mxu0
    %4000 = vmatprep.subr.bf16.mxu0 %v3700
    %4001 = vmatpush1.bf16.msra.mxu0 %v3699
    %4002 = vmatprep.subr.bf16.mxu0 %v3716
    %4003 = vmatpush1.bf16.msra.mxu0 %v3715
    %4004 = vmatprep.subr.bf16.mxu0 0
    %4005 = vmatpush1.bf16.msra.mxu0 0
    %4006 = vmatprep.subr.bf16.mxu0 0
    %4007 = vmatpush1.bf16.msra.mxu0 0
    %4008 = vmatprep.subr.bf16.mxu0 0
    %4009 = vmatpush1.bf16.msra.mxu0 0
    %4010 = vmatprep.subr.bf16.mxu0 0
    %4011 = vmatpush1.bf16.msra.mxu0 0
    %4012 = vmatprep.subr.bf16.mxu0 0
    %4013 = vmatpush1.bf16.msra.mxu0 0
    %4014 = vmatprep.subr.bf16.mxu0 0
    %4015 = vmatpush1.bf16.msra.mxu0 0
    %4016 = vmatprep.subr.bf16.mxu0 0
    %4017 = vmatpush1.bf16.msra.mxu0 0
    %4018 = vmatprep.subr.bf16.mxu0 0
    %4019 = vmatpush1.bf16.msra.mxu0 0
    %4020 = vmatprep.subr.bf16.mxu0 0
    %4021 = vmatpush1.bf16.msra.mxu0 0
    %4022 = vmatprep.subr.bf16.mxu0 0
    %4023 = vmatpush1.bf16.msra.mxu0 0
    %4024 = vmatprep.subr.bf16.mxu0 0
    %4025 = vmatpush1.bf16.msra.mxu0 0
    %4026 = vmatprep.subr.bf16.mxu0 0
    %4027 = vmatpush1.bf16.msra.mxu0 0
    %4028 = vmatprep.subr.bf16.mxu0 0
    %4029 = vmatpush1.bf16.msra.mxu0 0
    %4030 = vmatprep.subr.bf16.mxu0 0
    %4031 = vmatpush1.bf16.msra.mxu0 0
    %4032 = vmatprep.mubr.bf16.mxu0 0
    %4033 = vmatmul.mubr.bf16.gmra.mrb[0].mxu0 %v3752
    %v4034 = vpop.f32.mrb[0].mxu0
    %v4035 = vadd.f32 %v3562, %v4034
    %v4036 = vpop.f32.mrb[0].mxu0
    %v4037 = vadd.f32 %v3566, %v4036
    %v4038 = vpop.f32.mrb[0].mxu0
    %v4039 = vpop.f32.mrb[0].mxu0
    %4040 = vdwg.mxu0
    %4041 = vmatprep.subr.bf16.mxu0 %v3702
    %4042 = vmatpush1.bf16.msra.mxu0 %v3701
    %4043 = vmatprep.subr.bf16.mxu0 %v3718
    %4044 = vmatpush1.bf16.msra.mxu0 %v3717
    %4045 = vmatprep.subr.bf16.mxu0 0
    %4046 = vmatpush1.bf16.msra.mxu0 0
    %4047 = vmatprep.subr.bf16.mxu0 0
    %4048 = vmatpush1.bf16.msra.mxu0 0
    %4049 = vmatprep.subr.bf16.mxu0 0
    %4050 = vmatpush1.bf16.msra.mxu0 0
    %4051 = vmatprep.subr.bf16.mxu0 0
    %4052 = vmatpush1.bf16.msra.mxu0 0
    %4053 = vmatprep.subr.bf16.mxu0 0
    %4054 = vmatpush1.bf16.msra.mxu0 0
    %4055 = vmatprep.subr.bf16.mxu0 0
    %4056 = vmatpush1.bf16.msra.mxu0 0
    %4057 = vmatprep.subr.bf16.mxu0 0
    %4058 = vmatpush1.bf16.msra.mxu0 0
    %4059 = vmatprep.subr.bf16.mxu0 0
    %4060 = vmatpush1.bf16.msra.mxu0 0
    %4061 = vmatprep.subr.bf16.mxu0 0
    %4062 = vmatpush1.bf16.msra.mxu0 0
    %4063 = vmatprep.subr.bf16.mxu0 0
    %4064 = vmatpush1.bf16.msra.mxu0 0
    %4065 = vmatprep.subr.bf16.mxu0 0
    %4066 = vmatpush1.bf16.msra.mxu0 0
    %4067 = vmatprep.subr.bf16.mxu0 0
    %4068 = vmatpush1.bf16.msra.mxu0 0
    %4069 = vmatprep.subr.bf16.mxu0 0
    %4070 = vmatpush1.bf16.msra.mxu0 0
    %4071 = vmatprep.subr.bf16.mxu0 0
    %4072 = vmatpush1.bf16.msra.mxu0 0
    %4073 = vmatprep.mubr.bf16.mxu0 0
    %4074 = vmatmul.mubr.bf16.gmra.mrb[0].mxu0 %v3752
    %v4075 = vpop.f32.mrb[0].mxu0
    %v4076 = vadd.f32 %v3570, %v4075
    %v4077 = vpop.f32.mrb[0].mxu0
    %v4078 = vadd.f32 %v3574, %v4077
    %v4079 = vpop.f32.mrb[0].mxu0
    %v4080 = vpop.f32.mrb[0].mxu0
    %4081 = vdwg.mxu0
    %v4082 = vmax.f32 %v3789, 0.0
    %v4083 = vmax.f32 %v3791, 0.0
    %v4084 = vmax.f32 %v3830, 0.0
    %v4085 = vmax.f32 %v3832, 0.0
    %v4086 = vmax.f32 %v3871, 0.0
    %v4087 = vmax.f32 %v3873, 0.0
    %v4088 = vmax.f32 %v3912, 0.0
    %v4089 = vmax.f32 %v3914, 0.0
    %v4090 = vmax.f32 %v3953, 0.0
    %v4091 = vmax.f32 %v3955, 0.0
    %v4092 = vmax.f32 %v3994, 0.0
    %v4093 = vmax.f32 %v3996, 0.0
    %v4094 = vmax.f32 %v4035, 0.0
    %v4095 = vmax.f32 %v4037, 0.0
    %v4096 = vmax.f32 %v4076, 0.0
    %v4097 = vmax.f32 %v4078, 0.0
    %v4098 = vpack.c.bf16 %v4082, %v4082
    %v4099 = vpack.c.bf16 %v4083, %v4083
    %v4100 = vpack.c.bf16 %v4084, %v4084
    %v4101 = vpack.c.bf16 %v4085, %v4085
    %v4102 = vpack.c.bf16 %v4086, %v4086
    %v4103 = vpack.c.bf16 %v4087, %v4087
    %v4104 = vpack.c.bf16 %v4088, %v4088
    %v4105 = vpack.c.bf16 %v4089, %v4089
    %v4106 = vpack.c.bf16 %v4090, %v4090
    %v4107 = vpack.c.bf16 %v4091, %v4091
    %v4108 = vpack.c.bf16 %v4092, %v4092
    %v4109 = vpack.c.bf16 %v4093, %v4093
    %v4110 = vpack.c.bf16 %v4094, %v4094
    %v4111 = vpack.c.bf16 %v4095, %v4095
    %v4112 = vpack.c.bf16 %v4096, %v4096
    %v4113 = vpack.c.bf16 %v4097, %v4097
    %4114 = vmatprep.subr.bf16.mxu0 0
    %4115 = vmatpush1.bf16.msra.mxu0 %v1635
    %4116 = vmatprep.subr.bf16.mxu0 0
    %4117 = vmatpush1.bf16.msra.mxu0 %v1636
    %4118 = vmatprep.subr.bf16.mxu0 0
    %4119 = vmatpush1.bf16.msra.mxu0 %v1637
    %4120 = vmatprep.subr.bf16.mxu0 0
    %4121 = vmatpush1.bf16.msra.mxu0 %v1638
    %4122 = vmatprep.subr.bf16.mxu0 0
    %4123 = vmatpush1.bf16.msra.mxu0 %v1639
    %4124 = vmatprep.subr.bf16.mxu0 0
    %4125 = vmatpush1.bf16.msra.mxu0 %v1640
    %4126 = vmatprep.subr.bf16.mxu0 0
    %4127 = vmatpush1.bf16.msra.mxu0 %v1641
    %4128 = vmatprep.subr.bf16.mxu0 0
    %4129 = vmatpush1.bf16.msra.mxu0 %v1642
    %4130 = vmatprep.subr.bf16.mxu0 0
    %4131 = vmatpush1.bf16.msra.mxu0 %v1643
    %4132 = vmatprep.subr.bf16.mxu0 0
    %4133 = vmatpush1.bf16.msra.mxu0 %v1644
    %4134 = vmatprep.subr.bf16.mxu0 0
    %4135 = vmatpush1.bf16.msra.mxu0 %v1645
    %4136 = vmatprep.subr.bf16.mxu0 0
    %4137 = vmatpush1.bf16.msra.mxu0 %v1646
    %4138 = vmatprep.subr.bf16.mxu0 0
    %4139 = vmatpush1.bf16.msra.mxu0 %v1647
    %4140 = vmatprep.subr.bf16.mxu0 0
    %4141 = vmatpush1.bf16.msra.mxu0 %v1648
    %4142 = vmatprep.subr.bf16.mxu0 0
    %4143 = vmatpush1.bf16.msra.mxu0 %v1649
    %4144 = vmatprep.subr.bf16.mxu0 0
    %4145 = vmatpush1.bf16.msra.mxu0 %v1650
    %4146 = vmatprep.mubr.bf16.mxu0 %v4099
    %4147 = vmatmul.mubr.bf16.gmra.mrb[0].mxu0 %v4098
    %v4148 = vpop.f32.mrb[0].mxu0
    %v4149 = vadd.f32 0.0, %v4148
    %v4150 = vpop.f32.mrb[0].mxu0
    %v4151 = vpop.f32.mrb[0].mxu0
    %v4152 = vpop.f32.mrb[0].mxu0
    %4153 = vdwg.mxu0
    %4154 = vmatprep.subr.bf16.mxu0 0
    %4155 = vmatpush1.bf16.msra.mxu0 %v1651
    %4156 = vmatprep.subr.bf16.mxu0 0
    %4157 = vmatpush1.bf16.msra.mxu0 %v1652
    %4158 = vmatprep.subr.bf16.mxu0 0
    %4159 = vmatpush1.bf16.msra.mxu0 %v1653
    %4160 = vmatprep.subr.bf16.mxu0 0
    %4161 = vmatpush1.bf16.msra.mxu0 %v1654
    %4162 = vmatprep.subr.bf16.mxu0 0
    %4163 = vmatpush1.bf16.msra.mxu0 %v1655
    %4164 = vmatprep.subr.bf16.mxu0 0
    %4165 = vmatpush1.bf16.msra.mxu0 %v1656
    %4166 = vmatprep.subr.bf16.mxu0 0
    %4167 = vmatpush1.bf16.msra.mxu0 %v1657
    %4168 = vmatprep.subr.bf16.mxu0 0
    %4169 = vmatpush1.bf16.msra.mxu0 %v1658
    %4170 = vmatprep.subr.bf16.mxu0 0
    %4171 = vmatpush1.bf16.msra.mxu0 %v1659
    %4172 = vmatprep.subr.bf16.mxu0 0
    %4173 = vmatpush1.bf16.msra.mxu0 %v1660
    %4174 = vmatprep.subr.bf16.mxu0 0
    %4175 = vmatpush1.bf16.msra.mxu0 %v1661
    %4176 = vmatprep.subr.bf16.mxu0 0
    %4177 = vmatpush1.bf16.msra.mxu0 %v1662
    %4178 = vmatprep.subr.bf16.mxu0 0
    %4179 = vmatpush1.bf16.msra.mxu0 %v1663
    %4180 = vmatprep.subr.bf16.mxu0 0
    %4181 = vmatpush1.bf16.msra.mxu0 %v1664
    %4182 = vmatprep.subr.bf16.mxu0 0
    %4183 = vmatpush1.bf16.msra.mxu0 %v1665
    %4184 = vmatprep.subr.bf16.mxu0 0
    %4185 = vmatpush1.bf16.msra.mxu0 %v1666
    %4186 = vmatprep.mubr.bf16.mxu0 %v4101
    %4187 = vmatmul.mubr.bf16.gmra.mrb[0].mxu0 %v4100
    %v4188 = vpop.f32.mrb[0].mxu0
    %v4189 = vadd.f32 %v4149, %v4188
    %v4190 = vpop.f32.mrb[0].mxu0
    %v4191 = vpop.f32.mrb[0].mxu0
    %v4192 = vpop.f32.mrb[0].mxu0
    %4193 = vdwg.mxu0
    %4194 = vmatprep.subr.bf16.mxu0 0
    %4195 = vmatpush1.bf16.msra.mxu0 %v1667
    %4196 = vmatprep.subr.bf16.mxu0 0
    %4197 = vmatpush1.bf16.msra.mxu0 %v1668
    %4198 = vmatprep.subr.bf16.mxu0 0
    %4199 = vmatpush1.bf16.msra.mxu0 %v1669
    %4200 = vmatprep.subr.bf16.mxu0 0
    %4201 = vmatpush1.bf16.msra.mxu0 %v1670
    %4202 = vmatprep.subr.bf16.mxu0 0
    %4203 = vmatpush1.bf16.msra.mxu0 %v1671
    %4204 = vmatprep.subr.bf16.mxu0 0
    %4205 = vmatpush1.bf16.msra.mxu0 %v1672
    %4206 = vmatprep.subr.bf16.mxu0 0
    %4207 = vmatpush1.bf16.msra.mxu0 %v1673
    %4208 = vmatprep.subr.bf16.mxu0 0
    %4209 = vmatpush1.bf16.msra.mxu0 %v1674
    %4210 = vmatprep.subr.bf16.mxu0 0
    %4211 = vmatpush1.bf16.msra.mxu0 %v1675
    %4212 = vmatprep.subr.bf16.mxu0 0
    %4213 = vmatpush1.bf16.msra.mxu0 %v1676
    %4214 = vmatprep.subr.bf16.mxu0 0
    %4215 = vmatpush1.bf16.msra.mxu0 %v1677
    %4216 = vmatprep.subr.bf16.mxu0 0
    %4217 = vmatpush1.bf16.msra.mxu0 %v1678
    %4218 = vmatprep.subr.bf16.mxu0 0
    %4219 = vmatpush1.bf16.msra.mxu0 %v1679
    %4220 = vmatprep.subr.bf16.mxu0 0
    %4221 = vmatpush1.bf16.msra.mxu0 %v1680
    %4222 = vmatprep.subr.bf16.mxu0 0
    %4223 = vmatpush1.bf16.msra.mxu0 %v1681
    %4224 = vmatprep.subr.bf16.mxu0 0
    %4225 = vmatpush1.bf16.msra.mxu0 %v1682
    %4226 = vmatprep.mubr.bf16.mxu0 %v4103
    %4227 = vmatmul.mubr.bf16.gmra.mrb[0].mxu0 %v4102
    %v4228 = vpop.f32.mrb[0].mxu0
    %v4229 = vadd.f32 %v4189, %v4228
    %v4230 = vpop.f32.mrb[0].mxu0
    %v4231 = vpop.f32.mrb[0].mxu0
    %v4232 = vpop.f32.mrb[0].mxu0
    %4233 = vdwg.mxu0
    %4234 = vmatprep.subr.bf16.mxu0 0
    %4235 = vmatpush1.bf16.msra.mxu0 %v1683
    %4236 = vmatprep.subr.bf16.mxu0 0
    %4237 = vmatpush1.bf16.msra.mxu0 %v1684
    %4238 = vmatprep.subr.bf16.mxu0 0
    %4239 = vmatpush1.bf16.msra.mxu0 %v1685
    %4240 = vmatprep.subr.bf16.mxu0 0
    %4241 = vmatpush1.bf16.msra.mxu0 %v1686
    %4242 = vmatprep.subr.bf16.mxu0 0
    %4243 = vmatpush1.bf16.msra.mxu0 %v1687
    %4244 = vmatprep.subr.bf16.mxu0 0
    %4245 = vmatpush1.bf16.msra.mxu0 %v1688
    %4246 = vmatprep.subr.bf16.mxu0 0
    %4247 = vmatpush1.bf16.msra.mxu0 %v1689
    %4248 = vmatprep.subr.bf16.mxu0 0
    %4249 = vmatpush1.bf16.msra.mxu0 %v1690
    %4250 = vmatprep.subr.bf16.mxu0 0
    %4251 = vmatpush1.bf16.msra.mxu0 %v1691
    %4252 = vmatprep.subr.bf16.mxu0 0
    %4253 = vmatpush1.bf16.msra.mxu0 %v1692
    %4254 = vmatprep.subr.bf16.mxu0 0
    %4255 = vmatpush1.bf16.msra.mxu0 %v1693
    %4256 = vmatprep.subr.bf16.mxu0 0
    %4257 = vmatpush1.bf16.msra.mxu0 %v1694
    %4258 = vmatprep.subr.bf16.mxu0 0
    %4259 = vmatpush1.bf16.msra.mxu0 %v1695
    %4260 = vmatprep.subr.bf16.mxu0 0
    %4261 = vmatpush1.bf16.msra.mxu0 %v1696
    %4262 = vmatprep.subr.bf16.mxu0 0
    %4263 = vmatpush1.bf16.msra.mxu0 %v1697
    %4264 = vmatprep.subr.bf16.mxu0 0
    %4265 = vmatpush1.bf16.msra.mxu0 %v1698
    %4266 = vmatprep.mubr.bf16.mxu0 %v4105
    %4267 = vmatmul.mubr.bf16.gmra.mrb[0].mxu0 %v4104
    %v4268 = vpop.f32.mrb[0].mxu0
    %v4269 = vadd.f32 %v4229, %v4268
    %v4270 = vpop.f32.mrb[0].mxu0
    %v4271 = vpop.f32.mrb[0].mxu0
    %v4272 = vpop.f32.mrb[0].mxu0
    %4273 = vdwg.mxu0
    %4274 = vmatprep.subr.bf16.mxu0 0
    %4275 = vmatpush1.bf16.msra.mxu0 %v1699
    %4276 = vmatprep.subr.bf16.mxu0 0
    %4277 = vmatpush1.bf16.msra.mxu0 %v1700
    %4278 = vmatprep.subr.bf16.mxu0 0
    %4279 = vmatpush1.bf16.msra.mxu0 %v1701
    %4280 = vmatprep.subr.bf16.mxu0 0
    %4281 = vmatpush1.bf16.msra.mxu0 %v1702
    %4282 = vmatprep.subr.bf16.mxu0 0
    %4283 = vmatpush1.bf16.msra.mxu0 %v1703
    %4284 = vmatprep.subr.bf16.mxu0 0
    %4285 = vmatpush1.bf16.msra.mxu0 %v1704
    %4286 = vmatprep.subr.bf16.mxu0 0
    %4287 = vmatpush1.bf16.msra.mxu0 %v1705
    %4288 = vmatprep.subr.bf16.mxu0 0
    %4289 = vmatpush1.bf16.msra.mxu0 %v1706
    %4290 = vmatprep.subr.bf16.mxu0 0
    %4291 = vmatpush1.bf16.msra.mxu0 %v1707
    %4292 = vmatprep.subr.bf16.mxu0 0
    %4293 = vmatpush1.bf16.msra.mxu0 %v1708
    %4294 = vmatprep.subr.bf16.mxu0 0
    %4295 = vmatpush1.bf16.msra.mxu0 %v1709
    %4296 = vmatprep.subr.bf16.mxu0 0
    %4297 = vmatpush1.bf16.msra.mxu0 %v1710
    %4298 = vmatprep.subr.bf16.mxu0 0
    %4299 = vmatpush1.bf16.msra.mxu0 %v1711
    %4300 = vmatprep.subr.bf16.mxu0 0
    %4301 = vmatpush1.bf16.msra.mxu0 %v1712
    %4302 = vmatprep.subr.bf16.mxu0 0
    %4303 = vmatpush1.bf16.msra.mxu0 %v1713
    %4304 = vmatprep.subr.bf16.mxu0 0
    %4305 = vmatpush1.bf16.msra.mxu0 %v1714
    %4306 = vmatprep.mubr.bf16.mxu0 %v4107
    %4307 = vmatmul.mubr.bf16.gmra.mrb[0].mxu0 %v4106
    %v4308 = vpop.f32.mrb[0].mxu0
    %v4309 = vadd.f32 %v4269, %v4308
    %v4310 = vpop.f32.mrb[0].mxu0
    %v4311 = vpop.f32.mrb[0].mxu0
    %v4312 = vpop.f32.mrb[0].mxu0
    %4313 = vdwg.mxu0
    %4314 = vmatprep.subr.bf16.mxu0 0
    %4315 = vmatpush1.bf16.msra.mxu0 %v1715
    %4316 = vmatprep.subr.bf16.mxu0 0
    %4317 = vmatpush1.bf16.msra.mxu0 %v1716
    %4318 = vmatprep.subr.bf16.mxu0 0
    %4319 = vmatpush1.bf16.msra.mxu0 %v1717
    %4320 = vmatprep.subr.bf16.mxu0 0
    %4321 = vmatpush1.bf16.msra.mxu0 %v1718
    %4322 = vmatprep.subr.bf16.mxu0 0
    %4323 = vmatpush1.bf16.msra.mxu0 %v1719
    %4324 = vmatprep.subr.bf16.mxu0 0
    %4325 = vmatpush1.bf16.msra.mxu0 %v1720
    %4326 = vmatprep.subr.bf16.mxu0 0
    %4327 = vmatpush1.bf16.msra.mxu0 %v1721
    %4328 = vmatprep.subr.bf16.mxu0 0
    %4329 = vmatpush1.bf16.msra.mxu0 %v1722
    %4330 = vmatprep.subr.bf16.mxu0 0
    %4331 = vmatpush1.bf16.msra.mxu0 %v1723
    %4332 = vmatprep.subr.bf16.mxu0 0
    %4333 = vmatpush1.bf16.msra.mxu0 %v1724
    %4334 = vmatprep.subr.bf16.mxu0 0
    %4335 = vmatpush1.bf16.msra.mxu0 %v1725
    %4336 = vmatprep.subr.bf16.mxu0 0
    %4337 = vmatpush1.bf16.msra.mxu0 %v1726
    %4338 = vmatprep.subr.bf16.mxu0 0
    %4339 = vmatpush1.bf16.msra.mxu0 %v1727
    %4340 = vmatprep.subr.bf16.mxu0 0
    %4341 = vmatpush1.bf16.msra.mxu0 %v1728
    %4342 = vmatprep.subr.bf16.mxu0 0
    %4343 = vmatpush1.bf16.msra.mxu0 %v1729
    %4344 = vmatprep.subr.bf16.mxu0 0
    %4345 = vmatpush1.bf16.msra.mxu0 %v1730
    %4346 = vmatprep.mubr.bf16.mxu0 %v4109
    %4347 = vmatmul.mubr.bf16.gmra.mrb[0].mxu0 %v4108
    %v4348 = vpop.f32.mrb[0].mxu0
    %v4349 = vadd.f32 %v4309, %v4348
    %v4350 = vpop.f32.mrb[0].mxu0
    %v4351 = vpop.f32.mrb[0].mxu0
    %v4352 = vpop.f32.mrb[0].mxu0
    %4353 = vdwg.mxu0
    %4354 = vmatprep.subr.bf16.mxu0 0
    %4355 = vmatpush1.bf16.msra.mxu0 %v1731
    %4356 = vmatprep.subr.bf16.mxu0 0
    %4357 = vmatpush1.bf16.msra.mxu0 %v1732
    %4358 = vmatprep.subr.bf16.mxu0 0
    %4359 = vmatpush1.bf16.msra.mxu0 %v1733
    %4360 = vmatprep.subr.bf16.mxu0 0
    %4361 = vmatpush1.bf16.msra.mxu0 %v1734
    %4362 = vmatprep.subr.bf16.mxu0 0
    %4363 = vmatpush1.bf16.msra.mxu0 %v1735
    %4364 = vmatprep.subr.bf16.mxu0 0
    %4365 = vmatpush1.bf16.msra.mxu0 %v1736
    %4366 = vmatprep.subr.bf16.mxu0 0
    %4367 = vmatpush1.bf16.msra.mxu0 %v1737
    %4368 = vmatprep.subr.bf16.mxu0 0
    %4369 = vmatpush1.bf16.msra.mxu0 %v1738
    %4370 = vmatprep.subr.bf16.mxu0 0
    %4371 = vmatpush1.bf16.msra.mxu0 %v1739
    %4372 = vmatprep.subr.bf16.mxu0 0
    %4373 = vmatpush1.bf16.msra.mxu0 %v1740
    %4374 = vmatprep.subr.bf16.mxu0 0
    %4375 = vmatpush1.bf16.msra.mxu0 %v1741
    %4376 = vmatprep.subr.bf16.mxu0 0
    %4377 = vmatpush1.bf16.msra.mxu0 %v1742
    %4378 = vmatprep.subr.bf16.mxu0 0
    %4379 = vmatpush1.bf16.msra.mxu0 %v1743
    %4380 = vmatprep.subr.bf16.mxu0 0
    %4381 = vmatpush1.bf16.msra.mxu0 %v1744
    %4382 = vmatprep.subr.bf16.mxu0 0
    %4383 = vmatpush1.bf16.msra.mxu0 %v1745
    %4384 = vmatprep.subr.bf16.mxu0 0
    %4385 = vmatpush1.bf16.msra.mxu0 %v1746
    %4386 = vmatprep.mubr.bf16.mxu0 %v4111
    %4387 = vmatmul.mubr.bf16.gmra.mrb[0].mxu0 %v4110
    %v4388 = vpop.f32.mrb[0].mxu0
    %v4389 = vadd.f32 %v4349, %v4388
    %v4390 = vpop.f32.mrb[0].mxu0
    %v4391 = vpop.f32.mrb[0].mxu0
    %v4392 = vpop.f32.mrb[0].mxu0
    %4393 = vdwg.mxu0
    %4394 = vmatprep.subr.bf16.mxu0 0
    %4395 = vmatpush1.bf16.msra.mxu0 %v1747
    %4396 = vmatprep.subr.bf16.mxu0 0
    %4397 = vmatpush1.bf16.msra.mxu0 %v1748
    %4398 = vmatprep.subr.bf16.mxu0 0
    %4399 = vmatpush1.bf16.msra.mxu0 %v1749
    %4400 = vmatprep.subr.bf16.mxu0 0
    %4401 = vmatpush1.bf16.msra.mxu0 %v1750
    %4402 = vmatprep.subr.bf16.mxu0 0
    %4403 = vmatpush1.bf16.msra.mxu0 %v1751
    %4404 = vmatprep.subr.bf16.mxu0 0
    %4405 = vmatpush1.bf16.msra.mxu0 %v1752
    %4406 = vmatprep.subr.bf16.mxu0 0
    %4407 = vmatpush1.bf16.msra.mxu0 %v1753
    %4408 = vmatprep.subr.bf16.mxu0 0
    %4409 = vmatpush1.bf16.msra.mxu0 %v1754
    %4410 = vmatprep.subr.bf16.mxu0 0
    %4411 = vmatpush1.bf16.msra.mxu0 %v1755
    %4412 = vmatprep.subr.bf16.mxu0 0
    %4413 = vmatpush1.bf16.msra.mxu0 %v1756
    %4414 = vmatprep.subr.bf16.mxu0 0
    %4415 = vmatpush1.bf16.msra.mxu0 %v1757
    %4416 = vmatprep.subr.bf16.mxu0 0
    %4417 = vmatpush1.bf16.msra.mxu0 %v1758
    %4418 = vmatprep.subr.bf16.mxu0 0
    %4419 = vmatpush1.bf16.msra.mxu0 %v1759
    %4420 = vmatprep.subr.bf16.mxu0 0
    %4421 = vmatpush1.bf16.msra.mxu0 %v1760
    %4422 = vmatprep.subr.bf16.mxu0 0
    %4423 = vmatpush1.bf16.msra.mxu0 %v1761
    %4424 = vmatprep.subr.bf16.mxu0 0
    %4425 = vmatpush1.bf16.msra.mxu0 %v1762
    %4426 = vmatprep.mubr.bf16.mxu0 %v4113
    %4427 = vmatmul.mubr.bf16.gmra.mrb[0].mxu0 %v4112
    %v4428 = vpop.f32.mrb[0].mxu0
    %v4429 = vadd.f32 %v4389, %v4428
    %v4430 = vpop.f32.mrb[0].mxu0
    %v4431 = vpop.f32.mrb[0].mxu0
    %v4432 = vpop.f32.mrb[0].mxu0
    %4433 = vdwg.mxu0
    %v4434 = vld [vmem:[%s6 + $0x11] sm:$0x1]
    %v4435 = vlaneseq
    %v4436 = vshrl.u32 %v4435, 7
    %v4437 = vsub.s32 0, %v4436
    %v4438 = vrot.slane %v4434, %v4437
    %4440 = vrot.lane.b32.xlu0 %v4438, 64
    %v4441 = vpop.permute.xlu0 %4440
    %v4443 = vadd.f32 %v4429, %v4441
    %4445 = vrot.lane.b32.xlu0 %v4443, 64
    %v4446 = vpop.permute.xlu0 %4445
    %v4448 = vadd.f32 %v3470, %v4446
    %v4449 = vsel %vm405, %v4448, 0.0
    %4450 = vadd.xlane.f32.xlu0 %v4449
    %v4451 = vpop.xlane.xlu0 %4450
    %v4452 = vmul.f32 %v4451, %v459
    %v4453 = vsub.f32 %v4448, %v4452
    %v4454 = vmul.f32 %v4453, %v4453
    %v4455 = vsel %vm405, %v4454, 0.0
    %4456 = vadd.xlane.f32.xlu0 %v4455
    %v4457 = vpop.xlane.xlu0 %4456
    %v4458 = vmul.f32 %v4457, %v459
    %v4459 = vadd.f32 %v4458, 1e-05
    %v4460 = vrsqrt.pop %v4459
    %v4461 = vmul.f32 %v4453, %v4460
    %v4462 = vld [vmem:[%s6 + $0x16] sm:$0x1]
    %v4463 = vlaneseq
    %v4464 = vshrl.u32 %v4463, 7
    %v4465 = vsub.s32 0, %v4464
    %v4466 = vrot.slane %v4462, %v4465
    %v4467 = vmul.f32 %v4461, %v4466
    %v4468 = vld [vmem:[%s6 + $0x17] sm:$0x1]
    %v4469 = vlaneseq
    %v4470 = vshrl.u32 %v4469, 7
    %v4471 = vsub.s32 0, %v4470
    %v4472 = vrot.slane %v4468, %v4471
    %v4473 = vadd.f32 %v4467, %v4472
    %v4474 = vpack.c.bf16 %v4473, %v4473
    %v4476 = vsel %vm405, %v4474, 0
    %4478 = vmatprep.subr.bf16.mxu0 %v398
    %4479 = vmatpush1.bf16.msra.mxu0 %v397
    %4480 = vmatprep.subr.bf16.mxu0 %v400
    %4481 = vmatpush1.bf16.msra.mxu0 %v399
    %4482 = vmatprep.subr.bf16.mxu0 0
    %4483 = vmatpush1.bf16.msra.mxu0 0
    %4484 = vmatprep.subr.bf16.mxu0 0
    %4485 = vmatpush1.bf16.msra.mxu0 0
    %4486 = vmatprep.subr.bf16.mxu0 0
    %4487 = vmatpush1.bf16.msra.mxu0 0
    %4488 = vmatprep.subr.bf16.mxu0 0
    %4489 = vmatpush1.bf16.msra.mxu0 0
    %4490 = vmatprep.subr.bf16.mxu0 0
    %4491 = vmatpush1.bf16.msra.mxu0 0
    %4492 = vmatprep.subr.bf16.mxu0 0
    %4493 = vmatpush1.bf16.msra.mxu0 0
    %4494 = vmatprep.subr.bf16.mxu0 0
    %4495 = vmatpush1.bf16.msra.mxu0 0
    %4496 = vmatprep.subr.bf16.mxu0 0
    %4497 = vmatpush1.bf16.msra.mxu0 0
    %4498 = vmatprep.subr.bf16.mxu0 0
    %4499 = vmatpush1.bf16.msra.mxu0 0
    %4500 = vmatprep.subr.bf16.mxu0 0
    %4501 = vmatpush1.bf16.msra.mxu0 0
    %4502 = vmatprep.subr.bf16.mxu0 0
    %4503 = vmatpush1.bf16.msra.mxu0 0
    %4504 = vmatprep.subr.bf16.mxu0 0
    %4505 = vmatpush1.bf16.msra.mxu0 0
    %4506 = vmatprep.subr.bf16.mxu0 0
    %4507 = vmatpush1.bf16.msra.mxu0 0
    %4508 = vmatprep.subr.bf16.mxu0 0
    %4509 = vmatpush1.bf16.msra.mxu0 0
    %4510 = vmatprep.mubr.bf16.mxu0 0
    %4511 = vmatmul.mubr.bf16.gmra.mrb[0].mxu0 %v4476
    %v4512 = vpop.f32.mrb[0].mxu0
    %v4513 = vadd.f32 0.0, %v4512
    %v4514 = vpop.f32.mrb[0].mxu0
    %v4515 = vpop.f32.mrb[0].mxu0
    %v4516 = vpop.f32.mrb[0].mxu0
    %4517 = vdwg.mxu0
    %v4518 = vld [vmem:[%s6 + $0x18] sm:$0x1]
    %v4519 = vlaneseq
    %v4520 = vshrl.u32 %v4519, 7
    %v4521 = vsub.s32 0, %v4520
    %v4522 = vrot.slane %v4518, %v4521
    %4524 = vrot.lane.b32.xlu0 %v4522, 96
    %v4525 = vpop.permute.xlu0 %4524
    %v4527 = vadd.f32 %v4513, %v4525
    %4529 = vrot.lane.b32.xlu0 %v4527, 32
    %v4530 = vpop.permute.xlu0 %4529
    %v4532 = vadd.f32 %v4473, %v4530
    %v4533 = vsel %vm405, %v4532, 0.0
    %4534 = vadd.xlane.f32.xlu0 %v4533
    %v4535 = vpop.xlane.xlu0 %4534
    %v4536 = vmul.f32 %v4535, %v459
    %v4537 = vsub.f32 %v4532, %v4536
    %v4538 = vmul.f32 %v4537, %v4537
    %v4539 = vsel %vm405, %v4538, 0.0
    %4540 = vadd.xlane.f32.xlu0 %v4539
    %v4541 = vpop.xlane.xlu0 %4540
    %v4542 = vmul.f32 %v4541, %v459
    %v4543 = vadd.f32 %v4542, 1e-05
    %v4544 = vrsqrt.pop %v4543
    %v4545 = vmul.f32 %v4537, %v4544
    %v4546 = vld [vmem:[%s6 + $0x1b] sm:$0x1]
    %v4547 = vlaneseq
    %v4548 = vshrl.u32 %v4547, 7
    %v4549 = vsub.s32 0, %v4548
    %v4550 = vrot.slane %v4546, %v4549
    %v4551 = vmul.f32 %v4545, %v4550
    %v4552 = vld [vmem:[%s6 + $0x1c] sm:$0x1]
    %v4553 = vlaneseq
    %v4554 = vshrl.u32 %v4553, 7
    %v4555 = vsub.s32 0, %v4554
    %v4556 = vrot.slane %v4552, %v4555
    %v4557 = vadd.f32 %v4551, %v4556
    %v4558 = vld [vmem:[%s6 + $0x19] sm:$0x1]
    %v4559 = vlaneseq
    %v4560 = vshrl.u32 %v4559, 7
    %v4561 = vsub.s32 0, %v4560
    %v4562 = vrot.slane %v4558, %v4561
    %4564 = vrot.lane.b32.xlu0 %v4562, 32
    %v4565 = vpop.permute.xlu0 %4564
    %v4567 = vadd.f32 %v3395, %v4565
    %4569 = vrot.lane.b32.xlu0 %v4567, 96
    %v4570 = vpop.permute.xlu0 %4569
    %v4572 = vadd.f32 %v4557, %v4570
    %v4573 = vsel %vm405, %v4572, 0.0
    %4574 = vadd.xlane.f32.xlu0 %v4573
    %v4575 = vpop.xlane.xlu0 %4574
    %v4576 = vmul.f32 %v4575, %v459
    %v4577 = vsub.f32 %v4572, %v4576
    %v4578 = vmul.f32 %v4577, %v4577
    %v4579 = vsel %vm405, %v4578, 0.0
    %4580 = vadd.xlane.f32.xlu0 %v4579
    %v4581 = vpop.xlane.xlu0 %4580
    %v4582 = vmul.f32 %v4581, %v459
    %v4583 = vadd.f32 %v4582, 1e-05
    %v4584 = vrsqrt.pop %v4583
    %v4585 = vmul.f32 %v4577, %v4584
    %v4586 = vld [vmem:[%s6 + $0x1d] sm:$0x1]
    %v4587 = vlaneseq
    %v4588 = vshrl.u32 %v4587, 7
    %v4589 = vsub.s32 0, %v4588
    %v4590 = vrot.slane %v4586, %v4589
    %v4591 = vmul.f32 %v4585, %v4590
    %v4592 = vld [vmem:[%s6 + $0x1e] sm:$0x1]
    %v4593 = vlaneseq
    %v4594 = vshrl.u32 %v4593, 7
    %v4595 = vsub.s32 0, %v4594
    %v4596 = vrot.slane %v4592, %v4595
    %v4597 = vadd.f32 %v4591, %v4596
    %v4598 = vpack.c.bf16 %v4597, %v4597
    %s4599 = scalar_lea.vmem [#allocation4], 768
    %v4600 = vld [vmem:[%s4599] sm:$0xff]
    %v4601 = vld [vmem:[%s4599 + $0x8] sm:$0xff]
    %v4602 = vld [vmem:[%s4599 + $0x10] sm:$0xff]
    %v4603 = vld [vmem:[%s4599 + $0x18] sm:$0xff]
    %v4604 = vld [vmem:[%s4599 + $0x20] sm:$0xff]
    %v4605 = vld [vmem:[%s4599 + $0x28] sm:$0xff]
    %v4606 = vld [vmem:[%s4599 + $0x30] sm:$0xff]
    %v4607 = vld [vmem:[%s4599 + $0x38] sm:$0xff]
    %v4608 = vld [vmem:[%s4599 + $0x40] sm:$0xff]
    %v4609 = vld [vmem:[%s4599 + $0x48] sm:$0xff]
    %v4610 = vld [vmem:[%s4599 + $0x50] sm:$0xff]
    %v4611 = vld [vmem:[%s4599 + $0x58] sm:$0xff]
    %v4612 = vld [vmem:[%s4599 + $0x60] sm:$0xff]
    %v4613 = vld [vmem:[%s4599 + $0x68] sm:$0xff]
    %v4614 = vld [vmem:[%s4599 + $0x70] sm:$0xff]
    %v4615 = vld [vmem:[%s4599 + $0x78] sm:$0xff]
    %v4616 = vld [vmem:[%s4599 + $0x80] sm:$0xff]
    %v4617 = vld [vmem:[%s4599 + $0x88] sm:$0xff]
    %v4618 = vld [vmem:[%s4599 + $0x90] sm:$0xff]
    %v4619 = vld [vmem:[%s4599 + $0x98] sm:$0xff]
    %v4620 = vld [vmem:[%s4599 + $0xa0] sm:$0xff]
    %v4621 = vld [vmem:[%s4599 + $0xa8] sm:$0xff]
    %v4622 = vld [vmem:[%s4599 + $0xb0] sm:$0xff]
    %v4623 = vld [vmem:[%s4599 + $0xb8] sm:$0xff]
    %v4624 = vld [vmem:[%s4599 + $0xc0] sm:$0xff]
    %v4625 = vld [vmem:[%s4599 + $0xc8] sm:$0xff]
    %v4626 = vld [vmem:[%s4599 + $0xd0] sm:$0xff]
    %v4627 = vld [vmem:[%s4599 + $0xd8] sm:$0xff]
    %v4628 = vld [vmem:[%s4599 + $0xe0] sm:$0xff]
    %v4629 = vld [vmem:[%s4599 + $0xe8] sm:$0xff]
    %v4630 = vld [vmem:[%s4599 + $0xf0] sm:$0xff]
    %v4631 = vld [vmem:[%s4599 + $0xf8] sm:$0xff]
    %s4632 = scalar_lea.vmem %s4, 3
    %v4633 = vld [vmem:[%s4632] ss:$4 sm:$0xff]
    %s4634 = scalar_lea.vmem %s4, 35
    %v4635 = vld [vmem:[%s4634] ss:$4 sm:$0xff]
    %v4638 = vlaneseq
    %v4639 = vshrl.u32 %v4638, 7
    %v4640 = vsub.s32 0, %v4639
    %v4641 = vrot.slane %v4633, %v4640
    %v4642 = vlaneseq
    %v4643 = vshrl.u32 %v4642, 7
    %v4644 = vsub.s32 1, %v4643
    %v4645 = vrot.slane %v4633, %v4644
    %v4646 = vlaneseq
    %v4647 = vshrl.u32 %v4646, 7
    %v4648 = vsub.s32 2, %v4647
    %v4649 = vrot.slane %v4633, %v4648
    %v4650 = vlaneseq
    %v4651 = vshrl.u32 %v4650, 7
    %v4652 = vsub.s32 3, %v4651
    %v4653 = vrot.slane %v4633, %v4652
    %v4654 = vlaneseq
    %v4655 = vshrl.u32 %v4654, 7
    %v4656 = vsub.s32 4, %v4655
    %v4657 = vrot.slane %v4633, %v4656
    %v4658 = vlaneseq
    %v4659 = vshrl.u32 %v4658, 7
    %v4660 = vsub.s32 5, %v4659
    %v4661 = vrot.slane %v4633, %v4660
    %v4662 = vlaneseq
    %v4663 = vshrl.u32 %v4662, 7
    %v4664 = vsub.s32 6, %v4663
    %v4665 = vrot.slane %v4633, %v4664
    %v4666 = vlaneseq
    %v4667 = vshrl.u32 %v4666, 7
    %v4668 = vsub.s32 7, %v4667
    %v4669 = vrot.slane %v4633, %v4668
    %v4670 = vlaneseq
    %v4671 = vshrl.u32 %v4670, 7
    %v4672 = vsub.s32 0, %v4671
    %v4673 = vrot.slane %v4635, %v4672
    %v4674 = vlaneseq
    %v4675 = vshrl.u32 %v4674, 7
    %v4676 = vsub.s32 1, %v4675
    %v4677 = vrot.slane %v4635, %v4676
    %v4678 = vlaneseq
    %v4679 = vshrl.u32 %v4678, 7
    %v4680 = vsub.s32 2, %v4679
    %v4681 = vrot.slane %v4635, %v4680
    %v4682 = vlaneseq
    %v4683 = vshrl.u32 %v4682, 7
    %v4684 = vsub.s32 3, %v4683
    %v4685 = vrot.slane %v4635, %v4684
    %v4686 = vlaneseq
    %v4687 = vshrl.u32 %v4686, 7
    %v4688 = vsub.s32 4, %v4687
    %v4689 = vrot.slane %v4635, %v4688
    %v4690 = vlaneseq
    %v4691 = vshrl.u32 %v4690, 7
    %v4692 = vsub.s32 5, %v4691
    %v4693 = vrot.slane %v4635, %v4692
    %v4694 = vlaneseq
    %v4695 = vshrl.u32 %v4694, 7
    %v4696 = vsub.s32 6, %v4695
    %v4697 = vrot.slane %v4635, %v4696
    %v4698 = vlaneseq
    %v4699 = vshrl.u32 %v4698, 7
    %v4700 = vsub.s32 7, %v4699
    %v4701 = vrot.slane %v4635, %v4700
    %v4750 = vunpack.c.l.b16 %v4600
    %v4751 = vunpack.c.h.b16 %v4600
    %v4752 = vunpack.c.l.b16 %v4601
    %v4753 = vunpack.c.h.b16 %v4601
    %v4754 = vunpack.c.l.b16 %v4602
    %v4755 = vunpack.c.h.b16 %v4602
    %v4756 = vunpack.c.l.b16 %v4603
    %v4757 = vunpack.c.h.b16 %v4603
    %v4758 = vunpack.c.l.b16 %v4604
    %v4759 = vunpack.c.h.b16 %v4604
    %v4760 = vunpack.c.l.b16 %v4605
    %v4761 = vunpack.c.h.b16 %v4605
    %v4762 = vunpack.c.l.b16 %v4606
    %v4763 = vunpack.c.h.b16 %v4606
    %v4764 = vunpack.c.l.b16 %v4607
    %v4765 = vunpack.c.h.b16 %v4607
    %v4766 = vunpack.c.l.b16 %v4608
    %v4767 = vunpack.c.h.b16 %v4608
    %v4768 = vunpack.c.l.b16 %v4609
    %v4769 = vunpack.c.h.b16 %v4609
    %v4770 = vunpack.c.l.b16 %v4610
    %v4771 = vunpack.c.h.b16 %v4610
    %v4772 = vunpack.c.l.b16 %v4611
    %v4773 = vunpack.c.h.b16 %v4611
    %v4774 = vunpack.c.l.b16 %v4612
    %v4775 = vunpack.c.h.b16 %v4612
    %v4776 = vunpack.c.l.b16 %v4613
    %v4777 = vunpack.c.h.b16 %v4613
    %v4778 = vunpack.c.l.b16 %v4614
    %v4779 = vunpack.c.h.b16 %v4614
    %v4780 = vunpack.c.l.b16 %v4615
    %v4781 = vunpack.c.h.b16 %v4615
    %v4782 = vunpack.c.l.b16 %v4616
    %v4783 = vunpack.c.h.b16 %v4616
    %v4784 = vunpack.c.l.b16 %v4617
    %v4785 = vunpack.c.h.b16 %v4617
    %v4786 = vunpack.c.l.b16 %v4618
    %v4787 = vunpack.c.h.b16 %v4618
    %v4788 = vunpack.c.l.b16 %v4619
    %v4789 = vunpack.c.h.b16 %v4619
    %v4790 = vunpack.c.l.b16 %v4620
    %v4791 = vunpack.c.h.b16 %v4620
    %v4792 = vunpack.c.l.b16 %v4621
    %v4793 = vunpack.c.h.b16 %v4621
    %v4794 = vunpack.c.l.b16 %v4622
    %v4795 = vunpack.c.h.b16 %v4622
    %v4796 = vunpack.c.l.b16 %v4623
    %v4797 = vunpack.c.h.b16 %v4623
    %v4798 = vunpack.c.l.b16 %v4624
    %v4799 = vunpack.c.h.b16 %v4624
    %v4800 = vunpack.c.l.b16 %v4625
    %v4801 = vunpack.c.h.b16 %v4625
    %v4802 = vunpack.c.l.b16 %v4626
    %v4803 = vunpack.c.h.b16 %v4626
    %v4804 = vunpack.c.l.b16 %v4627
    %v4805 = vunpack.c.h.b16 %v4627
    %v4806 = vunpack.c.l.b16 %v4628
    %v4807 = vunpack.c.h.b16 %v4628
    %v4808 = vunpack.c.l.b16 %v4629
    %v4809 = vunpack.c.h.b16 %v4629
    %v4810 = vunpack.c.l.b16 %v4630
    %v4811 = vunpack.c.h.b16 %v4630
    %v4812 = vunpack.c.l.b16 %v4631
    %v4813 = vunpack.c.h.b16 %v4631
    %v4814 = vpack.c.b16 %v4766, %v4750
    %v4815 = vpack.c.b16 %v4767, %v4751
    %v4816 = vpack.c.b16 %v4768, %v4752
    %v4817 = vpack.c.b16 %v4769, %v4753
    %v4818 = vpack.c.b16 %v4770, %v4754
    %v4819 = vpack.c.b16 %v4771, %v4755
    %v4820 = vpack.c.b16 %v4772, %v4756
    %v4821 = vpack.c.b16 %v4773, %v4757
    %v4822 = vpack.c.b16 %v4774, %v4758
    %v4823 = vpack.c.b16 %v4775, %v4759
    %v4824 = vpack.c.b16 %v4776, %v4760
    %v4825 = vpack.c.b16 %v4777, %v4761
    %v4826 = vpack.c.b16 %v4778, %v4762
    %v4827 = vpack.c.b16 %v4779, %v4763
    %v4828 = vpack.c.b16 %v4780, %v4764
    %v4829 = vpack.c.b16 %v4781, %v4765
    %v4830 = vpack.c.b16 %v4798, %v4782
    %v4831 = vpack.c.b16 %v4799, %v4783
    %v4832 = vpack.c.b16 %v4800, %v4784
    %v4833 = vpack.c.b16 %v4801, %v4785
    %v4834 = vpack.c.b16 %v4802, %v4786
    %v4835 = vpack.c.b16 %v4803, %v4787
    %v4836 = vpack.c.b16 %v4804, %v4788
    %v4837 = vpack.c.b16 %v4805, %v4789
    %v4838 = vpack.c.b16 %v4806, %v4790
    %v4839 = vpack.c.b16 %v4807, %v4791
    %v4840 = vpack.c.b16 %v4808, %v4792
    %v4841 = vpack.c.b16 %v4809, %v4793
    %v4842 = vpack.c.b16 %v4810, %v4794
    %v4843 = vpack.c.b16 %v4811, %v4795
    %v4844 = vpack.c.b16 %v4812, %v4796
    %v4845 = vpack.c.b16 %v4813, %v4797
    %v4879 = vsel %vm405, %v4598, 0
    %4881 = vmatprep.subr.bf16.mxu0 %v4815
    %4882 = vmatpush1.bf16.msra.mxu0 %v4814
    %4883 = vmatprep.subr.bf16.mxu0 %v4831
    %4884 = vmatpush1.bf16.msra.mxu0 %v4830
    %4885 = vmatprep.subr.bf16.mxu0 0
    %4886 = vmatpush1.bf16.msra.mxu0 0
    %4887 = vmatprep.subr.bf16.mxu0 0
    %4888 = vmatpush1.bf16.msra.mxu0 0
    %4889 = vmatprep.subr.bf16.mxu0 0
    %4890 = vmatpush1.bf16.msra.mxu0 0
    %4891 = vmatprep.subr.bf16.mxu0 0
    %4892 = vmatpush1.bf16.msra.mxu0 0
    %4893 = vmatprep.subr.bf16.mxu0 0
    %4894 = vmatpush1.bf16.msra.mxu0 0
    %4895 = vmatprep.subr.bf16.mxu0 0
    %4896 = vmatpush1.bf16.msra.mxu0 0
    %4897 = vmatprep.subr.bf16.mxu0 0
    %4898 = vmatpush1.bf16.msra.mxu0 0
    %4899 = vmatprep.subr.bf16.mxu0 0
    %4900 = vmatpush1.bf16.msra.mxu0 0
    %4901 = vmatprep.subr.bf16.mxu0 0
    %4902 = vmatpush1.bf16.msra.mxu0 0
    %4903 = vmatprep.subr.bf16.mxu0 0
    %4904 = vmatpush1.bf16.msra.mxu0 0
    %4905 = vmatprep.subr.bf16.mxu0 0
    %4906 = vmatpush1.bf16.msra.mxu0 0
    %4907 = vmatprep.subr.bf16.mxu0 0
    %4908 = vmatpush1.bf16.msra.mxu0 0
    %4909 = vmatprep.subr.bf16.mxu0 0
    %4910 = vmatpush1.bf16.msra.mxu0 0
    %4911 = vmatprep.subr.bf16.mxu0 0
    %4912 = vmatpush1.bf16.msra.mxu0 0
    %4913 = vmatprep.mubr.bf16.mxu0 0
    %4914 = vmatmul.mubr.bf16.gmra.mrb[0].mxu0 %v4879
    %v4915 = vpop.f32.mrb[0].mxu0
    %v4916 = vadd.f32 %v4641, %v4915
    %v4917 = vpop.f32.mrb[0].mxu0
    %v4918 = vadd.f32 %v4645, %v4917
    %v4919 = vpop.f32.mrb[0].mxu0
    %v4920 = vpop.f32.mrb[0].mxu0
    %4921 = vdwg.mxu0
    %4922 = vmatprep.subr.bf16.mxu0 %v4817
    %4923 = vmatpush1.bf16.msra.mxu0 %v4816
    %4924 = vmatprep.subr.bf16.mxu0 %v4833
    %4925 = vmatpush1.bf16.msra.mxu0 %v4832
    %4926 = vmatprep.subr.bf16.mxu0 0
    %4927 = vmatpush1.bf16.msra.mxu0 0
    %4928 = vmatprep.subr.bf16.mxu0 0
    %4929 = vmatpush1.bf16.msra.mxu0 0
    %4930 = vmatprep.subr.bf16.mxu0 0
    %4931 = vmatpush1.bf16.msra.mxu0 0
    %4932 = vmatprep.subr.bf16.mxu0 0
    %4933 = vmatpush1.bf16.msra.mxu0 0
    %4934 = vmatprep.subr.bf16.mxu0 0
    %4935 = vmatpush1.bf16.msra.mxu0 0
    %4936 = vmatprep.subr.bf16.mxu0 0
    %4937 = vmatpush1.bf16.msra.mxu0 0
    %4938 = vmatprep.subr.bf16.mxu0 0
    %4939 = vmatpush1.bf16.msra.mxu0 0
    %4940 = vmatprep.subr.bf16.mxu0 0
    %4941 = vmatpush1.bf16.msra.mxu0 0
    %4942 = vmatprep.subr.bf16.mxu0 0
    %4943 = vmatpush1.bf16.msra.mxu0 0
    %4944 = vmatprep.subr.bf16.mxu0 0
    %4945 = vmatpush1.bf16.msra.mxu0 0
    %4946 = vmatprep.subr.bf16.mxu0 0
    %4947 = vmatpush1.bf16.msra.mxu0 0
    %4948 = vmatprep.subr.bf16.mxu0 0
    %4949 = vmatpush1.bf16.msra.mxu0 0
    %4950 = vmatprep.subr.bf16.mxu0 0
    %4951 = vmatpush1.bf16.msra.mxu0 0
    %4952 = vmatprep.subr.bf16.mxu0 0
    %4953 = vmatpush1.bf16.msra.mxu0 0
    %4954 = vmatprep.mubr.bf16.mxu0 0
    %4955 = vmatmul.mubr.bf16.gmra.mrb[0].mxu0 %v4879
    %v4956 = vpop.f32.mrb[0].mxu0
    %v4957 = vadd.f32 %v4649, %v4956
    %v4958 = vpop.f32.mrb[0].mxu0
    %v4959 = vadd.f32 %v4653, %v4958
    %v4960 = vpop.f32.mrb[0].mxu0
    %v4961 = vpop.f32.mrb[0].mxu0
    %4962 = vdwg.mxu0
    %4963 = vmatprep.subr.bf16.mxu0 %v4819
    %4964 = vmatpush1.bf16.msra.mxu0 %v4818
    %4965 = vmatprep.subr.bf16.mxu0 %v4835
    %4966 = vmatpush1.bf16.msra.mxu0 %v4834
    %4967 = vmatprep.subr.bf16.mxu0 0
    %4968 = vmatpush1.bf16.msra.mxu0 0
    %4969 = vmatprep.subr.bf16.mxu0 0
    %4970 = vmatpush1.bf16.msra.mxu0 0
    %4971 = vmatprep.subr.bf16.mxu0 0
    %4972 = vmatpush1.bf16.msra.mxu0 0
    %4973 = vmatprep.subr.bf16.mxu0 0
    %4974 = vmatpush1.bf16.msra.mxu0 0
    %4975 = vmatprep.subr.bf16.mxu0 0
    %4976 = vmatpush1.bf16.msra.mxu0 0
    %4977 = vmatprep.subr.bf16.mxu0 0
    %4978 = vmatpush1.bf16.msra.mxu0 0
    %4979 = vmatprep.subr.bf16.mxu0 0
    %4980 = vmatpush1.bf16.msra.mxu0 0
    %4981 = vmatprep.subr.bf16.mxu0 0
    %4982 = vmatpush1.bf16.msra.mxu0 0
    %4983 = vmatprep.subr.bf16.mxu0 0
    %4984 = vmatpush1.bf16.msra.mxu0 0
    %4985 = vmatprep.subr.bf16.mxu0 0
    %4986 = vmatpush1.bf16.msra.mxu0 0
    %4987 = vmatprep.subr.bf16.mxu0 0
    %4988 = vmatpush1.bf16.msra.mxu0 0
    %4989 = vmatprep.subr.bf16.mxu0 0
    %4990 = vmatpush1.bf16.msra.mxu0 0
    %4991 = vmatprep.subr.bf16.mxu0 0
    %4992 = vmatpush1.bf16.msra.mxu0 0
    %4993 = vmatprep.subr.bf16.mxu0 0
    %4994 = vmatpush1.bf16.msra.mxu0 0
    %4995 = vmatprep.mubr.bf16.mxu0 0
    %4996 = vmatmul.mubr.bf16.gmra.mrb[0].mxu0 %v4879
    %v4997 = vpop.f32.mrb[0].mxu0
    %v4998 = vadd.f32 %v4657, %v4997
    %v4999 = vpop.f32.mrb[0].mxu0
    %v5000 = vadd.f32 %v4661, %v4999
    %v5001 = vpop.f32.mrb[0].mxu0
    %v5002 = vpop.f32.mrb[0].mxu0
    %5003 = vdwg.mxu0
    %5004 = vmatprep.subr.bf16.mxu0 %v4821
    %5005 = vmatpush1.bf16.msra.mxu0 %v4820
    %5006 = vmatprep.subr.bf16.mxu0 %v4837
    %5007 = vmatpush1.bf16.msra.mxu0 %v4836
    %5008 = vmatprep.subr.bf16.mxu0 0
    %5009 = vmatpush1.bf16.msra.mxu0 0
    %5010 = vmatprep.subr.bf16.mxu0 0
    %5011 = vmatpush1.bf16.msra.mxu0 0
    %5012 = vmatprep.subr.bf16.mxu0 0
    %5013 = vmatpush1.bf16.msra.mxu0 0
    %5014 = vmatprep.subr.bf16.mxu0 0
    %5015 = vmatpush1.bf16.msra.mxu0 0
    %5016 = vmatprep.subr.bf16.mxu0 0
    %5017 = vmatpush1.bf16.msra.mxu0 0
    %5018 = vmatprep.subr.bf16.mxu0 0
    %5019 = vmatpush1.bf16.msra.mxu0 0
    %5020 = vmatprep.subr.bf16.mxu0 0
    %5021 = vmatpush1.bf16.msra.mxu0 0
    %5022 = vmatprep.subr.bf16.mxu0 0
    %5023 = vmatpush1.bf16.msra.mxu0 0
    %5024 = vmatprep.subr.bf16.mxu0 0
    %5025 = vmatpush1.bf16.msra.mxu0 0
    %5026 = vmatprep.subr.bf16.mxu0 0
    %5027 = vmatpush1.bf16.msra.mxu0 0
    %5028 = vmatprep.subr.bf16.mxu0 0
    %5029 = vmatpush1.bf16.msra.mxu0 0
    %5030 = vmatprep.subr.bf16.mxu0 0
    %5031 = vmatpush1.bf16.msra.mxu0 0
    %5032 = vmatprep.subr.bf16.mxu0 0
    %5033 = vmatpush1.bf16.msra.mxu0 0
    %5034 = vmatprep.subr.bf16.mxu0 0
    %5035 = vmatpush1.bf16.msra.mxu0 0
    %5036 = vmatprep.mubr.bf16.mxu0 0
    %5037 = vmatmul.mubr.bf16.gmra.mrb[0].mxu0 %v4879
    %v5038 = vpop.f32.mrb[0].mxu0
    %v5039 = vadd.f32 %v4665, %v5038
    %v5040 = vpop.f32.mrb[0].mxu0
    %v5041 = vadd.f32 %v4669, %v5040
    %v5042 = vpop.f32.mrb[0].mxu0
    %v5043 = vpop.f32.mrb[0].mxu0
    %5044 = vdwg.mxu0
    %5045 = vmatprep.subr.bf16.mxu0 %v4823
    %5046 = vmatpush1.bf16.msra.mxu0 %v4822
    %5047 = vmatprep.subr.bf16.mxu0 %v4839
    %5048 = vmatpush1.bf16.msra.mxu0 %v4838
    %5049 = vmatprep.subr.bf16.mxu0 0
    %5050 = vmatpush1.bf16.msra.mxu0 0
    %5051 = vmatprep.subr.bf16.mxu0 0
    %5052 = vmatpush1.bf16.msra.mxu0 0
    %5053 = vmatprep.subr.bf16.mxu0 0
    %5054 = vmatpush1.bf16.msra.mxu0 0
    %5055 = vmatprep.subr.bf16.mxu0 0
    %5056 = vmatpush1.bf16.msra.mxu0 0
    %5057 = vmatprep.subr.bf16.mxu0 0
    %5058 = vmatpush1.bf16.msra.mxu0 0
    %5059 = vmatprep.subr.bf16.mxu0 0
    %5060 = vmatpush1.bf16.msra.mxu0 0
    %5061 = vmatprep.subr.bf16.mxu0 0
    %5062 = vmatpush1.bf16.msra.mxu0 0
    %5063 = vmatprep.subr.bf16.mxu0 0
    %5064 = vmatpush1.bf16.msra.mxu0 0
    %5065 = vmatprep.subr.bf16.mxu0 0
    %5066 = vmatpush1.bf16.msra.mxu0 0
    %5067 = vmatprep.subr.bf16.mxu0 0
    %5068 = vmatpush1.bf16.msra.mxu0 0
    %5069 = vmatprep.subr.bf16.mxu0 0
    %5070 = vmatpush1.bf16.msra.mxu0 0
    %5071 = vmatprep.subr.bf16.mxu0 0
    %5072 = vmatpush1.bf16.msra.mxu0 0
    %5073 = vmatprep.subr.bf16.mxu0 0
    %5074 = vmatpush1.bf16.msra.mxu0 0
    %5075 = vmatprep.subr.bf16.mxu0 0
    %5076 = vmatpush1.bf16.msra.mxu0 0
    %5077 = vmatprep.mubr.bf16.mxu0 0
    %5078 = vmatmul.mubr.bf16.gmra.mrb[0].mxu0 %v4879
    %v5079 = vpop.f32.mrb[0].mxu0
    %v5080 = vadd.f32 %v4673, %v5079
    %v5081 = vpop.f32.mrb[0].mxu0
    %v5082 = vadd.f32 %v4677, %v5081
    %v5083 = vpop.f32.mrb[0].mxu0
    %v5084 = vpop.f32.mrb[0].mxu0
    %5085 = vdwg.mxu0
    %5086 = vmatprep.subr.bf16.mxu0 %v4825
    %5087 = vmatpush1.bf16.msra.mxu0 %v4824
    %5088 = vmatprep.subr.bf16.mxu0 %v4841
    %5089 = vmatpush1.bf16.msra.mxu0 %v4840
    %5090 = vmatprep.subr.bf16.mxu0 0
    %5091 = vmatpush1.bf16.msra.mxu0 0
    %5092 = vmatprep.subr.bf16.mxu0 0
    %5093 = vmatpush1.bf16.msra.mxu0 0
    %5094 = vmatprep.subr.bf16.mxu0 0
    %5095 = vmatpush1.bf16.msra.mxu0 0
    %5096 = vmatprep.subr.bf16.mxu0 0
    %5097 = vmatpush1.bf16.msra.mxu0 0
    %5098 = vmatprep.subr.bf16.mxu0 0
    %5099 = vmatpush1.bf16.msra.mxu0 0
    %5100 = vmatprep.subr.bf16.mxu0 0
    %5101 = vmatpush1.bf16.msra.mxu0 0
    %5102 = vmatprep.subr.bf16.mxu0 0
    %5103 = vmatpush1.bf16.msra.mxu0 0
    %5104 = vmatprep.subr.bf16.mxu0 0
    %5105 = vmatpush1.bf16.msra.mxu0 0
    %5106 = vmatprep.subr.bf16.mxu0 0
    %5107 = vmatpush1.bf16.msra.mxu0 0
    %5108 = vmatprep.subr.bf16.mxu0 0
    %5109 = vmatpush1.bf16.msra.mxu0 0
    %5110 = vmatprep.subr.bf16.mxu0 0
    %5111 = vmatpush1.bf16.msra.mxu0 0
    %5112 = vmatprep.subr.bf16.mxu0 0
    %5113 = vmatpush1.bf16.msra.mxu0 0
    %5114 = vmatprep.subr.bf16.mxu0 0
    %5115 = vmatpush1.bf16.msra.mxu0 0
    %5116 = vmatprep.subr.bf16.mxu0 0
    %5117 = vmatpush1.bf16.msra.mxu0 0
    %5118 = vmatprep.mubr.bf16.mxu0 0
    %5119 = vmatmul.mubr.bf16.gmra.mrb[0].mxu0 %v4879
    %v5120 = vpop.f32.mrb[0].mxu0
    %v5121 = vadd.f32 %v4681, %v5120
    %v5122 = vpop.f32.mrb[0].mxu0
    %v5123 = vadd.f32 %v4685, %v5122
    %v5124 = vpop.f32.mrb[0].mxu0
    %v5125 = vpop.f32.mrb[0].mxu0
    %5126 = vdwg.mxu0
    %5127 = vmatprep.subr.bf16.mxu0 %v4827
    %5128 = vmatpush1.bf16.msra.mxu0 %v4826
    %5129 = vmatprep.subr.bf16.mxu0 %v4843
    %5130 = vmatpush1.bf16.msra.mxu0 %v4842
    %5131 = vmatprep.subr.bf16.mxu0 0
    %5132 = vmatpush1.bf16.msra.mxu0 0
    %5133 = vmatprep.subr.bf16.mxu0 0
    %5134 = vmatpush1.bf16.msra.mxu0 0
    %5135 = vmatprep.subr.bf16.mxu0 0
    %5136 = vmatpush1.bf16.msra.mxu0 0
    %5137 = vmatprep.subr.bf16.mxu0 0
    %5138 = vmatpush1.bf16.msra.mxu0 0
    %5139 = vmatprep.subr.bf16.mxu0 0
    %5140 = vmatpush1.bf16.msra.mxu0 0
    %5141 = vmatprep.subr.bf16.mxu0 0
    %5142 = vmatpush1.bf16.msra.mxu0 0
    %5143 = vmatprep.subr.bf16.mxu0 0
    %5144 = vmatpush1.bf16.msra.mxu0 0
    %5145 = vmatprep.subr.bf16.mxu0 0
    %5146 = vmatpush1.bf16.msra.mxu0 0
    %5147 = vmatprep.subr.bf16.mxu0 0
    %5148 = vmatpush1.bf16.msra.mxu0 0
    %5149 = vmatprep.subr.bf16.mxu0 0
    %5150 = vmatpush1.bf16.msra.mxu0 0
    %5151 = vmatprep.subr.bf16.mxu0 0
    %5152 = vmatpush1.bf16.msra.mxu0 0
    %5153 = vmatprep.subr.bf16.mxu0 0
    %5154 = vmatpush1.bf16.msra.mxu0 0
    %5155 = vmatprep.subr.bf16.mxu0 0
    %5156 = vmatpush1.bf16.msra.mxu0 0
    %5157 = vmatprep.subr.bf16.mxu0 0
    %5158 = vmatpush1.bf16.msra.mxu0 0
    %5159 = vmatprep.mubr.bf16.mxu0 0
    %5160 = vmatmul.mubr.bf16.gmra.mrb[0].mxu0 %v4879
    %v5161 = vpop.f32.mrb[0].mxu0
    %v5162 = vadd.f32 %v4689, %v5161
    %v5163 = vpop.f32.mrb[0].mxu0
    %v5164 = vadd.f32 %v4693, %v5163
    %v5165 = vpop.f32.mrb[0].mxu0
    %v5166 = vpop.f32.mrb[0].mxu0
    %5167 = vdwg.mxu0
    %5168 = vmatprep.subr.bf16.mxu0 %v4829
    %5169 = vmatpush1.bf16.msra.mxu0 %v4828
    %5170 = vmatprep.subr.bf16.mxu0 %v4845
    %5171 = vmatpush1.bf16.msra.mxu0 %v4844
    %5172 = vmatprep.subr.bf16.mxu0 0
    %5173 = vmatpush1.bf16.msra.mxu0 0
    %5174 = vmatprep.subr.bf16.mxu0 0
    %5175 = vmatpush1.bf16.msra.mxu0 0
    %5176 = vmatprep.subr.bf16.mxu0 0
    %5177 = vmatpush1.bf16.msra.mxu0 0
    %5178 = vmatprep.subr.bf16.mxu0 0
    %5179 = vmatpush1.bf16.msra.mxu0 0
    %5180 = vmatprep.subr.bf16.mxu0 0
    %5181 = vmatpush1.bf16.msra.mxu0 0
    %5182 = vmatprep.subr.bf16.mxu0 0
    %5183 = vmatpush1.bf16.msra.mxu0 0
    %5184 = vmatprep.subr.bf16.mxu0 0
    %5185 = vmatpush1.bf16.msra.mxu0 0
    %5186 = vmatprep.subr.bf16.mxu0 0
    %5187 = vmatpush1.bf16.msra.mxu0 0
    %5188 = vmatprep.subr.bf16.mxu0 0
    %5189 = vmatpush1.bf16.msra.mxu0 0
    %5190 = vmatprep.subr.bf16.mxu0 0
    %5191 = vmatpush1.bf16.msra.mxu0 0
    %5192 = vmatprep.subr.bf16.mxu0 0
    %5193 = vmatpush1.bf16.msra.mxu0 0
    %5194 = vmatprep.subr.bf16.mxu0 0
    %5195 = vmatpush1.bf16.msra.mxu0 0
    %5196 = vmatprep.subr.bf16.mxu0 0
    %5197 = vmatpush1.bf16.msra.mxu0 0
    %5198 = vmatprep.subr.bf16.mxu0 0
    %5199 = vmatpush1.bf16.msra.mxu0 0
    %5200 = vmatprep.mubr.bf16.mxu0 0
    %5201 = vmatmul.mubr.bf16.gmra.mrb[0].mxu0 %v4879
    %v5202 = vpop.f32.mrb[0].mxu0
    %v5203 = vadd.f32 %v4697, %v5202
    %v5204 = vpop.f32.mrb[0].mxu0
    %v5205 = vadd.f32 %v4701, %v5204
    %v5206 = vpop.f32.mrb[0].mxu0
    %v5207 = vpop.f32.mrb[0].mxu0
    %5208 = vdwg.mxu0
    %v5209 = vmax.f32 %v4916, 0.0
    %v5210 = vmax.f32 %v4918, 0.0
    %v5211 = vmax.f32 %v4957, 0.0
    %v5212 = vmax.f32 %v4959, 0.0
    %v5213 = vmax.f32 %v4998, 0.0
    %v5214 = vmax.f32 %v5000, 0.0
    %v5215 = vmax.f32 %v5039, 0.0
    %v5216 = vmax.f32 %v5041, 0.0
    %v5217 = vmax.f32 %v5080, 0.0
    %v5218 = vmax.f32 %v5082, 0.0
    %v5219 = vmax.f32 %v5121, 0.0
    %v5220 = vmax.f32 %v5123, 0.0
    %v5221 = vmax.f32 %v5162, 0.0
    %v5222 = vmax.f32 %v5164, 0.0
    %v5223 = vmax.f32 %v5203, 0.0
    %v5224 = vmax.f32 %v5205, 0.0
    %v5225 = vpack.c.bf16 %v5209, %v5209
    %v5226 = vpack.c.bf16 %v5210, %v5210
    %v5227 = vpack.c.bf16 %v5211, %v5211
    %v5228 = vpack.c.bf16 %v5212, %v5212
    %v5229 = vpack.c.bf16 %v5213, %v5213
    %v5230 = vpack.c.bf16 %v5214, %v5214
    %v5231 = vpack.c.bf16 %v5215, %v5215
    %v5232 = vpack.c.bf16 %v5216, %v5216
    %v5233 = vpack.c.bf16 %v5217, %v5217
    %v5234 = vpack.c.bf16 %v5218, %v5218
    %v5235 = vpack.c.bf16 %v5219, %v5219
    %v5236 = vpack.c.bf16 %v5220, %v5220
    %v5237 = vpack.c.bf16 %v5221, %v5221
    %v5238 = vpack.c.bf16 %v5222, %v5222
    %v5239 = vpack.c.bf16 %v5223, %v5223
    %v5240 = vpack.c.bf16 %v5224, %v5224
    %5241 = vmatprep.subr.bf16.mxu0 0
    %5242 = vmatpush1.bf16.msra.mxu0 %v1635
    %5243 = vmatprep.subr.bf16.mxu0 0
    %5244 = vmatpush1.bf16.msra.mxu0 %v1636
    %5245 = vmatprep.subr.bf16.mxu0 0
    %5246 = vmatpush1.bf16.msra.mxu0 %v1637
    %5247 = vmatprep.subr.bf16.mxu0 0
    %5248 = vmatpush1.bf16.msra.mxu0 %v1638
    %5249 = vmatprep.subr.bf16.mxu0 0
    %5250 = vmatpush1.bf16.msra.mxu0 %v1639
    %5251 = vmatprep.subr.bf16.mxu0 0
    %5252 = vmatpush1.bf16.msra.mxu0 %v1640
    %5253 = vmatprep.subr.bf16.mxu0 0
    %5254 = vmatpush1.bf16.msra.mxu0 %v1641
    %5255 = vmatprep.subr.bf16.mxu0 0
    %5256 = vmatpush1.bf16.msra.mxu0 %v1642
    %5257 = vmatprep.subr.bf16.mxu0 0
    %5258 = vmatpush1.bf16.msra.mxu0 %v1643
    %5259 = vmatprep.subr.bf16.mxu0 0
    %5260 = vmatpush1.bf16.msra.mxu0 %v1644
    %5261 = vmatprep.subr.bf16.mxu0 0
    %5262 = vmatpush1.bf16.msra.mxu0 %v1645
    %5263 = vmatprep.subr.bf16.mxu0 0
    %5264 = vmatpush1.bf16.msra.mxu0 %v1646
    %5265 = vmatprep.subr.bf16.mxu0 0
    %5266 = vmatpush1.bf16.msra.mxu0 %v1647
    %5267 = vmatprep.subr.bf16.mxu0 0
    %5268 = vmatpush1.bf16.msra.mxu0 %v1648
    %5269 = vmatprep.subr.bf16.mxu0 0
    %5270 = vmatpush1.bf16.msra.mxu0 %v1649
    %5271 = vmatprep.subr.bf16.mxu0 0
    %5272 = vmatpush1.bf16.msra.mxu0 %v1650
    %5273 = vmatprep.mubr.bf16.mxu0 %v5226
    %5274 = vmatmul.mubr.bf16.gmra.mrb[0].mxu0 %v5225
    %v5275 = vpop.f32.mrb[0].mxu0
    %v5276 = vadd.f32 0.0, %v5275
    %v5277 = vpop.f32.mrb[0].mxu0
    %v5278 = vpop.f32.mrb[0].mxu0
    %v5279 = vpop.f32.mrb[0].mxu0
    %5280 = vdwg.mxu0
    %5281 = vmatprep.subr.bf16.mxu0 0
    %5282 = vmatpush1.bf16.msra.mxu0 %v1651
    %5283 = vmatprep.subr.bf16.mxu0 0
    %5284 = vmatpush1.bf16.msra.mxu0 %v1652
    %5285 = vmatprep.subr.bf16.mxu0 0
    %5286 = vmatpush1.bf16.msra.mxu0 %v1653
    %5287 = vmatprep.subr.bf16.mxu0 0
    %5288 = vmatpush1.bf16.msra.mxu0 %v1654
    %5289 = vmatprep.subr.bf16.mxu0 0
    %5290 = vmatpush1.bf16.msra.mxu0 %v1655
    %5291 = vmatprep.subr.bf16.mxu0 0
    %5292 = vmatpush1.bf16.msra.mxu0 %v1656
    %5293 = vmatprep.subr.bf16.mxu0 0
    %5294 = vmatpush1.bf16.msra.mxu0 %v1657
    %5295 = vmatprep.subr.bf16.mxu0 0
    %5296 = vmatpush1.bf16.msra.mxu0 %v1658
    %5297 = vmatprep.subr.bf16.mxu0 0
    %5298 = vmatpush1.bf16.msra.mxu0 %v1659
    %5299 = vmatprep.subr.bf16.mxu0 0
    %5300 = vmatpush1.bf16.msra.mxu0 %v1660
    %5301 = vmatprep.subr.bf16.mxu0 0
    %5302 = vmatpush1.bf16.msra.mxu0 %v1661
    %5303 = vmatprep.subr.bf16.mxu0 0
    %5304 = vmatpush1.bf16.msra.mxu0 %v1662
    %5305 = vmatprep.subr.bf16.mxu0 0
    %5306 = vmatpush1.bf16.msra.mxu0 %v1663
    %5307 = vmatprep.subr.bf16.mxu0 0
    %5308 = vmatpush1.bf16.msra.mxu0 %v1664
    %5309 = vmatprep.subr.bf16.mxu0 0
    %5310 = vmatpush1.bf16.msra.mxu0 %v1665
    %5311 = vmatprep.subr.bf16.mxu0 0
    %5312 = vmatpush1.bf16.msra.mxu0 %v1666
    %5313 = vmatprep.mubr.bf16.mxu0 %v5228
    %5314 = vmatmul.mubr.bf16.gmra.mrb[0].mxu0 %v5227
    %v5315 = vpop.f32.mrb[0].mxu0
    %v5316 = vadd.f32 %v5276, %v5315
    %v5317 = vpop.f32.mrb[0].mxu0
    %v5318 = vpop.f32.mrb[0].mxu0
    %v5319 = vpop.f32.mrb[0].mxu0
    %5320 = vdwg.mxu0
    %5321 = vmatprep.subr.bf16.mxu0 0
    %5322 = vmatpush1.bf16.msra.mxu0 %v1667
    %5323 = vmatprep.subr.bf16.mxu0 0
    %5324 = vmatpush1.bf16.msra.mxu0 %v1668
    %5325 = vmatprep.subr.bf16.mxu0 0
    %5326 = vmatpush1.bf16.msra.mxu0 %v1669
    %5327 = vmatprep.subr.bf16.mxu0 0
    %5328 = vmatpush1.bf16.msra.mxu0 %v1670
    %5329 = vmatprep.subr.bf16.mxu0 0
    %5330 = vmatpush1.bf16.msra.mxu0 %v1671
    %5331 = vmatprep.subr.bf16.mxu0 0
    %5332 = vmatpush1.bf16.msra.mxu0 %v1672
    %5333 = vmatprep.subr.bf16.mxu0 0
    %5334 = vmatpush1.bf16.msra.mxu0 %v1673
    %5335 = vmatprep.subr.bf16.mxu0 0
    %5336 = vmatpush1.bf16.msra.mxu0 %v1674
    %5337 = vmatprep.subr.bf16.mxu0 0
    %5338 = vmatpush1.bf16.msra.mxu0 %v1675
    %5339 = vmatprep.subr.bf16.mxu0 0
    %5340 = vmatpush1.bf16.msra.mxu0 %v1676
    %5341 = vmatprep.subr.bf16.mxu0 0
    %5342 = vmatpush1.bf16.msra.mxu0 %v1677
    %5343 = vmatprep.subr.bf16.mxu0 0
    %5344 = vmatpush1.bf16.msra.mxu0 %v1678
    %5345 = vmatprep.subr.bf16.mxu0 0
    %5346 = vmatpush1.bf16.msra.mxu0 %v1679
    %5347 = vmatprep.subr.bf16.mxu0 0
    %5348 = vmatpush1.bf16.msra.mxu0 %v1680
    %5349 = vmatprep.subr.bf16.mxu0 0
    %5350 = vmatpush1.bf16.msra.mxu0 %v1681
    %5351 = vmatprep.subr.bf16.mxu0 0
    %5352 = vmatpush1.bf16.msra.mxu0 %v1682
    %5353 = vmatprep.mubr.bf16.mxu0 %v5230
    %5354 = vmatmul.mubr.bf16.gmra.mrb[0].mxu0 %v5229
    %v5355 = vpop.f32.mrb[0].mxu0
    %v5356 = vadd.f32 %v5316, %v5355
    %v5357 = vpop.f32.mrb[0].mxu0
    %v5358 = vpop.f32.mrb[0].mxu0
    %v5359 = vpop.f32.mrb[0].mxu0
    %5360 = vdwg.mxu0
    %5361 = vmatprep.subr.bf16.mxu0 0
    %5362 = vmatpush1.bf16.msra.mxu0 %v1683
    %5363 = vmatprep.subr.bf16.mxu0 0
    %5364 = vmatpush1.bf16.msra.mxu0 %v1684
    %5365 = vmatprep.subr.bf16.mxu0 0
    %5366 = vmatpush1.bf16.msra.mxu0 %v1685
    %5367 = vmatprep.subr.bf16.mxu0 0
    %5368 = vmatpush1.bf16.msra.mxu0 %v1686
    %5369 = vmatprep.subr.bf16.mxu0 0
    %5370 = vmatpush1.bf16.msra.mxu0 %v1687
    %5371 = vmatprep.subr.bf16.mxu0 0
    %5372 = vmatpush1.bf16.msra.mxu0 %v1688
    %5373 = vmatprep.subr.bf16.mxu0 0
    %5374 = vmatpush1.bf16.msra.mxu0 %v1689
    %5375 = vmatprep.subr.bf16.mxu0 0
    %5376 = vmatpush1.bf16.msra.mxu0 %v1690
    %5377 = vmatprep.subr.bf16.mxu0 0
    %5378 = vmatpush1.bf16.msra.mxu0 %v1691
    %5379 = vmatprep.subr.bf16.mxu0 0
    %5380 = vmatpush1.bf16.msra.mxu0 %v1692
    %5381 = vmatprep.subr.bf16.mxu0 0
    %5382 = vmatpush1.bf16.msra.mxu0 %v1693
    %5383 = vmatprep.subr.bf16.mxu0 0
    %5384 = vmatpush1.bf16.msra.mxu0 %v1694
    %5385 = vmatprep.subr.bf16.mxu0 0
    %5386 = vmatpush1.bf16.msra.mxu0 %v1695
    %5387 = vmatprep.subr.bf16.mxu0 0
    %5388 = vmatpush1.bf16.msra.mxu0 %v1696
    %5389 = vmatprep.subr.bf16.mxu0 0
    %5390 = vmatpush1.bf16.msra.mxu0 %v1697
    %5391 = vmatprep.subr.bf16.mxu0 0
    %5392 = vmatpush1.bf16.msra.mxu0 %v1698
    %5393 = vmatprep.mubr.bf16.mxu0 %v5232
    %5394 = vmatmul.mubr.bf16.gmra.mrb[0].mxu0 %v5231
    %v5395 = vpop.f32.mrb[0].mxu0
    %v5396 = vadd.f32 %v5356, %v5395
    %v5397 = vpop.f32.mrb[0].mxu0
    %v5398 = vpop.f32.mrb[0].mxu0
    %v5399 = vpop.f32.mrb[0].mxu0
    %5400 = vdwg.mxu0
    %5401 = vmatprep.subr.bf16.mxu0 0
    %5402 = vmatpush1.bf16.msra.mxu0 %v1699
    %5403 = vmatprep.subr.bf16.mxu0 0
    %5404 = vmatpush1.bf16.msra.mxu0 %v1700
    %5405 = vmatprep.subr.bf16.mxu0 0
    %5406 = vmatpush1.bf16.msra.mxu0 %v1701
    %5407 = vmatprep.subr.bf16.mxu0 0
    %5408 = vmatpush1.bf16.msra.mxu0 %v1702
    %5409 = vmatprep.subr.bf16.mxu0 0
    %5410 = vmatpush1.bf16.msra.mxu0 %v1703
    %5411 = vmatprep.subr.bf16.mxu0 0
    %5412 = vmatpush1.bf16.msra.mxu0 %v1704
    %5413 = vmatprep.subr.bf16.mxu0 0
    %5414 = vmatpush1.bf16.msra.mxu0 %v1705
    %5415 = vmatprep.subr.bf16.mxu0 0
    %5416 = vmatpush1.bf16.msra.mxu0 %v1706
    %5417 = vmatprep.subr.bf16.mxu0 0
    %5418 = vmatpush1.bf16.msra.mxu0 %v1707
    %5419 = vmatprep.subr.bf16.mxu0 0
    %5420 = vmatpush1.bf16.msra.mxu0 %v1708
    %5421 = vmatprep.subr.bf16.mxu0 0
    %5422 = vmatpush1.bf16.msra.mxu0 %v1709
    %5423 = vmatprep.subr.bf16.mxu0 0
    %5424 = vmatpush1.bf16.msra.mxu0 %v1710
    %5425 = vmatprep.subr.bf16.mxu0 0
    %5426 = vmatpush1.bf16.msra.mxu0 %v1711
    %5427 = vmatprep.subr.bf16.mxu0 0
    %5428 = vmatpush1.bf16.msra.mxu0 %v1712
    %5429 = vmatprep.subr.bf16.mxu0 0
    %5430 = vmatpush1.bf16.msra.mxu0 %v1713
    %5431 = vmatprep.subr.bf16.mxu0 0
    %5432 = vmatpush1.bf16.msra.mxu0 %v1714
    %5433 = vmatprep.mubr.bf16.mxu0 %v5234
    %5434 = vmatmul.mubr.bf16.gmra.mrb[0].mxu0 %v5233
    %v5435 = vpop.f32.mrb[0].mxu0
    %v5436 = vadd.f32 %v5396, %v5435
    %v5437 = vpop.f32.mrb[0].mxu0
    %v5438 = vpop.f32.mrb[0].mxu0
    %v5439 = vpop.f32.mrb[0].mxu0
    %5440 = vdwg.mxu0
    %5441 = vmatprep.subr.bf16.mxu0 0
    %5442 = vmatpush1.bf16.msra.mxu0 %v1715
    %5443 = vmatprep.subr.bf16.mxu0 0
    %5444 = vmatpush1.bf16.msra.mxu0 %v1716
    %5445 = vmatprep.subr.bf16.mxu0 0
    %5446 = vmatpush1.bf16.msra.mxu0 %v1717
    %5447 = vmatprep.subr.bf16.mxu0 0
    %5448 = vmatpush1.bf16.msra.mxu0 %v1718
    %5449 = vmatprep.subr.bf16.mxu0 0
    %5450 = vmatpush1.bf16.msra.mxu0 %v1719
    %5451 = vmatprep.subr.bf16.mxu0 0
    %5452 = vmatpush1.bf16.msra.mxu0 %v1720
    %5453 = vmatprep.subr.bf16.mxu0 0
    %5454 = vmatpush1.bf16.msra.mxu0 %v1721
    %5455 = vmatprep.subr.bf16.mxu0 0
    %5456 = vmatpush1.bf16.msra.mxu0 %v1722
    %5457 = vmatprep.subr.bf16.mxu0 0
    %5458 = vmatpush1.bf16.msra.mxu0 %v1723
    %5459 = vmatprep.subr.bf16.mxu0 0
    %5460 = vmatpush1.bf16.msra.mxu0 %v1724
    %5461 = vmatprep.subr.bf16.mxu0 0
    %5462 = vmatpush1.bf16.msra.mxu0 %v1725
    %5463 = vmatprep.subr.bf16.mxu0 0
    %5464 = vmatpush1.bf16.msra.mxu0 %v1726
    %5465 = vmatprep.subr.bf16.mxu0 0
    %5466 = vmatpush1.bf16.msra.mxu0 %v1727
    %5467 = vmatprep.subr.bf16.mxu0 0
    %5468 = vmatpush1.bf16.msra.mxu0 %v1728
    %5469 = vmatprep.subr.bf16.mxu0 0
    %5470 = vmatpush1.bf16.msra.mxu0 %v1729
    %5471 = vmatprep.subr.bf16.mxu0 0
    %5472 = vmatpush1.bf16.msra.mxu0 %v1730
    %5473 = vmatprep.mubr.bf16.mxu0 %v5236
    %5474 = vmatmul.mubr.bf16.gmra.mrb[0].mxu0 %v5235
    %v5475 = vpop.f32.mrb[0].mxu0
    %v5476 = vadd.f32 %v5436, %v5475
    %v5477 = vpop.f32.mrb[0].mxu0
    %v5478 = vpop.f32.mrb[0].mxu0
    %v5479 = vpop.f32.mrb[0].mxu0
    %5480 = vdwg.mxu0
    %5481 = vmatprep.subr.bf16.mxu0 0
    %5482 = vmatpush1.bf16.msra.mxu0 %v1731
    %5483 = vmatprep.subr.bf16.mxu0 0
    %5484 = vmatpush1.bf16.msra.mxu0 %v1732
    %5485 = vmatprep.subr.bf16.mxu0 0
    %5486 = vmatpush1.bf16.msra.mxu0 %v1733
    %5487 = vmatprep.subr.bf16.mxu0 0
    %5488 = vmatpush1.bf16.msra.mxu0 %v1734
    %5489 = vmatprep.subr.bf16.mxu0 0
    %5490 = vmatpush1.bf16.msra.mxu0 %v1735
    %5491 = vmatprep.subr.bf16.mxu0 0
    %5492 = vmatpush1.bf16.msra.mxu0 %v1736
    %5493 = vmatprep.subr.bf16.mxu0 0
    %5494 = vmatpush1.bf16.msra.mxu0 %v1737
    %5495 = vmatprep.subr.bf16.mxu0 0
    %5496 = vmatpush1.bf16.msra.mxu0 %v1738
    %5497 = vmatprep.subr.bf16.mxu0 0
    %5498 = vmatpush1.bf16.msra.mxu0 %v1739
    %5499 = vmatprep.subr.bf16.mxu0 0
    %5500 = vmatpush1.bf16.msra.mxu0 %v1740
    %5501 = vmatprep.subr.bf16.mxu0 0
    %5502 = vmatpush1.bf16.msra.mxu0 %v1741
    %5503 = vmatprep.subr.bf16.mxu0 0
    %5504 = vmatpush1.bf16.msra.mxu0 %v1742
    %5505 = vmatprep.subr.bf16.mxu0 0
    %5506 = vmatpush1.bf16.msra.mxu0 %v1743
    %5507 = vmatprep.subr.bf16.mxu0 0
    %5508 = vmatpush1.bf16.msra.mxu0 %v1744
    %5509 = vmatprep.subr.bf16.mxu0 0
    %5510 = vmatpush1.bf16.msra.mxu0 %v1745
    %5511 = vmatprep.subr.bf16.mxu0 0
    %5512 = vmatpush1.bf16.msra.mxu0 %v1746
    %5513 = vmatprep.mubr.bf16.mxu0 %v5238
    %5514 = vmatmul.mubr.bf16.gmra.mrb[0].mxu0 %v5237
    %v5515 = vpop.f32.mrb[0].mxu0
    %v5516 = vadd.f32 %v5476, %v5515
    %v5517 = vpop.f32.mrb[0].mxu0
    %v5518 = vpop.f32.mrb[0].mxu0
    %v5519 = vpop.f32.mrb[0].mxu0
    %5520 = vdwg.mxu0
    %5521 = vmatprep.subr.bf16.mxu0 0
    %5522 = vmatpush1.bf16.msra.mxu0 %v1747
    %5523 = vmatprep.subr.bf16.mxu0 0
    %5524 = vmatpush1.bf16.msra.mxu0 %v1748
    %5525 = vmatprep.subr.bf16.mxu0 0
    %5526 = vmatpush1.bf16.msra.mxu0 %v1749
    %5527 = vmatprep.subr.bf16.mxu0 0
    %5528 = vmatpush1.bf16.msra.mxu0 %v1750
    %5529 = vmatprep.subr.bf16.mxu0 0
    %5530 = vmatpush1.bf16.msra.mxu0 %v1751
    %5531 = vmatprep.subr.bf16.mxu0 0
    %5532 = vmatpush1.bf16.msra.mxu0 %v1752
    %5533 = vmatprep.subr.bf16.mxu0 0
    %5534 = vmatpush1.bf16.msra.mxu0 %v1753
    %5535 = vmatprep.subr.bf16.mxu0 0
    %5536 = vmatpush1.bf16.msra.mxu0 %v1754
    %5537 = vmatprep.subr.bf16.mxu0 0
    %5538 = vmatpush1.bf16.msra.mxu0 %v1755
    %5539 = vmatprep.subr.bf16.mxu0 0
    %5540 = vmatpush1.bf16.msra.mxu0 %v1756
    %5541 = vmatprep.subr.bf16.mxu0 0
    %5542 = vmatpush1.bf16.msra.mxu0 %v1757
    %5543 = vmatprep.subr.bf16.mxu0 0
    %5544 = vmatpush1.bf16.msra.mxu0 %v1758
    %5545 = vmatprep.subr.bf16.mxu0 0
    %5546 = vmatpush1.bf16.msra.mxu0 %v1759
    %5547 = vmatprep.subr.bf16.mxu0 0
    %5548 = vmatpush1.bf16.msra.mxu0 %v1760
    %5549 = vmatprep.subr.bf16.mxu0 0
    %5550 = vmatpush1.bf16.msra.mxu0 %v1761
    %5551 = vmatprep.subr.bf16.mxu0 0
    %5552 = vmatpush1.bf16.msra.mxu0 %v1762
    %5553 = vmatprep.mubr.bf16.mxu0 %v5240
    %5554 = vmatmul.mubr.bf16.gmra.mrb[0].mxu0 %v5239
    %v5555 = vpop.f32.mrb[0].mxu0
    %v5556 = vadd.f32 %v5516, %v5555
    %v5557 = vpop.f32.mrb[0].mxu0
    %v5558 = vpop.f32.mrb[0].mxu0
    %v5559 = vpop.f32.mrb[0].mxu0
    %5560 = vdwg.mxu0
    %v5561 = vld [vmem:[%s6 + $0x1a] sm:$0x1]
    %v5562 = vlaneseq
    %v5563 = vshrl.u32 %v5562, 7
    %v5564 = vsub.s32 0, %v5563
    %v5565 = vrot.slane %v5561, %v5564
    %5567 = vrot.lane.b32.xlu0 %v5565, 96
    %v5568 = vpop.permute.xlu0 %5567
    %v5570 = vadd.f32 %v5556, %v5568
    %5572 = vrot.lane.b32.xlu0 %v5570, 32
    %v5573 = vpop.permute.xlu0 %5572
    %v5575 = vadd.f32 %v4597, %v5573
    %v5576 = vsel %vm405, %v5575, 0.0
    %5577 = vadd.xlane.f32.xlu0 %v5576
    %v5578 = vpop.xlane.xlu0 %5577
    %v5579 = vmul.f32 %v5578, %v459
    %v5580 = vsub.f32 %v5575, %v5579
    %v5581 = vmul.f32 %v5580, %v5580
    %v5582 = vsel %vm405, %v5581, 0.0
    %5583 = vadd.xlane.f32.xlu0 %v5582
    %v5584 = vpop.xlane.xlu0 %5583
    %v5585 = vmul.f32 %v5584, %v459
    %v5586 = vadd.f32 %v5585, 1e-05
    %v5587 = vrsqrt.pop %v5586
    %v5588 = vmul.f32 %v5580, %v5587
    %v5589 = vld [vmem:[%s6 + $0x1f] sm:$0x1]
    %v5590 = vlaneseq
    %v5591 = vshrl.u32 %v5590, 7
    %v5592 = vsub.s32 0, %v5591
    %v5593 = vrot.slane %v5589, %v5592
    %v5594 = vmul.f32 %v5588, %v5593
    %v5595 = vld [vmem:[%s6 + $0x20] sm:$0x1]
    %v5596 = vlaneseq
    %v5597 = vshrl.u32 %v5596, 7
    %v5598 = vsub.s32 0, %v5597
    %v5599 = vrot.slane %v5595, %v5598
    %v5600 = vadd.f32 %v5594, %v5599
    %v5601 = vsel %vm405, %v5600, 0.0
    %5602 = vadd.xlane.f32.xlu0 %v5601
    %v5603 = vpop.xlane.xlu0 %5602
    %v5604 = vmul.f32 %v5603, %v459
    %v5605 = vsub.f32 %v5600, %v5604
    %v5606 = vmul.f32 %v5605, %v5605
    %v5607 = vsel %vm405, %v5606, 0.0
    %5608 = vadd.xlane.f32.xlu0 %v5607
    %v5609 = vpop.xlane.xlu0 %5608
    %v5610 = vmul.f32 %v5609, %v459
    %v5611 = vadd.f32 %v5610, 1e-05
    %v5612 = vrsqrt.pop %v5611
    %v5613 = vmul.f32 %v5605, %v5612
    %v5614 = vld [vmem:[%s6 + $0x21] sm:$0x1]
    %v5615 = vlaneseq
    %v5616 = vshrl.u32 %v5615, 7
    %v5617 = vsub.s32 0, %v5616
    %v5618 = vrot.slane %v5614, %v5617
    %v5619 = vmul.f32 %v5613, %v5618
    %v5620 = vld [vmem:[%s6 + $0x22] sm:$0x1]
    %v5621 = vlaneseq
    %v5622 = vshrl.u32 %v5621, 7
    %v5623 = vsub.s32 0, %v5622
    %v5624 = vrot.slane %v5620, %v5623
    %v5625 = vadd.f32 %v5619, %v5624
    %v5626 = vld [vmem:[%s6 + $0x23] sm:$0x1]
    %v5627 = vlaneseq
    %v5628 = vshrl.u32 %v5627, 7
    %v5629 = vsub.s32 0, %v5628
    %v5630 = vrot.slane %v5626, %v5629
    %v5631 = vmul.f32 %v5625, %v5630
    %v5632 = vsel %vm405, %v5631, 0.0
    %5633 = vadd.xlane.f32.xlu0 %v5632
    %v5634 = vpop.xlane.xlu0 %5633
    %v5635 = vld [vmem:[%s6 + $0x24] sm:$0x1]
    %v5636 = vlaneseq
    %v5637 = vshrl.u32 %v5636, 7
    %v5638 = vsub.s32 0, %v5637
    %v5639 = vrot.slane %v5635, %v5638
    %v5640 = vadd.f32 %v5634, %v5639
    %vm5641 = vcmask 7168
    %5642 = vst.msk [vmem:[%s7] sm:$0xff] %vm5641, %v5640
    // Predicated region
    $region42: #{stock_transformer_forward.1} parent=1 // pred_check
      _
    $region43: #{stock_transformer_forward.1} parent=1 // pred_check_branch
      %5644 = sbr.rel (0) target = $region45
    $region44: #{stock_transformer_forward.1} parent=1 // pred_region
      _
    $region45: #{stock_transformer_forward.1} parent=1 // pred_fallthru
      _
    // Predicated region
    $region46: #{stock_transformer_forward.1} parent=1 // pred_check
      _
    $region47: #{stock_transformer_forward.1} parent=1 // pred_check_branch
      %5646 = sbr.rel (0) target = $region49
    $region48: #{stock_transformer_forward.1} parent=1 // pred_region
      _
    $region49: #{stock_transformer_forward.1} parent=1 // pred_fallthru
      _
    %5647 = vsyncpa [#allocation3], 1
    %5648 = vsyncpa [#allocation5], 1

</llo_original>
